<compile_context>
chip_gen: v7x
topology: tpu7x:2x2x1
jax: 0.10.0
libtpu: 0.0.40
codegen_flags: <defaults>
</compile_context>

<pallas_src>
import jax
import jax.numpy as jnp
from jax.experimental import pallas as pl
from jax.experimental.pallas import tpu as pltpu


def _make_unet_block_kernel(C_in, C_out, H, W, eps, residual, conv_shortcut):
    """Builds the fused per-sample kernel (one grid step == one batch sample)."""
    KH, KW = 3, 3

    def _sum_all(v):
        # Staged full reduction (leading dim -> sublanes -> lanes); result (1, 1).
        s = jnp.sum(v, axis=0)                     # (H, W)
        s = jnp.sum(s, axis=0, keepdims=True)      # (1, W)
        s = jnp.sum(s, axis=1, keepdims=True)      # (1, 1)
        return s

    def kernel(*refs):
        if conv_shortcut:
            (x_ref, g_ref, bt_ref, w1_ref, b1_ref, w2_ref, b2_ref,
             wsc_ref, bsc_ref, o_ref, pad_ref) = refs
        else:
            (x_ref, g_ref, bt_ref, w1_ref, b1_ref, w2_ref, b2_ref,
             o_ref, pad_ref) = refs

        x = x_ref[0].astype(jnp.float32)           # (C_in, H, W)

        # ---- LayerNorm over (C_in, H, W) (PyTorch semantics: biased variance) ----
        inv_n = 1.0 / float(C_in * H * W)
        mean = _sum_all(x) * inv_n                 # (1, 1)
        cen = x - mean
        var = _sum_all(cen * cen) * inv_n          # (1, 1)
        inv_std = jax.lax.rsqrt(var + eps)
        xn = cen * inv_std * g_ref[...] + bt_ref[...]

        # ---- stage LN output into the zero-padded scratch (halo stays 0) ----
        pad_ref[...] = jnp.zeros_like(pad_ref)
        for ci in range(C_in):
            pad_ref[ci, 1:H + 1, 1:W + 1] = xn[ci]

        # ---- conv1: 3x3, stride 1, pad 1, + bias, + ReLU ----
        acc1 = [jnp.full((H, W), b1_ref[co], jnp.float32) for co in range(C_out)]
        for k in range(KH * KW):
            dy, dx = divmod(k, KW)
            for ci in range(C_in):
                patch = pad_ref[ci, dy:dy + H, dx:dx + W]      # (H, W)
                for co in range(C_out):
                    acc1[co] = acc1[co] + w1_ref[(co * C_in + ci) * 9 + k] * patch
        h = [jnp.maximum(a, 0.0) for a in acc1]

        # ---- stage ReLU(conv1) back into the (still zero-halo) scratch ----
        for co in range(C_out):
            pad_ref[co, 1:H + 1, 1:W + 1] = h[co]

        # ---- conv2: 3x3, stride 1, pad 1, + bias ----
        acc2 = [jnp.full((H, W), b2_ref[co], jnp.float32) for co in range(C_out)]
        for k in range(KH * KW):
            dy, dx = divmod(k, KW)
            for ci in range(C_out):
                patch = pad_ref[ci, dy:dy + H, dx:dx + W]
                for co in range(C_out):
                    acc2[co] = acc2[co] + w2_ref[(co * C_out + ci) * 9 + k] * patch

        # ---- residual shortcut + final ReLU, write output ----
        for co in range(C_out):
            r = acc2[co]
            if residual:
                if conv_shortcut:                  # 1x1 conv shortcut (C_in != C_out)
                    sc = jnp.full((H, W), bsc_ref[co], jnp.float32)
                    for ci in range(C_in):
                        sc = sc + wsc_ref[co * C_in + ci] * x[ci]
                    r = r + sc
                else:                              # identity shortcut (C_in == C_out)
                    r = r + x[co]
            o_ref[0, co] = jnp.maximum(r, 0.0).astype(o_ref.dtype)

    return kernel


def unet_block(x, params, *, residual=True, eps=1e-5):
    """Pallas implementation of UnetBlock.forward for NCHW input."""
    N, C_in, H, W = x.shape
    w1 = params["w1"]
    C_out = w1.shape[0]
    assert w1.shape == (C_out, C_in, 3, 3)
    assert params["w2"].shape == (C_out, C_out, 3, 3)

    conv_shortcut = bool(residual and (C_in != C_out))
    f32 = jnp.float32

    inputs = [
        x.astype(f32),
        params["ln_gamma"].astype(f32),
        params["ln_beta"].astype(f32),
        params["w1"].astype(f32).reshape(-1),     # (C_out*C_in*9,) row-major
        params["b1"].astype(f32).reshape(-1),     # (C_out,)
        params["w2"].astype(f32).reshape(-1),     # (C_out*C_out*9,)
        params["b2"].astype(f32).reshape(-1),     # (C_out,)
    ]
    in_specs = [
        pl.BlockSpec((1, C_in, H, W), lambda n: (n, 0, 0, 0)),        # x
        pl.BlockSpec((C_in, H, W), lambda n: (0, 0, 0)),              # ln gamma
        pl.BlockSpec((C_in, H, W), lambda n: (0, 0, 0)),              # ln beta
        pl.BlockSpec(memory_space=pltpu.MemorySpace.SMEM),            # w1 scalars
        pl.BlockSpec(memory_space=pltpu.MemorySpace.SMEM),            # b1 scalars
        pl.BlockSpec(memory_space=pltpu.MemorySpace.SMEM),            # w2 scalars
        pl.BlockSpec(memory_space=pltpu.MemorySpace.SMEM),            # b2 scalars
    ]
    if conv_shortcut:
        inputs += [
            params["wsc"].astype(f32).reshape(-1),                    # (C_out*C_in,)
            params["bsc"].astype(f32).reshape(-1),                    # (C_out,)
        ]
        in_specs += [pl.BlockSpec(memory_space=pltpu.MemorySpace.SMEM)] * 2

    kernel = _make_unet_block_kernel(C_in, C_out, H, W, float(eps),
                                     residual, conv_shortcut)

    flops_per_sample = (
        2 * 9 * C_in * C_out * H * W        # conv1
        + 2 * 9 * C_out * C_out * H * W     # conv2
        + 8 * C_in * H * W                  # layernorm
        + 4 * C_out * H * W)                # bias / residual / relu
    bytes_accessed = 4 * (
        N * C_in * H * W + N * C_out * H * W + 2 * C_in * H * W
        + params["w1"].size + params["w2"].size + 2 * C_out)

    out = pl.pallas_call(
        kernel,
        out_shape=jax.ShapeDtypeStruct((N, C_out, H, W), x.dtype),
        grid_spec=pltpu.PrefetchScalarGridSpec(
            num_scalar_prefetch=0,
            grid=(N,),
            in_specs=in_specs,
            out_specs=pl.BlockSpec((1, C_out, H, W), lambda n: (n, 0, 0, 0)),
            scratch_shapes=[
                pltpu.VMEM((max(C_in, C_out), H + 2, W + 2), jnp.float32),
            ],
        ),
        compiler_params=pltpu.CompilerParams(
            dimension_semantics=("parallel",),
        ),
        cost_estimate=pl.CostEstimate(
            flops=N * flops_per_sample,
            transcendentals=N,
            bytes_accessed=bytes_accessed,
        ),
    )(*inputs)
    return out


def unet_block_ref(x, params, *, residual=True, eps=1e-5):
    """Pure-JAX reference (mirrors the PyTorch module) for correctness check."""
    x = x.astype(jnp.float32)
    mean = jnp.mean(x, axis=(1, 2, 3), keepdims=True)
    var = jnp.mean(jnp.square(x - mean), axis=(1, 2, 3), keepdims=True)
    xn = (x - mean) / jnp.sqrt(var + eps)
    xn = xn * params["ln_gamma"][None] + params["ln_beta"][None]

    def conv(v, w, b, pad):
        out = jax.lax.conv_general_dilated(
            v, w.astype(jnp.float32), window_strides=(1, 1),
            padding=[(pad, pad), (pad, pad)],
            dimension_numbers=("NCHW", "OIHW", "NCHW"),
            precision=jax.lax.Precision.HIGHEST)
        return out + b.astype(jnp.float32)[None, :, None, None]

    h = jnp.maximum(conv(xn, params["w1"], params["b1"], 1), 0.0)
    y = conv(h, params["w2"], params["b2"], 1)
    if residual:
        C_in, C_out = x.shape[1], params["w1"].shape[0]
        if C_in == C_out:
            y = y + x
        else:
            y = y + conv(x, params["wsc"], params["bsc"], 0)
    return jnp.maximum(y, 0.0)


if __name__ == "__main__":
    # Small shapes: batch=2, in_c=out_c=4 (identity shortcut), spatial 16x16.
    N, C, H, W = 2, 4, 16, 16
    key = jax.random.PRNGKey(0)
    ks = jax.random.split(key, 7)
    x = jax.random.normal(ks[0], (N, C, H, W), dtype=jnp.float32)
    params = {
        "ln_gamma": 1.0 + 0.1 * jax.random.normal(ks[1], (C, H, W), jnp.float32),
        "ln_beta": 0.1 * jax.random.normal(ks[2], (C, H, W), jnp.float32),
        "w1": 0.2 * jax.random.normal(ks[3], (C, C, 3, 3), jnp.float32),
        "b1": 0.1 * jax.random.normal(ks[4], (C,), jnp.float32),
        "w2": 0.2 * jax.random.normal(ks[5], (C, C, 3, 3), jnp.float32),
        "b2": 0.1 * jax.random.normal(ks[6], (C,), jnp.float32),
    }

    y = unet_block(x, params, residual=True)
    jax.block_until_ready(y)

    assert y.shape == (N, C, H, W), y.shape
    assert y.dtype == x.dtype, y.dtype

    y_ref = unet_block_ref(x, params, residual=True)
    err = float(jnp.max(jnp.abs(y - y_ref)))
    assert err < 1e-3, f"max abs err vs reference = {err}"

    print("KERNEL_OK")
</pallas_src>

<mosaic_0001>
module attributes {stable_mosaic.version = 11 : i64} {
  func.func @kernel(%arg0: i32, %arg1: memref<1x4x16x16xf32, #tpu.memory_space<vmem>>, %arg2: memref<4x16x16xf32, #tpu.memory_space<vmem>>, %arg3: memref<4x16x16xf32, #tpu.memory_space<vmem>>, %arg4: memref<144xf32, #tpu.memory_space<smem>>, %arg5: memref<4xf32, #tpu.memory_space<smem>>, %arg6: memref<144xf32, #tpu.memory_space<smem>>, %arg7: memref<4xf32, #tpu.memory_space<smem>>, %arg8: memref<1x4x16x16xf32, #tpu.memory_space<vmem>>, %arg9: memref<4x18x18xf32, #tpu.memory_space<vmem>>) attributes {dimension_semantics = [#tpu.dimension_semantics<parallel>], iteration_bounds = array<i64: 2>, scalar_prefetch = 0 : i64, scratch_operands = 1 : i64, tpu.core_type = #tpu.core_type<tc>, window_params = [{transform_indices = @transform_0, window_bounds = array<i64: 1, 4, 16, 16>}, {pipeline_mode = #tpu.pipeline_mode<synchronous>, transform_indices = @transform_1, window_bounds = array<i64: 4, 16, 16>}, {pipeline_mode = #tpu.pipeline_mode<synchronous>, transform_indices = @transform_2, window_bounds = array<i64: 4, 16, 16>}, {transform_indices = @transform_3, window_bounds = array<i64: 144>}, {transform_indices = @transform_4, window_bounds = array<i64: 4>}, {transform_indices = @transform_5, window_bounds = array<i64: 144>}, {transform_indices = @transform_6, window_bounds = array<i64: 4>}, {transform_indices = @transform_7, window_bounds = array<i64: 1, 4, 16, 16>}]} {
    %c0 = arith.constant 0 : index
    %c0_0 = arith.constant 0 : index
    %c0_1 = arith.constant 0 : index
    %c0_2 = arith.constant 0 : index
    %0 = vector.load %arg1[%c0, %c0_0, %c0_1, %c0_2] : memref<1x4x16x16xf32, #tpu.memory_space<vmem>>, vector<1x4x16x16xf32>
    %1 = vector.shape_cast %0 : vector<1x4x16x16xf32> to vector<4x16x16xf32>
    %cst = arith.constant dense<0.000000e+00> : vector<16x16xf32>
    %2 = vector.multi_reduction <add>, %1, %cst [0] : vector<4x16x16xf32> to vector<16x16xf32>
    %cst_3 = arith.constant dense<0.000000e+00> : vector<16xf32>
    %3 = vector.multi_reduction <add>, %2, %cst_3 [0] : vector<16x16xf32> to vector<16xf32>
    %4 = vector.shape_cast %3 : vector<16xf32> to vector<1x16xf32>
    %cst_4 = arith.constant dense<0.000000e+00> : vector<1xf32>
    %5 = vector.multi_reduction <add>, %4, %cst_4 [1] : vector<1x16xf32> to vector<1xf32>
    %6 = vector.shape_cast %5 : vector<1xf32> to vector<1x1xf32>
    %cst_5 = arith.constant 9.765625E-4 : f32
    %7 = vector.broadcast %cst_5 : f32 to vector<1x1xf32>
    %8 = arith.mulf %6, %7 : vector<1x1xf32>
    %9 = vector.shape_cast %8 : vector<1x1xf32> to vector<1x1x1xf32>
    %10 = vector.broadcast %9 : vector<1x1x1xf32> to vector<4x16x16xf32>
    %11 = arith.subf %1, %10 : vector<4x16x16xf32>
    %12 = arith.mulf %11, %11 : vector<4x16x16xf32>
    %cst_6 = arith.constant dense<0.000000e+00> : vector<16x16xf32>
    %13 = vector.multi_reduction <add>, %12, %cst_6 [0] : vector<4x16x16xf32> to vector<16x16xf32>
    %cst_7 = arith.constant dense<0.000000e+00> : vector<16xf32>
    %14 = vector.multi_reduction <add>, %13, %cst_7 [0] : vector<16x16xf32> to vector<16xf32>
    %15 = vector.shape_cast %14 : vector<16xf32> to vector<1x16xf32>
    %cst_8 = arith.constant dense<0.000000e+00> : vector<1xf32>
    %16 = vector.multi_reduction <add>, %15, %cst_8 [1] : vector<1x16xf32> to vector<1xf32>
    %17 = vector.shape_cast %16 : vector<1xf32> to vector<1x1xf32>
    %cst_9 = arith.constant 9.765625E-4 : f32
    %18 = vector.broadcast %cst_9 : f32 to vector<1x1xf32>
    %19 = arith.mulf %17, %18 : vector<1x1xf32>
    %cst_10 = arith.constant 9.99999974E-6 : f32
    %20 = vector.broadcast %cst_10 : f32 to vector<1x1xf32>
    %21 = arith.addf %19, %20 : vector<1x1xf32>
    %22 = math.rsqrt %21 : vector<1x1xf32>
    %23 = vector.shape_cast %22 : vector<1x1xf32> to vector<1x1x1xf32>
    %24 = vector.broadcast %23 : vector<1x1x1xf32> to vector<4x16x16xf32>
    %25 = arith.mulf %11, %24 : vector<4x16x16xf32>
    %c0_11 = arith.constant 0 : index
    %c0_12 = arith.constant 0 : index
    %c0_13 = arith.constant 0 : index
    %26 = vector.load %arg2[%c0_11, %c0_12, %c0_13] : memref<4x16x16xf32, #tpu.memory_space<vmem>>, vector<4x16x16xf32>
    %27 = arith.mulf %25, %26 : vector<4x16x16xf32>
    %c0_14 = arith.constant 0 : index
    %c0_15 = arith.constant 0 : index
    %c0_16 = arith.constant 0 : index
    %28 = vector.load %arg3[%c0_14, %c0_15, %c0_16] : memref<4x16x16xf32, #tpu.memory_space<vmem>>, vector<4x16x16xf32>
    %29 = arith.addf %27, %28 : vector<4x16x16xf32>
    %cst_17 = arith.constant 0.000000e+00 : f32
    %30 = vector.broadcast %cst_17 : f32 to vector<4x18x18xf32>
    %c0_18 = arith.constant 0 : index
    %c0_19 = arith.constant 0 : index
    %c0_20 = arith.constant 0 : index
    %31 = vector.load %arg9[%c0_18, %c0_19, %c0_20] : memref<4x18x18xf32, #tpu.memory_space<vmem>>, vector<4x18x18xf32>
    tpu.vector_store %arg9[%c0_18, %c0_19, %c0_20], %30 {strides = array<i32>} : memref<4x18x18xf32, #tpu.memory_space<vmem>>, vector<4x18x18xf32>,
    %32 = vector.extract_strided_slice %29 {offsets = [0, 0, 0], sizes = [1, 16, 16], strides = [1, 1, 1]} : vector<4x16x16xf32> to vector<1x16x16xf32>
    %33 = vector.shape_cast %32 : vector<1x16x16xf32> to vector<16x16xf32>
    %c0_21 = arith.constant 0 : index
    %c1 = arith.constant 1 : index
    %c1_22 = arith.constant 1 : index
    %34 = vector.load %arg9[%c0_21, %c1, %c1_22] : memref<4x18x18xf32, #tpu.memory_space<vmem>>, vector<1x16x16xf32>
    %35 = vector.shape_cast %34 : vector<1x16x16xf32> to vector<16x16xf32>
    %36 = vector.shape_cast %33 : vector<16x16xf32> to vector<1x16x16xf32>
    tpu.vector_store %arg9[%c0_21, %c1, %c1_22], %36 {strides = array<i32>} : memref<4x18x18xf32, #tpu.memory_space<vmem>>, vector<1x16x16xf32>,
    %37 = vector.extract_strided_slice %29 {offsets = [1, 0, 0], sizes = [1, 16, 16], strides = [1, 1, 1]} : vector<4x16x16xf32> to vector<1x16x16xf32>
    %38 = vector.shape_cast %37 : vector<1x16x16xf32> to vector<16x16xf32>
    %c1_23 = arith.constant 1 : index
    %c1_24 = arith.constant 1 : index
    %c1_25 = arith.constant 1 : index
    %39 = vector.load %arg9[%c1_23, %c1_24, %c1_25] : memref<4x18x18xf32, #tpu.memory_space<vmem>>, vector<1x16x16xf32>
    %40 = vector.shape_cast %39 : vector<1x16x16xf32> to vector<16x16xf32>
    %41 = vector.shape_cast %38 : vector<16x16xf32> to vector<1x16x16xf32>
    tpu.vector_store %arg9[%c1_23, %c1_24, %c1_25], %41 {strides = array<i32>} : memref<4x18x18xf32, #tpu.memory_space<vmem>>, vector<1x16x16xf32>,
    %42 = vector.extract_strided_slice %29 {offsets = [2, 0, 0], sizes = [1, 16, 16], strides = [1, 1, 1]} : vector<4x16x16xf32> to vector<1x16x16xf32>
    %43 = vector.shape_cast %42 : vector<1x16x16xf32> to vector<16x16xf32>
    %c2 = arith.constant 2 : index
    %c1_26 = arith.constant 1 : index
    %c1_27 = arith.constant 1 : index
    %44 = vector.load %arg9[%c2, %c1_26, %c1_27] : memref<4x18x18xf32, #tpu.memory_space<vmem>>, vector<1x16x16xf32>
    %45 = vector.shape_cast %44 : vector<1x16x16xf32> to vector<16x16xf32>
    %46 = vector.shape_cast %43 : vector<16x16xf32> to vector<1x16x16xf32>
    tpu.vector_store %arg9[%c2, %c1_26, %c1_27], %46 {strides = array<i32>} : memref<4x18x18xf32, #tpu.memory_space<vmem>>, vector<1x16x16xf32>,
    %47 = vector.extract_strided_slice %29 {offsets = [3, 0, 0], sizes = [1, 16, 16], strides = [1, 1, 1]} : vector<4x16x16xf32> to vector<1x16x16xf32>
    %48 = vector.shape_cast %47 : vector<1x16x16xf32> to vector<16x16xf32>
    %c3 = arith.constant 3 : index
    %c1_28 = arith.constant 1 : index
    %c1_29 = arith.constant 1 : index
    %49 = vector.load %arg9[%c3, %c1_28, %c1_29] : memref<4x18x18xf32, #tpu.memory_space<vmem>>, vector<1x16x16xf32>
    %50 = vector.shape_cast %49 : vector<1x16x16xf32> to vector<16x16xf32>
    %51 = vector.shape_cast %48 : vector<16x16xf32> to vector<1x16x16xf32>
    tpu.vector_store %arg9[%c3, %c1_28, %c1_29], %51 {strides = array<i32>} : memref<4x18x18xf32, #tpu.memory_space<vmem>>, vector<1x16x16xf32>,
    %c0_30 = arith.constant 0 : index
    %52 = memref.load %arg5[%c0_30] : memref<4xf32, #tpu.memory_space<smem>>
    %53 = vector.broadcast %52 : f32 to vector<16x16xf32>
    %c1_31 = arith.constant 1 : index
    %54 = memref.load %arg5[%c1_31] : memref<4xf32, #tpu.memory_space<smem>>
    %55 = vector.broadcast %54 : f32 to vector<16x16xf32>
    %c2_32 = arith.constant 2 : index
    %56 = memref.load %arg5[%c2_32] : memref<4xf32, #tpu.memory_space<smem>>
    %57 = vector.broadcast %56 : f32 to vector<16x16xf32>
    %c3_33 = arith.constant 3 : index
    %58 = memref.load %arg5[%c3_33] : memref<4xf32, #tpu.memory_space<smem>>
    %59 = vector.broadcast %58 : f32 to vector<16x16xf32>
    %c0_34 = arith.constant 0 : index
    %c0_35 = arith.constant 0 : index
    %c0_36 = arith.constant 0 : index
    %60 = vector.load %arg9[%c0_34, %c0_35, %c0_36] : memref<4x18x18xf32, #tpu.memory_space<vmem>>, vector<1x16x16xf32>
    %61 = vector.shape_cast %60 : vector<1x16x16xf32> to vector<16x16xf32>
    %c0_37 = arith.constant 0 : index
    %62 = memref.load %arg4[%c0_37] : memref<144xf32, #tpu.memory_space<smem>>
    %63 = vector.broadcast %62 : f32 to vector<16x16xf32>
    %64 = arith.mulf %63, %61 : vector<16x16xf32>
    %65 = arith.addf %53, %64 : vector<16x16xf32>
    %c36 = arith.constant 36 : index
    %66 = memref.load %arg4[%c36] : memref<144xf32, #tpu.memory_space<smem>>
    %67 = vector.broadcast %66 : f32 to vector<16x16xf32>
    %68 = arith.mulf %67, %61 : vector<16x16xf32>
    %69 = arith.addf %55, %68 : vector<16x16xf32>
    %c72 = arith.constant 72 : index
    %70 = memref.load %arg4[%c72] : memref<144xf32, #tpu.memory_space<smem>>
    %71 = vector.broadcast %70 : f32 to vector<16x16xf32>
    %72 = arith.mulf %71, %61 : vector<16x16xf32>
    %73 = arith.addf %57, %72 : vector<16x16xf32>
    %c108 = arith.constant 108 : index
    %74 = memref.load %arg4[%c108] : memref<144xf32, #tpu.memory_space<smem>>
    %75 = vector.broadcast %74 : f32 to vector<16x16xf32>
    %76 = arith.mulf %75, %61 : vector<16x16xf32>
    %77 = arith.addf %59, %76 : vector<16x16xf32>
    %c1_38 = arith.constant 1 : index
    %c0_39 = arith.constant 0 : index
    %c0_40 = arith.constant 0 : index
    %78 = vector.load %arg9[%c1_38, %c0_39, %c0_40] : memref<4x18x18xf32, #tpu.memory_space<vmem>>, vector<1x16x16xf32>
    %79 = vector.shape_cast %78 : vector<1x16x16xf32> to vector<16x16xf32>
    %c9 = arith.constant 9 : index
    %80 = memref.load %arg4[%c9] : memref<144xf32, #tpu.memory_space<smem>>
    %81 = vector.broadcast %80 : f32 to vector<16x16xf32>
    %82 = arith.mulf %81, %79 : vector<16x16xf32>
    %83 = arith.addf %65, %82 : vector<16x16xf32>
    %c45 = arith.constant 45 : index
    %84 = memref.load %arg4[%c45] : memref<144xf32, #tpu.memory_space<smem>>
    %85 = vector.broadcast %84 : f32 to vector<16x16xf32>
    %86 = arith.mulf %85, %79 : vector<16x16xf32>
    %87 = arith.addf %69, %86 : vector<16x16xf32>
    %c81 = arith.constant 81 : index
    %88 = memref.load %arg4[%c81] : memref<144xf32, #tpu.memory_space<smem>>
    %89 = vector.broadcast %88 : f32 to vector<16x16xf32>
    %90 = arith.mulf %89, %79 : vector<16x16xf32>
    %91 = arith.addf %73, %90 : vector<16x16xf32>
    %c117 = arith.constant 117 : index
    %92 = memref.load %arg4[%c117] : memref<144xf32, #tpu.memory_space<smem>>
    %93 = vector.broadcast %92 : f32 to vector<16x16xf32>
    %94 = arith.mulf %93, %79 : vector<16x16xf32>
    %95 = arith.addf %77, %94 : vector<16x16xf32>
    %c2_41 = arith.constant 2 : index
    %c0_42 = arith.constant 0 : index
    %c0_43 = arith.constant 0 : index
    %96 = vector.load %arg9[%c2_41, %c0_42, %c0_43] : memref<4x18x18xf32, #tpu.memory_space<vmem>>, vector<1x16x16xf32>
    %97 = vector.shape_cast %96 : vector<1x16x16xf32> to vector<16x16xf32>
    %c18 = arith.constant 18 : index
    %98 = memref.load %arg4[%c18] : memref<144xf32, #tpu.memory_space<smem>>
    %99 = vector.broadcast %98 : f32 to vector<16x16xf32>
    %100 = arith.mulf %99, %97 : vector<16x16xf32>
    %101 = arith.addf %83, %100 : vector<16x16xf32>
    %c54 = arith.constant 54 : index
    %102 = memref.load %arg4[%c54] : memref<144xf32, #tpu.memory_space<smem>>
    %103 = vector.broadcast %102 : f32 to vector<16x16xf32>
    %104 = arith.mulf %103, %97 : vector<16x16xf32>
    %105 = arith.addf %87, %104 : vector<16x16xf32>
    %c90 = arith.constant 90 : index
    %106 = memref.load %arg4[%c90] : memref<144xf32, #tpu.memory_space<smem>>
    %107 = vector.broadcast %106 : f32 to vector<16x16xf32>
    %108 = arith.mulf %107, %97 : vector<16x16xf32>
    %109 = arith.addf %91, %108 : vector<16x16xf32>
    %c126 = arith.constant 126 : index
    %110 = memref.load %arg4[%c126] : memref<144xf32, #tpu.memory_space<smem>>
    %111 = vector.broadcast %110 : f32 to vector<16x16xf32>
    %112 = arith.mulf %111, %97 : vector<16x16xf32>
    %113 = arith.addf %95, %112 : vector<16x16xf32>
    %c3_44 = arith.constant 3 : index
    %c0_45 = arith.constant 0 : index
    %c0_46 = arith.constant 0 : index
    %114 = vector.load %arg9[%c3_44, %c0_45, %c0_46] : memref<4x18x18xf32, #tpu.memory_space<vmem>>, vector<1x16x16xf32>
    %115 = vector.shape_cast %114 : vector<1x16x16xf32> to vector<16x16xf32>
    %c27 = arith.constant 27 : index
    %116 = memref.load %arg4[%c27] : memref<144xf32, #tpu.memory_space<smem>>
    %117 = vector.broadcast %116 : f32 to vector<16x16xf32>
    %118 = arith.mulf %117, %115 : vector<16x16xf32>
    %119 = arith.addf %101, %118 : vector<16x16xf32>
    %c63 = arith.constant 63 : index
    %120 = memref.load %arg4[%c63] : memref<144xf32, #tpu.memory_space<smem>>
    %121 = vector.broadcast %120 : f32 to vector<16x16xf32>
    %122 = arith.mulf %121, %115 : vector<16x16xf32>
    %123 = arith.addf %105, %122 : vector<16x16xf32>
    %c99 = arith.constant 99 : index
    %124 = memref.load %arg4[%c99] : memref<144xf32, #tpu.memory_space<smem>>
    %125 = vector.broadcast %124 : f32 to vector<16x16xf32>
    %126 = arith.mulf %125, %115 : vector<16x16xf32>
    %127 = arith.addf %109, %126 : vector<16x16xf32>
    %c135 = arith.constant 135 : index
    %128 = memref.load %arg4[%c135] : memref<144xf32, #tpu.memory_space<smem>>
    %129 = vector.broadcast %128 : f32 to vector<16x16xf32>
    %130 = arith.mulf %129, %115 : vector<16x16xf32>
    %131 = arith.addf %113, %130 : vector<16x16xf32>
    %c0_47 = arith.constant 0 : index
    %c0_48 = arith.constant 0 : index
    %c1_49 = arith.constant 1 : index
    %132 = vector.load %arg9[%c0_47, %c0_48, %c1_49] : memref<4x18x18xf32, #tpu.memory_space<vmem>>, vector<1x16x16xf32>
    %133 = vector.shape_cast %132 : vector<1x16x16xf32> to vector<16x16xf32>
    %c1_50 = arith.constant 1 : index
    %134 = memref.load %arg4[%c1_50] : memref<144xf32, #tpu.memory_space<smem>>
    %135 = vector.broadcast %134 : f32 to vector<16x16xf32>
    %136 = arith.mulf %135, %133 : vector<16x16xf32>
    %137 = arith.addf %119, %136 : vector<16x16xf32>
    %c37 = arith.constant 37 : index
    %138 = memref.load %arg4[%c37] : memref<144xf32, #tpu.memory_space<smem>>
    %139 = vector.broadcast %138 : f32 to vector<16x16xf32>
    %140 = arith.mulf %139, %133 : vector<16x16xf32>
    %141 = arith.addf %123, %140 : vector<16x16xf32>
    %c73 = arith.constant 73 : index
    %142 = memref.load %arg4[%c73] : memref<144xf32, #tpu.memory_space<smem>>
    %143 = vector.broadcast %142 : f32 to vector<16x16xf32>
    %144 = arith.mulf %143, %133 : vector<16x16xf32>
    %145 = arith.addf %127, %144 : vector<16x16xf32>
    %c109 = arith.constant 109 : index
    %146 = memref.load %arg4[%c109] : memref<144xf32, #tpu.memory_space<smem>>
    %147 = vector.broadcast %146 : f32 to vector<16x16xf32>
    %148 = arith.mulf %147, %133 : vector<16x16xf32>
    %149 = arith.addf %131, %148 : vector<16x16xf32>
    %c1_51 = arith.constant 1 : index
    %c0_52 = arith.constant 0 : index
    %c1_53 = arith.constant 1 : index
    %150 = vector.load %arg9[%c1_51, %c0_52, %c1_53] : memref<4x18x18xf32, #tpu.memory_space<vmem>>, vector<1x16x16xf32>
    %151 = vector.shape_cast %150 : vector<1x16x16xf32> to vector<16x16xf32>
    %c10 = arith.constant 10 : index
    %152 = memref.load %arg4[%c10] : memref<144xf32, #tpu.memory_space<smem>>
    %153 = vector.broadcast %152 : f32 to vector<16x16xf32>
    %154 = arith.mulf %153, %151 : vector<16x16xf32>
    %155 = arith.addf %137, %154 : vector<16x16xf32>
    %c46 = arith.constant 46 : index
    %156 = memref.load %arg4[%c46] : memref<144xf32, #tpu.memory_space<smem>>
    %157 = vector.broadcast %156 : f32 to vector<16x16xf32>
    %158 = arith.mulf %157, %151 : vector<16x16xf32>
    %159 = arith.addf %141, %158 : vector<16x16xf32>
    %c82 = arith.constant 82 : index
    %160 = memref.load %arg4[%c82] : memref<144xf32, #tpu.memory_space<smem>>
    %161 = vector.broadcast %160 : f32 to vector<16x16xf32>
    %162 = arith.mulf %161, %151 : vector<16x16xf32>
    %163 = arith.addf %145, %162 : vector<16x16xf32>
    %c118 = arith.constant 118 : index
    %164 = memref.load %arg4[%c118] : memref<144xf32, #tpu.memory_space<smem>>
    %165 = vector.broadcast %164 : f32 to vector<16x16xf32>
    %166 = arith.mulf %165, %151 : vector<16x16xf32>
    %167 = arith.addf %149, %166 : vector<16x16xf32>
    %c2_54 = arith.constant 2 : index
    %c0_55 = arith.constant 0 : index
    %c1_56 = arith.constant 1 : index
    %168 = vector.load %arg9[%c2_54, %c0_55, %c1_56] : memref<4x18x18xf32, #tpu.memory_space<vmem>>, vector<1x16x16xf32>
    %169 = vector.shape_cast %168 : vector<1x16x16xf32> to vector<16x16xf32>
    %c19 = arith.constant 19 : index
    %170 = memref.load %arg4[%c19] : memref<144xf32, #tpu.memory_space<smem>>
    %171 = vector.broadcast %170 : f32 to vector<16x16xf32>
    %172 = arith.mulf %171, %169 : vector<16x16xf32>
    %173 = arith.addf %155, %172 : vector<16x16xf32>
    %c55 = arith.constant 55 : index
    %174 = memref.load %arg4[%c55] : memref<144xf32, #tpu.memory_space<smem>>
    %175 = vector.broadcast %174 : f32 to vector<16x16xf32>
    %176 = arith.mulf %175, %169 : vector<16x16xf32>
    %177 = arith.addf %159, %176 : vector<16x16xf32>
    %c91 = arith.constant 91 : index
    %178 = memref.load %arg4[%c91] : memref<144xf32, #tpu.memory_space<smem>>
    %179 = vector.broadcast %178 : f32 to vector<16x16xf32>
    %180 = arith.mulf %179, %169 : vector<16x16xf32>
    %181 = arith.addf %163, %180 : vector<16x16xf32>
    %c127 = arith.constant 127 : index
    %182 = memref.load %arg4[%c127] : memref<144xf32, #tpu.memory_space<smem>>
    %183 = vector.broadcast %182 : f32 to vector<16x16xf32>
    %184 = arith.mulf %183, %169 : vector<16x16xf32>
    %185 = arith.addf %167, %184 : vector<16x16xf32>
    %c3_57 = arith.constant 3 : index
    %c0_58 = arith.constant 0 : index
    %c1_59 = arith.constant 1 : index
    %186 = vector.load %arg9[%c3_57, %c0_58, %c1_59] : memref<4x18x18xf32, #tpu.memory_space<vmem>>, vector<1x16x16xf32>
    %187 = vector.shape_cast %186 : vector<1x16x16xf32> to vector<16x16xf32>
    %c28 = arith.constant 28 : index
    %188 = memref.load %arg4[%c28] : memref<144xf32, #tpu.memory_space<smem>>
    %189 = vector.broadcast %188 : f32 to vector<16x16xf32>
    %190 = arith.mulf %189, %187 : vector<16x16xf32>
    %191 = arith.addf %173, %190 : vector<16x16xf32>
    %c64 = arith.constant 64 : index
    %192 = memref.load %arg4[%c64] : memref<144xf32, #tpu.memory_space<smem>>
    %193 = vector.broadcast %192 : f32 to vector<16x16xf32>
    %194 = arith.mulf %193, %187 : vector<16x16xf32>
    %195 = arith.addf %177, %194 : vector<16x16xf32>
    %c100 = arith.constant 100 : index
    %196 = memref.load %arg4[%c100] : memref<144xf32, #tpu.memory_space<smem>>
    %197 = vector.broadcast %196 : f32 to vector<16x16xf32>
    %198 = arith.mulf %197, %187 : vector<16x16xf32>
    %199 = arith.addf %181, %198 : vector<16x16xf32>
    %c136 = arith.constant 136 : index
    %200 = memref.load %arg4[%c136] : memref<144xf32, #tpu.memory_space<smem>>
    %201 = vector.broadcast %200 : f32 to vector<16x16xf32>
    %202 = arith.mulf %201, %187 : vector<16x16xf32>
    %203 = arith.addf %185, %202 : vector<16x16xf32>
    %c0_60 = arith.constant 0 : index
    %c0_61 = arith.constant 0 : index
    %c2_62 = arith.constant 2 : index
    %204 = vector.load %arg9[%c0_60, %c0_61, %c2_62] : memref<4x18x18xf32, #tpu.memory_space<vmem>>, vector<1x16x16xf32>
    %205 = vector.shape_cast %204 : vector<1x16x16xf32> to vector<16x16xf32>
    %c2_63 = arith.constant 2 : index
    %206 = memref.load %arg4[%c2_63] : memref<144xf32, #tpu.memory_space<smem>>
    %207 = vector.broadcast %206 : f32 to vector<16x16xf32>
    %208 = arith.mulf %207, %205 : vector<16x16xf32>
    %209 = arith.addf %191, %208 : vector<16x16xf32>
    %c38 = arith.constant 38 : index
    %210 = memref.load %arg4[%c38] : memref<144xf32, #tpu.memory_space<smem>>
    %211 = vector.broadcast %210 : f32 to vector<16x16xf32>
    %212 = arith.mulf %211, %205 : vector<16x16xf32>
    %213 = arith.addf %195, %212 : vector<16x16xf32>
    %c74 = arith.constant 74 : index
    %214 = memref.load %arg4[%c74] : memref<144xf32, #tpu.memory_space<smem>>
    %215 = vector.broadcast %214 : f32 to vector<16x16xf32>
    %216 = arith.mulf %215, %205 : vector<16x16xf32>
    %217 = arith.addf %199, %216 : vector<16x16xf32>
    %c110 = arith.constant 110 : index
    %218 = memref.load %arg4[%c110] : memref<144xf32, #tpu.memory_space<smem>>
    %219 = vector.broadcast %218 : f32 to vector<16x16xf32>
    %220 = arith.mulf %219, %205 : vector<16x16xf32>
    %221 = arith.addf %203, %220 : vector<16x16xf32>
    %c1_64 = arith.constant 1 : index
    %c0_65 = arith.constant 0 : index
    %c2_66 = arith.constant 2 : index
    %222 = vector.load %arg9[%c1_64, %c0_65, %c2_66] : memref<4x18x18xf32, #tpu.memory_space<vmem>>, vector<1x16x16xf32>
    %223 = vector.shape_cast %222 : vector<1x16x16xf32> to vector<16x16xf32>
    %c11 = arith.constant 11 : index
    %224 = memref.load %arg4[%c11] : memref<144xf32, #tpu.memory_space<smem>>
    %225 = vector.broadcast %224 : f32 to vector<16x16xf32>
    %226 = arith.mulf %225, %223 : vector<16x16xf32>
    %227 = arith.addf %209, %226 : vector<16x16xf32>
    %c47 = arith.constant 47 : index
    %228 = memref.load %arg4[%c47] : memref<144xf32, #tpu.memory_space<smem>>
    %229 = vector.broadcast %228 : f32 to vector<16x16xf32>
    %230 = arith.mulf %229, %223 : vector<16x16xf32>
    %231 = arith.addf %213, %230 : vector<16x16xf32>
    %c83 = arith.constant 83 : index
    %232 = memref.load %arg4[%c83] : memref<144xf32, #tpu.memory_space<smem>>
    %233 = vector.broadcast %232 : f32 to vector<16x16xf32>
    %234 = arith.mulf %233, %223 : vector<16x16xf32>
    %235 = arith.addf %217, %234 : vector<16x16xf32>
    %c119 = arith.constant 119 : index
    %236 = memref.load %arg4[%c119] : memref<144xf32, #tpu.memory_space<smem>>
    %237 = vector.broadcast %236 : f32 to vector<16x16xf32>
    %238 = arith.mulf %237, %223 : vector<16x16xf32>
    %239 = arith.addf %221, %238 : vector<16x16xf32>
    %c2_67 = arith.constant 2 : index
    %c0_68 = arith.constant 0 : index
    %c2_69 = arith.constant 2 : index
    %240 = vector.load %arg9[%c2_67, %c0_68, %c2_69] : memref<4x18x18xf32, #tpu.memory_space<vmem>>, vector<1x16x16xf32>
    %241 = vector.shape_cast %240 : vector<1x16x16xf32> to vector<16x16xf32>
    %c20 = arith.constant 20 : index
    %242 = memref.load %arg4[%c20] : memref<144xf32, #tpu.memory_space<smem>>
    %243 = vector.broadcast %242 : f32 to vector<16x16xf32>
    %244 = arith.mulf %243, %241 : vector<16x16xf32>
    %245 = arith.addf %227, %244 : vector<16x16xf32>
    %c56 = arith.constant 56 : index
    %246 = memref.load %arg4[%c56] : memref<144xf32, #tpu.memory_space<smem>>
    %247 = vector.broadcast %246 : f32 to vector<16x16xf32>
    %248 = arith.mulf %247, %241 : vector<16x16xf32>
    %249 = arith.addf %231, %248 : vector<16x16xf32>
    %c92 = arith.constant 92 : index
    %250 = memref.load %arg4[%c92] : memref<144xf32, #tpu.memory_space<smem>>
    %251 = vector.broadcast %250 : f32 to vector<16x16xf32>
    %252 = arith.mulf %251, %241 : vector<16x16xf32>
    %253 = arith.addf %235, %252 : vector<16x16xf32>
    %c128 = arith.constant 128 : index
    %254 = memref.load %arg4[%c128] : memref<144xf32, #tpu.memory_space<smem>>
    %255 = vector.broadcast %254 : f32 to vector<16x16xf32>
    %256 = arith.mulf %255, %241 : vector<16x16xf32>
    %257 = arith.addf %239, %256 : vector<16x16xf32>
    %c3_70 = arith.constant 3 : index
    %c0_71 = arith.constant 0 : index
    %c2_72 = arith.constant 2 : index
    %258 = vector.load %arg9[%c3_70, %c0_71, %c2_72] : memref<4x18x18xf32, #tpu.memory_space<vmem>>, vector<1x16x16xf32>
    %259 = vector.shape_cast %258 : vector<1x16x16xf32> to vector<16x16xf32>
    %c29 = arith.constant 29 : index
    %260 = memref.load %arg4[%c29] : memref<144xf32, #tpu.memory_space<smem>>
    %261 = vector.broadcast %260 : f32 to vector<16x16xf32>
    %262 = arith.mulf %261, %259 : vector<16x16xf32>
    %263 = arith.addf %245, %262 : vector<16x16xf32>
    %c65 = arith.constant 65 : index
    %264 = memref.load %arg4[%c65] : memref<144xf32, #tpu.memory_space<smem>>
    %265 = vector.broadcast %264 : f32 to vector<16x16xf32>
    %266 = arith.mulf %265, %259 : vector<16x16xf32>
    %267 = arith.addf %249, %266 : vector<16x16xf32>
    %c101 = arith.constant 101 : index
    %268 = memref.load %arg4[%c101] : memref<144xf32, #tpu.memory_space<smem>>
    %269 = vector.broadcast %268 : f32 to vector<16x16xf32>
    %270 = arith.mulf %269, %259 : vector<16x16xf32>
    %271 = arith.addf %253, %270 : vector<16x16xf32>
    %c137 = arith.constant 137 : index
    %272 = memref.load %arg4[%c137] : memref<144xf32, #tpu.memory_space<smem>>
    %273 = vector.broadcast %272 : f32 to vector<16x16xf32>
    %274 = arith.mulf %273, %259 : vector<16x16xf32>
    %275 = arith.addf %257, %274 : vector<16x16xf32>
    %c0_73 = arith.constant 0 : index
    %c1_74 = arith.constant 1 : index
    %c0_75 = arith.constant 0 : index
    %276 = vector.load %arg9[%c0_73, %c1_74, %c0_75] : memref<4x18x18xf32, #tpu.memory_space<vmem>>, vector<1x16x16xf32>
    %277 = vector.shape_cast %276 : vector<1x16x16xf32> to vector<16x16xf32>
    %c3_76 = arith.constant 3 : index
    %278 = memref.load %arg4[%c3_76] : memref<144xf32, #tpu.memory_space<smem>>
    %279 = vector.broadcast %278 : f32 to vector<16x16xf32>
    %280 = arith.mulf %279, %277 : vector<16x16xf32>
    %281 = arith.addf %263, %280 : vector<16x16xf32>
    %c39 = arith.constant 39 : index
    %282 = memref.load %arg4[%c39] : memref<144xf32, #tpu.memory_space<smem>>
    %283 = vector.broadcast %282 : f32 to vector<16x16xf32>
    %284 = arith.mulf %283, %277 : vector<16x16xf32>
    %285 = arith.addf %267, %284 : vector<16x16xf32>
    %c75 = arith.constant 75 : index
    %286 = memref.load %arg4[%c75] : memref<144xf32, #tpu.memory_space<smem>>
    %287 = vector.broadcast %286 : f32 to vector<16x16xf32>
    %288 = arith.mulf %287, %277 : vector<16x16xf32>
    %289 = arith.addf %271, %288 : vector<16x16xf32>
    %c111 = arith.constant 111 : index
    %290 = memref.load %arg4[%c111] : memref<144xf32, #tpu.memory_space<smem>>
    %291 = vector.broadcast %290 : f32 to vector<16x16xf32>
    %292 = arith.mulf %291, %277 : vector<16x16xf32>
    %293 = arith.addf %275, %292 : vector<16x16xf32>
    %c1_77 = arith.constant 1 : index
    %c1_78 = arith.constant 1 : index
    %c0_79 = arith.constant 0 : index
    %294 = vector.load %arg9[%c1_77, %c1_78, %c0_79] : memref<4x18x18xf32, #tpu.memory_space<vmem>>, vector<1x16x16xf32>
    %295 = vector.shape_cast %294 : vector<1x16x16xf32> to vector<16x16xf32>
    %c12 = arith.constant 12 : index
    %296 = memref.load %arg4[%c12] : memref<144xf32, #tpu.memory_space<smem>>
    %297 = vector.broadcast %296 : f32 to vector<16x16xf32>
    %298 = arith.mulf %297, %295 : vector<16x16xf32>
    %299 = arith.addf %281, %298 : vector<16x16xf32>
    %c48 = arith.constant 48 : index
    %300 = memref.load %arg4[%c48] : memref<144xf32, #tpu.memory_space<smem>>
    %301 = vector.broadcast %300 : f32 to vector<16x16xf32>
    %302 = arith.mulf %301, %295 : vector<16x16xf32>
    %303 = arith.addf %285, %302 : vector<16x16xf32>
    %c84 = arith.constant 84 : index
    %304 = memref.load %arg4[%c84] : memref<144xf32, #tpu.memory_space<smem>>
    %305 = vector.broadcast %304 : f32 to vector<16x16xf32>
    %306 = arith.mulf %305, %295 : vector<16x16xf32>
    %307 = arith.addf %289, %306 : vector<16x16xf32>
    %c120 = arith.constant 120 : index
    %308 = memref.load %arg4[%c120] : memref<144xf32, #tpu.memory_space<smem>>
    %309 = vector.broadcast %308 : f32 to vector<16x16xf32>
    %310 = arith.mulf %309, %295 : vector<16x16xf32>
    %311 = arith.addf %293, %310 : vector<16x16xf32>
    %c2_80 = arith.constant 2 : index
    %c1_81 = arith.constant 1 : index
    %c0_82 = arith.constant 0 : index
    %312 = vector.load %arg9[%c2_80, %c1_81, %c0_82] : memref<4x18x18xf32, #tpu.memory_space<vmem>>, vector<1x16x16xf32>
    %313 = vector.shape_cast %312 : vector<1x16x16xf32> to vector<16x16xf32>
    %c21 = arith.constant 21 : index
    %314 = memref.load %arg4[%c21] : memref<144xf32, #tpu.memory_space<smem>>
    %315 = vector.broadcast %314 : f32 to vector<16x16xf32>
    %316 = arith.mulf %315, %313 : vector<16x16xf32>
    %317 = arith.addf %299, %316 : vector<16x16xf32>
    %c57 = arith.constant 57 : index
    %318 = memref.load %arg4[%c57] : memref<144xf32, #tpu.memory_space<smem>>
    %319 = vector.broadcast %318 : f32 to vector<16x16xf32>
    %320 = arith.mulf %319, %313 : vector<16x16xf32>
    %321 = arith.addf %303, %320 : vector<16x16xf32>
    %c93 = arith.constant 93 : index
    %322 = memref.load %arg4[%c93] : memref<144xf32, #tpu.memory_space<smem>>
    %323 = vector.broadcast %322 : f32 to vector<16x16xf32>
    %324 = arith.mulf %323, %313 : vector<16x16xf32>
    %325 = arith.addf %307, %324 : vector<16x16xf32>
    %c129 = arith.constant 129 : index
    %326 = memref.load %arg4[%c129] : memref<144xf32, #tpu.memory_space<smem>>
    %327 = vector.broadcast %326 : f32 to vector<16x16xf32>
    %328 = arith.mulf %327, %313 : vector<16x16xf32>
    %329 = arith.addf %311, %328 : vector<16x16xf32>
    %c3_83 = arith.constant 3 : index
    %c1_84 = arith.constant 1 : index
    %c0_85 = arith.constant 0 : index
    %330 = vector.load %arg9[%c3_83, %c1_84, %c0_85] : memref<4x18x18xf32, #tpu.memory_space<vmem>>, vector<1x16x16xf32>
    %331 = vector.shape_cast %330 : vector<1x16x16xf32> to vector<16x16xf32>
    %c30 = arith.constant 30 : index
    %332 = memref.load %arg4[%c30] : memref<144xf32, #tpu.memory_space<smem>>
    %333 = vector.broadcast %332 : f32 to vector<16x16xf32>
    %334 = arith.mulf %333, %331 : vector<16x16xf32>
    %335 = arith.addf %317, %334 : vector<16x16xf32>
    %c66 = arith.constant 66 : index
    %336 = memref.load %arg4[%c66] : memref<144xf32, #tpu.memory_space<smem>>
    %337 = vector.broadcast %336 : f32 to vector<16x16xf32>
    %338 = arith.mulf %337, %331 : vector<16x16xf32>
    %339 = arith.addf %321, %338 : vector<16x16xf32>
    %c102 = arith.constant 102 : index
    %340 = memref.load %arg4[%c102] : memref<144xf32, #tpu.memory_space<smem>>
    %341 = vector.broadcast %340 : f32 to vector<16x16xf32>
    %342 = arith.mulf %341, %331 : vector<16x16xf32>
    %343 = arith.addf %325, %342 : vector<16x16xf32>
    %c138 = arith.constant 138 : index
    %344 = memref.load %arg4[%c138] : memref<144xf32, #tpu.memory_space<smem>>
    %345 = vector.broadcast %344 : f32 to vector<16x16xf32>
    %346 = arith.mulf %345, %331 : vector<16x16xf32>
    %347 = arith.addf %329, %346 : vector<16x16xf32>
    %c0_86 = arith.constant 0 : index
    %c1_87 = arith.constant 1 : index
    %c1_88 = arith.constant 1 : index
    %348 = vector.load %arg9[%c0_86, %c1_87, %c1_88] : memref<4x18x18xf32, #tpu.memory_space<vmem>>, vector<1x16x16xf32>
    %349 = vector.shape_cast %348 : vector<1x16x16xf32> to vector<16x16xf32>
    %c4 = arith.constant 4 : index
    %350 = memref.load %arg4[%c4] : memref<144xf32, #tpu.memory_space<smem>>
    %351 = vector.broadcast %350 : f32 to vector<16x16xf32>
    %352 = arith.mulf %351, %349 : vector<16x16xf32>
    %353 = arith.addf %335, %352 : vector<16x16xf32>
    %c40 = arith.constant 40 : index
    %354 = memref.load %arg4[%c40] : memref<144xf32, #tpu.memory_space<smem>>
    %355 = vector.broadcast %354 : f32 to vector<16x16xf32>
    %356 = arith.mulf %355, %349 : vector<16x16xf32>
    %357 = arith.addf %339, %356 : vector<16x16xf32>
    %c76 = arith.constant 76 : index
    %358 = memref.load %arg4[%c76] : memref<144xf32, #tpu.memory_space<smem>>
    %359 = vector.broadcast %358 : f32 to vector<16x16xf32>
    %360 = arith.mulf %359, %349 : vector<16x16xf32>
    %361 = arith.addf %343, %360 : vector<16x16xf32>
    %c112 = arith.constant 112 : index
    %362 = memref.load %arg4[%c112] : memref<144xf32, #tpu.memory_space<smem>>
    %363 = vector.broadcast %362 : f32 to vector<16x16xf32>
    %364 = arith.mulf %363, %349 : vector<16x16xf32>
    %365 = arith.addf %347, %364 : vector<16x16xf32>
    %c1_89 = arith.constant 1 : index
    %c1_90 = arith.constant 1 : index
    %c1_91 = arith.constant 1 : index
    %366 = vector.load %arg9[%c1_89, %c1_90, %c1_91] : memref<4x18x18xf32, #tpu.memory_space<vmem>>, vector<1x16x16xf32>
    %367 = vector.shape_cast %366 : vector<1x16x16xf32> to vector<16x16xf32>
    %c13 = arith.constant 13 : index
    %368 = memref.load %arg4[%c13] : memref<144xf32, #tpu.memory_space<smem>>
    %369 = vector.broadcast %368 : f32 to vector<16x16xf32>
    %370 = arith.mulf %369, %367 : vector<16x16xf32>
    %371 = arith.addf %353, %370 : vector<16x16xf32>
    %c49 = arith.constant 49 : index
    %372 = memref.load %arg4[%c49] : memref<144xf32, #tpu.memory_space<smem>>
    %373 = vector.broadcast %372 : f32 to vector<16x16xf32>
    %374 = arith.mulf %373, %367 : vector<16x16xf32>
    %375 = arith.addf %357, %374 : vector<16x16xf32>
    %c85 = arith.constant 85 : index
    %376 = memref.load %arg4[%c85] : memref<144xf32, #tpu.memory_space<smem>>
    %377 = vector.broadcast %376 : f32 to vector<16x16xf32>
    %378 = arith.mulf %377, %367 : vector<16x16xf32>
    %379 = arith.addf %361, %378 : vector<16x16xf32>
    %c121 = arith.constant 121 : index
    %380 = memref.load %arg4[%c121] : memref<144xf32, #tpu.memory_space<smem>>
    %381 = vector.broadcast %380 : f32 to vector<16x16xf32>
    %382 = arith.mulf %381, %367 : vector<16x16xf32>
    %383 = arith.addf %365, %382 : vector<16x16xf32>
    %c2_92 = arith.constant 2 : index
    %c1_93 = arith.constant 1 : index
    %c1_94 = arith.constant 1 : index
    %384 = vector.load %arg9[%c2_92, %c1_93, %c1_94] : memref<4x18x18xf32, #tpu.memory_space<vmem>>, vector<1x16x16xf32>
    %385 = vector.shape_cast %384 : vector<1x16x16xf32> to vector<16x16xf32>
    %c22 = arith.constant 22 : index
    %386 = memref.load %arg4[%c22] : memref<144xf32, #tpu.memory_space<smem>>
    %387 = vector.broadcast %386 : f32 to vector<16x16xf32>
    %388 = arith.mulf %387, %385 : vector<16x16xf32>
    %389 = arith.addf %371, %388 : vector<16x16xf32>
    %c58 = arith.constant 58 : index
    %390 = memref.load %arg4[%c58] : memref<144xf32, #tpu.memory_space<smem>>
    %391 = vector.broadcast %390 : f32 to vector<16x16xf32>
    %392 = arith.mulf %391, %385 : vector<16x16xf32>
    %393 = arith.addf %375, %392 : vector<16x16xf32>
    %c94 = arith.constant 94 : index
    %394 = memref.load %arg4[%c94] : memref<144xf32, #tpu.memory_space<smem>>
    %395 = vector.broadcast %394 : f32 to vector<16x16xf32>
    %396 = arith.mulf %395, %385 : vector<16x16xf32>
    %397 = arith.addf %379, %396 : vector<16x16xf32>
    %c130 = arith.constant 130 : index
    %398 = memref.load %arg4[%c130] : memref<144xf32, #tpu.memory_space<smem>>
    %399 = vector.broadcast %398 : f32 to vector<16x16xf32>
    %400 = arith.mulf %399, %385 : vector<16x16xf32>
    %401 = arith.addf %383, %400 : vector<16x16xf32>
    %c3_95 = arith.constant 3 : index
    %c1_96 = arith.constant 1 : index
    %c1_97 = arith.constant 1 : index
    %402 = vector.load %arg9[%c3_95, %c1_96, %c1_97] : memref<4x18x18xf32, #tpu.memory_space<vmem>>, vector<1x16x16xf32>
    %403 = vector.shape_cast %402 : vector<1x16x16xf32> to vector<16x16xf32>
    %c31 = arith.constant 31 : index
    %404 = memref.load %arg4[%c31] : memref<144xf32, #tpu.memory_space<smem>>
    %405 = vector.broadcast %404 : f32 to vector<16x16xf32>
    %406 = arith.mulf %405, %403 : vector<16x16xf32>
    %407 = arith.addf %389, %406 : vector<16x16xf32>
    %c67 = arith.constant 67 : index
    %408 = memref.load %arg4[%c67] : memref<144xf32, #tpu.memory_space<smem>>
    %409 = vector.broadcast %408 : f32 to vector<16x16xf32>
    %410 = arith.mulf %409, %403 : vector<16x16xf32>
    %411 = arith.addf %393, %410 : vector<16x16xf32>
    %c103 = arith.constant 103 : index
    %412 = memref.load %arg4[%c103] : memref<144xf32, #tpu.memory_space<smem>>
    %413 = vector.broadcast %412 : f32 to vector<16x16xf32>
    %414 = arith.mulf %413, %403 : vector<16x16xf32>
    %415 = arith.addf %397, %414 : vector<16x16xf32>
    %c139 = arith.constant 139 : index
    %416 = memref.load %arg4[%c139] : memref<144xf32, #tpu.memory_space<smem>>
    %417 = vector.broadcast %416 : f32 to vector<16x16xf32>
    %418 = arith.mulf %417, %403 : vector<16x16xf32>
    %419 = arith.addf %401, %418 : vector<16x16xf32>
    %c0_98 = arith.constant 0 : index
    %c1_99 = arith.constant 1 : index
    %c2_100 = arith.constant 2 : index
    %420 = vector.load %arg9[%c0_98, %c1_99, %c2_100] : memref<4x18x18xf32, #tpu.memory_space<vmem>>, vector<1x16x16xf32>
    %421 = vector.shape_cast %420 : vector<1x16x16xf32> to vector<16x16xf32>
    %c5 = arith.constant 5 : index
    %422 = memref.load %arg4[%c5] : memref<144xf32, #tpu.memory_space<smem>>
    %423 = vector.broadcast %422 : f32 to vector<16x16xf32>
    %424 = arith.mulf %423, %421 : vector<16x16xf32>
    %425 = arith.addf %407, %424 : vector<16x16xf32>
    %c41 = arith.constant 41 : index
    %426 = memref.load %arg4[%c41] : memref<144xf32, #tpu.memory_space<smem>>
    %427 = vector.broadcast %426 : f32 to vector<16x16xf32>
    %428 = arith.mulf %427, %421 : vector<16x16xf32>
    %429 = arith.addf %411, %428 : vector<16x16xf32>
    %c77 = arith.constant 77 : index
    %430 = memref.load %arg4[%c77] : memref<144xf32, #tpu.memory_space<smem>>
    %431 = vector.broadcast %430 : f32 to vector<16x16xf32>
    %432 = arith.mulf %431, %421 : vector<16x16xf32>
    %433 = arith.addf %415, %432 : vector<16x16xf32>
    %c113 = arith.constant 113 : index
    %434 = memref.load %arg4[%c113] : memref<144xf32, #tpu.memory_space<smem>>
    %435 = vector.broadcast %434 : f32 to vector<16x16xf32>
    %436 = arith.mulf %435, %421 : vector<16x16xf32>
    %437 = arith.addf %419, %436 : vector<16x16xf32>
    %c1_101 = arith.constant 1 : index
    %c1_102 = arith.constant 1 : index
    %c2_103 = arith.constant 2 : index
    %438 = vector.load %arg9[%c1_101, %c1_102, %c2_103] : memref<4x18x18xf32, #tpu.memory_space<vmem>>, vector<1x16x16xf32>
    %439 = vector.shape_cast %438 : vector<1x16x16xf32> to vector<16x16xf32>
    %c14 = arith.constant 14 : index
    %440 = memref.load %arg4[%c14] : memref<144xf32, #tpu.memory_space<smem>>
    %441 = vector.broadcast %440 : f32 to vector<16x16xf32>
    %442 = arith.mulf %441, %439 : vector<16x16xf32>
    %443 = arith.addf %425, %442 : vector<16x16xf32>
    %c50 = arith.constant 50 : index
    %444 = memref.load %arg4[%c50] : memref<144xf32, #tpu.memory_space<smem>>
    %445 = vector.broadcast %444 : f32 to vector<16x16xf32>
    %446 = arith.mulf %445, %439 : vector<16x16xf32>
    %447 = arith.addf %429, %446 : vector<16x16xf32>
    %c86 = arith.constant 86 : index
    %448 = memref.load %arg4[%c86] : memref<144xf32, #tpu.memory_space<smem>>
    %449 = vector.broadcast %448 : f32 to vector<16x16xf32>
    %450 = arith.mulf %449, %439 : vector<16x16xf32>
    %451 = arith.addf %433, %450 : vector<16x16xf32>
    %c122 = arith.constant 122 : index
    %452 = memref.load %arg4[%c122] : memref<144xf32, #tpu.memory_space<smem>>
    %453 = vector.broadcast %452 : f32 to vector<16x16xf32>
    %454 = arith.mulf %453, %439 : vector<16x16xf32>
    %455 = arith.addf %437, %454 : vector<16x16xf32>
    %c2_104 = arith.constant 2 : index
    %c1_105 = arith.constant 1 : index
    %c2_106 = arith.constant 2 : index
    %456 = vector.load %arg9[%c2_104, %c1_105, %c2_106] : memref<4x18x18xf32, #tpu.memory_space<vmem>>, vector<1x16x16xf32>
    %457 = vector.shape_cast %456 : vector<1x16x16xf32> to vector<16x16xf32>
    %c23 = arith.constant 23 : index
    %458 = memref.load %arg4[%c23] : memref<144xf32, #tpu.memory_space<smem>>
    %459 = vector.broadcast %458 : f32 to vector<16x16xf32>
    %460 = arith.mulf %459, %457 : vector<16x16xf32>
    %461 = arith.addf %443, %460 : vector<16x16xf32>
    %c59 = arith.constant 59 : index
    %462 = memref.load %arg4[%c59] : memref<144xf32, #tpu.memory_space<smem>>
    %463 = vector.broadcast %462 : f32 to vector<16x16xf32>
    %464 = arith.mulf %463, %457 : vector<16x16xf32>
    %465 = arith.addf %447, %464 : vector<16x16xf32>
    %c95 = arith.constant 95 : index
    %466 = memref.load %arg4[%c95] : memref<144xf32, #tpu.memory_space<smem>>
    %467 = vector.broadcast %466 : f32 to vector<16x16xf32>
    %468 = arith.mulf %467, %457 : vector<16x16xf32>
    %469 = arith.addf %451, %468 : vector<16x16xf32>
    %c131 = arith.constant 131 : index
    %470 = memref.load %arg4[%c131] : memref<144xf32, #tpu.memory_space<smem>>
    %471 = vector.broadcast %470 : f32 to vector<16x16xf32>
    %472 = arith.mulf %471, %457 : vector<16x16xf32>
    %473 = arith.addf %455, %472 : vector<16x16xf32>
    %c3_107 = arith.constant 3 : index
    %c1_108 = arith.constant 1 : index
    %c2_109 = arith.constant 2 : index
    %474 = vector.load %arg9[%c3_107, %c1_108, %c2_109] : memref<4x18x18xf32, #tpu.memory_space<vmem>>, vector<1x16x16xf32>
    %475 = vector.shape_cast %474 : vector<1x16x16xf32> to vector<16x16xf32>
    %c32 = arith.constant 32 : index
    %476 = memref.load %arg4[%c32] : memref<144xf32, #tpu.memory_space<smem>>
    %477 = vector.broadcast %476 : f32 to vector<16x16xf32>
    %478 = arith.mulf %477, %475 : vector<16x16xf32>
    %479 = arith.addf %461, %478 : vector<16x16xf32>
    %c68 = arith.constant 68 : index
    %480 = memref.load %arg4[%c68] : memref<144xf32, #tpu.memory_space<smem>>
    %481 = vector.broadcast %480 : f32 to vector<16x16xf32>
    %482 = arith.mulf %481, %475 : vector<16x16xf32>
    %483 = arith.addf %465, %482 : vector<16x16xf32>
    %c104 = arith.constant 104 : index
    %484 = memref.load %arg4[%c104] : memref<144xf32, #tpu.memory_space<smem>>
    %485 = vector.broadcast %484 : f32 to vector<16x16xf32>
    %486 = arith.mulf %485, %475 : vector<16x16xf32>
    %487 = arith.addf %469, %486 : vector<16x16xf32>
    %c140 = arith.constant 140 : index
    %488 = memref.load %arg4[%c140] : memref<144xf32, #tpu.memory_space<smem>>
    %489 = vector.broadcast %488 : f32 to vector<16x16xf32>
    %490 = arith.mulf %489, %475 : vector<16x16xf32>
    %491 = arith.addf %473, %490 : vector<16x16xf32>
    %c0_110 = arith.constant 0 : index
    %c2_111 = arith.constant 2 : index
    %c0_112 = arith.constant 0 : index
    %492 = vector.load %arg9[%c0_110, %c2_111, %c0_112] : memref<4x18x18xf32, #tpu.memory_space<vmem>>, vector<1x16x16xf32>
    %493 = vector.shape_cast %492 : vector<1x16x16xf32> to vector<16x16xf32>
    %c6 = arith.constant 6 : index
    %494 = memref.load %arg4[%c6] : memref<144xf32, #tpu.memory_space<smem>>
    %495 = vector.broadcast %494 : f32 to vector<16x16xf32>
    %496 = arith.mulf %495, %493 : vector<16x16xf32>
    %497 = arith.addf %479, %496 : vector<16x16xf32>
    %c42 = arith.constant 42 : index
    %498 = memref.load %arg4[%c42] : memref<144xf32, #tpu.memory_space<smem>>
    %499 = vector.broadcast %498 : f32 to vector<16x16xf32>
    %500 = arith.mulf %499, %493 : vector<16x16xf32>
    %501 = arith.addf %483, %500 : vector<16x16xf32>
    %c78 = arith.constant 78 : index
    %502 = memref.load %arg4[%c78] : memref<144xf32, #tpu.memory_space<smem>>
    %503 = vector.broadcast %502 : f32 to vector<16x16xf32>
    %504 = arith.mulf %503, %493 : vector<16x16xf32>
    %505 = arith.addf %487, %504 : vector<16x16xf32>
    %c114 = arith.constant 114 : index
    %506 = memref.load %arg4[%c114] : memref<144xf32, #tpu.memory_space<smem>>
    %507 = vector.broadcast %506 : f32 to vector<16x16xf32>
    %508 = arith.mulf %507, %493 : vector<16x16xf32>
    %509 = arith.addf %491, %508 : vector<16x16xf32>
    %c1_113 = arith.constant 1 : index
    %c2_114 = arith.constant 2 : index
    %c0_115 = arith.constant 0 : index
    %510 = vector.load %arg9[%c1_113, %c2_114, %c0_115] : memref<4x18x18xf32, #tpu.memory_space<vmem>>, vector<1x16x16xf32>
    %511 = vector.shape_cast %510 : vector<1x16x16xf32> to vector<16x16xf32>
    %c15 = arith.constant 15 : index
    %512 = memref.load %arg4[%c15] : memref<144xf32, #tpu.memory_space<smem>>
    %513 = vector.broadcast %512 : f32 to vector<16x16xf32>
    %514 = arith.mulf %513, %511 : vector<16x16xf32>
    %515 = arith.addf %497, %514 : vector<16x16xf32>
    %c51 = arith.constant 51 : index
    %516 = memref.load %arg4[%c51] : memref<144xf32, #tpu.memory_space<smem>>
    %517 = vector.broadcast %516 : f32 to vector<16x16xf32>
    %518 = arith.mulf %517, %511 : vector<16x16xf32>
    %519 = arith.addf %501, %518 : vector<16x16xf32>
    %c87 = arith.constant 87 : index
    %520 = memref.load %arg4[%c87] : memref<144xf32, #tpu.memory_space<smem>>
    %521 = vector.broadcast %520 : f32 to vector<16x16xf32>
    %522 = arith.mulf %521, %511 : vector<16x16xf32>
    %523 = arith.addf %505, %522 : vector<16x16xf32>
    %c123 = arith.constant 123 : index
    %524 = memref.load %arg4[%c123] : memref<144xf32, #tpu.memory_space<smem>>
    %525 = vector.broadcast %524 : f32 to vector<16x16xf32>
    %526 = arith.mulf %525, %511 : vector<16x16xf32>
    %527 = arith.addf %509, %526 : vector<16x16xf32>
    %c2_116 = arith.constant 2 : index
    %c2_117 = arith.constant 2 : index
    %c0_118 = arith.constant 0 : index
    %528 = vector.load %arg9[%c2_116, %c2_117, %c0_118] : memref<4x18x18xf32, #tpu.memory_space<vmem>>, vector<1x16x16xf32>
    %529 = vector.shape_cast %528 : vector<1x16x16xf32> to vector<16x16xf32>
    %c24 = arith.constant 24 : index
    %530 = memref.load %arg4[%c24] : memref<144xf32, #tpu.memory_space<smem>>
    %531 = vector.broadcast %530 : f32 to vector<16x16xf32>
    %532 = arith.mulf %531, %529 : vector<16x16xf32>
    %533 = arith.addf %515, %532 : vector<16x16xf32>
    %c60 = arith.constant 60 : index
    %534 = memref.load %arg4[%c60] : memref<144xf32, #tpu.memory_space<smem>>
    %535 = vector.broadcast %534 : f32 to vector<16x16xf32>
    %536 = arith.mulf %535, %529 : vector<16x16xf32>
    %537 = arith.addf %519, %536 : vector<16x16xf32>
    %c96 = arith.constant 96 : index
    %538 = memref.load %arg4[%c96] : memref<144xf32, #tpu.memory_space<smem>>
    %539 = vector.broadcast %538 : f32 to vector<16x16xf32>
    %540 = arith.mulf %539, %529 : vector<16x16xf32>
    %541 = arith.addf %523, %540 : vector<16x16xf32>
    %c132 = arith.constant 132 : index
    %542 = memref.load %arg4[%c132] : memref<144xf32, #tpu.memory_space<smem>>
    %543 = vector.broadcast %542 : f32 to vector<16x16xf32>
    %544 = arith.mulf %543, %529 : vector<16x16xf32>
    %545 = arith.addf %527, %544 : vector<16x16xf32>
    %c3_119 = arith.constant 3 : index
    %c2_120 = arith.constant 2 : index
    %c0_121 = arith.constant 0 : index
    %546 = vector.load %arg9[%c3_119, %c2_120, %c0_121] : memref<4x18x18xf32, #tpu.memory_space<vmem>>, vector<1x16x16xf32>
    %547 = vector.shape_cast %546 : vector<1x16x16xf32> to vector<16x16xf32>
    %c33 = arith.constant 33 : index
    %548 = memref.load %arg4[%c33] : memref<144xf32, #tpu.memory_space<smem>>
    %549 = vector.broadcast %548 : f32 to vector<16x16xf32>
    %550 = arith.mulf %549, %547 : vector<16x16xf32>
    %551 = arith.addf %533, %550 : vector<16x16xf32>
    %c69 = arith.constant 69 : index
    %552 = memref.load %arg4[%c69] : memref<144xf32, #tpu.memory_space<smem>>
    %553 = vector.broadcast %552 : f32 to vector<16x16xf32>
    %554 = arith.mulf %553, %547 : vector<16x16xf32>
    %555 = arith.addf %537, %554 : vector<16x16xf32>
    %c105 = arith.constant 105 : index
    %556 = memref.load %arg4[%c105] : memref<144xf32, #tpu.memory_space<smem>>
    %557 = vector.broadcast %556 : f32 to vector<16x16xf32>
    %558 = arith.mulf %557, %547 : vector<16x16xf32>
    %559 = arith.addf %541, %558 : vector<16x16xf32>
    %c141 = arith.constant 141 : index
    %560 = memref.load %arg4[%c141] : memref<144xf32, #tpu.memory_space<smem>>
    %561 = vector.broadcast %560 : f32 to vector<16x16xf32>
    %562 = arith.mulf %561, %547 : vector<16x16xf32>
    %563 = arith.addf %545, %562 : vector<16x16xf32>
    %c0_122 = arith.constant 0 : index
    %c2_123 = arith.constant 2 : index
    %c1_124 = arith.constant 1 : index
    %564 = vector.load %arg9[%c0_122, %c2_123, %c1_124] : memref<4x18x18xf32, #tpu.memory_space<vmem>>, vector<1x16x16xf32>
    %565 = vector.shape_cast %564 : vector<1x16x16xf32> to vector<16x16xf32>
    %c7 = arith.constant 7 : index
    %566 = memref.load %arg4[%c7] : memref<144xf32, #tpu.memory_space<smem>>
    %567 = vector.broadcast %566 : f32 to vector<16x16xf32>
    %568 = arith.mulf %567, %565 : vector<16x16xf32>
    %569 = arith.addf %551, %568 : vector<16x16xf32>
    %c43 = arith.constant 43 : index
    %570 = memref.load %arg4[%c43] : memref<144xf32, #tpu.memory_space<smem>>
    %571 = vector.broadcast %570 : f32 to vector<16x16xf32>
    %572 = arith.mulf %571, %565 : vector<16x16xf32>
    %573 = arith.addf %555, %572 : vector<16x16xf32>
    %c79 = arith.constant 79 : index
    %574 = memref.load %arg4[%c79] : memref<144xf32, #tpu.memory_space<smem>>
    %575 = vector.broadcast %574 : f32 to vector<16x16xf32>
    %576 = arith.mulf %575, %565 : vector<16x16xf32>
    %577 = arith.addf %559, %576 : vector<16x16xf32>
    %c115 = arith.constant 115 : index
    %578 = memref.load %arg4[%c115] : memref<144xf32, #tpu.memory_space<smem>>
    %579 = vector.broadcast %578 : f32 to vector<16x16xf32>
    %580 = arith.mulf %579, %565 : vector<16x16xf32>
    %581 = arith.addf %563, %580 : vector<16x16xf32>
    %c1_125 = arith.constant 1 : index
    %c2_126 = arith.constant 2 : index
    %c1_127 = arith.constant 1 : index
    %582 = vector.load %arg9[%c1_125, %c2_126, %c1_127] : memref<4x18x18xf32, #tpu.memory_space<vmem>>, vector<1x16x16xf32>
    %583 = vector.shape_cast %582 : vector<1x16x16xf32> to vector<16x16xf32>
    %c16 = arith.constant 16 : index
    %584 = memref.load %arg4[%c16] : memref<144xf32, #tpu.memory_space<smem>>
    %585 = vector.broadcast %584 : f32 to vector<16x16xf32>
    %586 = arith.mulf %585, %583 : vector<16x16xf32>
    %587 = arith.addf %569, %586 : vector<16x16xf32>
    %c52 = arith.constant 52 : index
    %588 = memref.load %arg4[%c52] : memref<144xf32, #tpu.memory_space<smem>>
    %589 = vector.broadcast %588 : f32 to vector<16x16xf32>
    %590 = arith.mulf %589, %583 : vector<16x16xf32>
    %591 = arith.addf %573, %590 : vector<16x16xf32>
    %c88 = arith.constant 88 : index
    %592 = memref.load %arg4[%c88] : memref<144xf32, #tpu.memory_space<smem>>
    %593 = vector.broadcast %592 : f32 to vector<16x16xf32>
    %594 = arith.mulf %593, %583 : vector<16x16xf32>
    %595 = arith.addf %577, %594 : vector<16x16xf32>
    %c124 = arith.constant 124 : index
    %596 = memref.load %arg4[%c124] : memref<144xf32, #tpu.memory_space<smem>>
    %597 = vector.broadcast %596 : f32 to vector<16x16xf32>
    %598 = arith.mulf %597, %583 : vector<16x16xf32>
    %599 = arith.addf %581, %598 : vector<16x16xf32>
    %c2_128 = arith.constant 2 : index
    %c2_129 = arith.constant 2 : index
    %c1_130 = arith.constant 1 : index
    %600 = vector.load %arg9[%c2_128, %c2_129, %c1_130] : memref<4x18x18xf32, #tpu.memory_space<vmem>>, vector<1x16x16xf32>
    %601 = vector.shape_cast %600 : vector<1x16x16xf32> to vector<16x16xf32>
    %c25 = arith.constant 25 : index
    %602 = memref.load %arg4[%c25] : memref<144xf32, #tpu.memory_space<smem>>
    %603 = vector.broadcast %602 : f32 to vector<16x16xf32>
    %604 = arith.mulf %603, %601 : vector<16x16xf32>
    %605 = arith.addf %587, %604 : vector<16x16xf32>
    %c61 = arith.constant 61 : index
    %606 = memref.load %arg4[%c61] : memref<144xf32, #tpu.memory_space<smem>>
    %607 = vector.broadcast %606 : f32 to vector<16x16xf32>
    %608 = arith.mulf %607, %601 : vector<16x16xf32>
    %609 = arith.addf %591, %608 : vector<16x16xf32>
    %c97 = arith.constant 97 : index
    %610 = memref.load %arg4[%c97] : memref<144xf32, #tpu.memory_space<smem>>
    %611 = vector.broadcast %610 : f32 to vector<16x16xf32>
    %612 = arith.mulf %611, %601 : vector<16x16xf32>
    %613 = arith.addf %595, %612 : vector<16x16xf32>
    %c133 = arith.constant 133 : index
    %614 = memref.load %arg4[%c133] : memref<144xf32, #tpu.memory_space<smem>>
    %615 = vector.broadcast %614 : f32 to vector<16x16xf32>
    %616 = arith.mulf %615, %601 : vector<16x16xf32>
    %617 = arith.addf %599, %616 : vector<16x16xf32>
    %c3_131 = arith.constant 3 : index
    %c2_132 = arith.constant 2 : index
    %c1_133 = arith.constant 1 : index
    %618 = vector.load %arg9[%c3_131, %c2_132, %c1_133] : memref<4x18x18xf32, #tpu.memory_space<vmem>>, vector<1x16x16xf32>
    %619 = vector.shape_cast %618 : vector<1x16x16xf32> to vector<16x16xf32>
    %c34 = arith.constant 34 : index
    %620 = memref.load %arg4[%c34] : memref<144xf32, #tpu.memory_space<smem>>
    %621 = vector.broadcast %620 : f32 to vector<16x16xf32>
    %622 = arith.mulf %621, %619 : vector<16x16xf32>
    %623 = arith.addf %605, %622 : vector<16x16xf32>
    %c70 = arith.constant 70 : index
    %624 = memref.load %arg4[%c70] : memref<144xf32, #tpu.memory_space<smem>>
    %625 = vector.broadcast %624 : f32 to vector<16x16xf32>
    %626 = arith.mulf %625, %619 : vector<16x16xf32>
    %627 = arith.addf %609, %626 : vector<16x16xf32>
    %c106 = arith.constant 106 : index
    %628 = memref.load %arg4[%c106] : memref<144xf32, #tpu.memory_space<smem>>
    %629 = vector.broadcast %628 : f32 to vector<16x16xf32>
    %630 = arith.mulf %629, %619 : vector<16x16xf32>
    %631 = arith.addf %613, %630 : vector<16x16xf32>
    %c142 = arith.constant 142 : index
    %632 = memref.load %arg4[%c142] : memref<144xf32, #tpu.memory_space<smem>>
    %633 = vector.broadcast %632 : f32 to vector<16x16xf32>
    %634 = arith.mulf %633, %619 : vector<16x16xf32>
    %635 = arith.addf %617, %634 : vector<16x16xf32>
    %c0_134 = arith.constant 0 : index
    %c2_135 = arith.constant 2 : index
    %c2_136 = arith.constant 2 : index
    %636 = vector.load %arg9[%c0_134, %c2_135, %c2_136] : memref<4x18x18xf32, #tpu.memory_space<vmem>>, vector<1x16x16xf32>
    %637 = vector.shape_cast %636 : vector<1x16x16xf32> to vector<16x16xf32>
    %c8 = arith.constant 8 : index
    %638 = memref.load %arg4[%c8] : memref<144xf32, #tpu.memory_space<smem>>
    %639 = vector.broadcast %638 : f32 to vector<16x16xf32>
    %640 = arith.mulf %639, %637 : vector<16x16xf32>
    %641 = arith.addf %623, %640 : vector<16x16xf32>
    %c44 = arith.constant 44 : index
    %642 = memref.load %arg4[%c44] : memref<144xf32, #tpu.memory_space<smem>>
    %643 = vector.broadcast %642 : f32 to vector<16x16xf32>
    %644 = arith.mulf %643, %637 : vector<16x16xf32>
    %645 = arith.addf %627, %644 : vector<16x16xf32>
    %c80 = arith.constant 80 : index
    %646 = memref.load %arg4[%c80] : memref<144xf32, #tpu.memory_space<smem>>
    %647 = vector.broadcast %646 : f32 to vector<16x16xf32>
    %648 = arith.mulf %647, %637 : vector<16x16xf32>
    %649 = arith.addf %631, %648 : vector<16x16xf32>
    %c116 = arith.constant 116 : index
    %650 = memref.load %arg4[%c116] : memref<144xf32, #tpu.memory_space<smem>>
    %651 = vector.broadcast %650 : f32 to vector<16x16xf32>
    %652 = arith.mulf %651, %637 : vector<16x16xf32>
    %653 = arith.addf %635, %652 : vector<16x16xf32>
    %c1_137 = arith.constant 1 : index
    %c2_138 = arith.constant 2 : index
    %c2_139 = arith.constant 2 : index
    %654 = vector.load %arg9[%c1_137, %c2_138, %c2_139] : memref<4x18x18xf32, #tpu.memory_space<vmem>>, vector<1x16x16xf32>
    %655 = vector.shape_cast %654 : vector<1x16x16xf32> to vector<16x16xf32>
    %c17 = arith.constant 17 : index
    %656 = memref.load %arg4[%c17] : memref<144xf32, #tpu.memory_space<smem>>
    %657 = vector.broadcast %656 : f32 to vector<16x16xf32>
    %658 = arith.mulf %657, %655 : vector<16x16xf32>
    %659 = arith.addf %641, %658 : vector<16x16xf32>
    %c53 = arith.constant 53 : index
    %660 = memref.load %arg4[%c53] : memref<144xf32, #tpu.memory_space<smem>>
    %661 = vector.broadcast %660 : f32 to vector<16x16xf32>
    %662 = arith.mulf %661, %655 : vector<16x16xf32>
    %663 = arith.addf %645, %662 : vector<16x16xf32>
    %c89 = arith.constant 89 : index
    %664 = memref.load %arg4[%c89] : memref<144xf32, #tpu.memory_space<smem>>
    %665 = vector.broadcast %664 : f32 to vector<16x16xf32>
    %666 = arith.mulf %665, %655 : vector<16x16xf32>
    %667 = arith.addf %649, %666 : vector<16x16xf32>
    %c125 = arith.constant 125 : index
    %668 = memref.load %arg4[%c125] : memref<144xf32, #tpu.memory_space<smem>>
    %669 = vector.broadcast %668 : f32 to vector<16x16xf32>
    %670 = arith.mulf %669, %655 : vector<16x16xf32>
    %671 = arith.addf %653, %670 : vector<16x16xf32>
    %c2_140 = arith.constant 2 : index
    %c2_141 = arith.constant 2 : index
    %c2_142 = arith.constant 2 : index
    %672 = vector.load %arg9[%c2_140, %c2_141, %c2_142] : memref<4x18x18xf32, #tpu.memory_space<vmem>>, vector<1x16x16xf32>
    %673 = vector.shape_cast %672 : vector<1x16x16xf32> to vector<16x16xf32>
    %c26 = arith.constant 26 : index
    %674 = memref.load %arg4[%c26] : memref<144xf32, #tpu.memory_space<smem>>
    %675 = vector.broadcast %674 : f32 to vector<16x16xf32>
    %676 = arith.mulf %675, %673 : vector<16x16xf32>
    %677 = arith.addf %659, %676 : vector<16x16xf32>
    %c62 = arith.constant 62 : index
    %678 = memref.load %arg4[%c62] : memref<144xf32, #tpu.memory_space<smem>>
    %679 = vector.broadcast %678 : f32 to vector<16x16xf32>
    %680 = arith.mulf %679, %673 : vector<16x16xf32>
    %681 = arith.addf %663, %680 : vector<16x16xf32>
    %c98 = arith.constant 98 : index
    %682 = memref.load %arg4[%c98] : memref<144xf32, #tpu.memory_space<smem>>
    %683 = vector.broadcast %682 : f32 to vector<16x16xf32>
    %684 = arith.mulf %683, %673 : vector<16x16xf32>
    %685 = arith.addf %667, %684 : vector<16x16xf32>
    %c134 = arith.constant 134 : index
    %686 = memref.load %arg4[%c134] : memref<144xf32, #tpu.memory_space<smem>>
    %687 = vector.broadcast %686 : f32 to vector<16x16xf32>
    %688 = arith.mulf %687, %673 : vector<16x16xf32>
    %689 = arith.addf %671, %688 : vector<16x16xf32>
    %c3_143 = arith.constant 3 : index
    %c2_144 = arith.constant 2 : index
    %c2_145 = arith.constant 2 : index
    %690 = vector.load %arg9[%c3_143, %c2_144, %c2_145] : memref<4x18x18xf32, #tpu.memory_space<vmem>>, vector<1x16x16xf32>
    %691 = vector.shape_cast %690 : vector<1x16x16xf32> to vector<16x16xf32>
    %c35 = arith.constant 35 : index
    %692 = memref.load %arg4[%c35] : memref<144xf32, #tpu.memory_space<smem>>
    %693 = vector.broadcast %692 : f32 to vector<16x16xf32>
    %694 = arith.mulf %693, %691 : vector<16x16xf32>
    %695 = arith.addf %677, %694 : vector<16x16xf32>
    %c71 = arith.constant 71 : index
    %696 = memref.load %arg4[%c71] : memref<144xf32, #tpu.memory_space<smem>>
    %697 = vector.broadcast %696 : f32 to vector<16x16xf32>
    %698 = arith.mulf %697, %691 : vector<16x16xf32>
    %699 = arith.addf %681, %698 : vector<16x16xf32>
    %c107 = arith.constant 107 : index
    %700 = memref.load %arg4[%c107] : memref<144xf32, #tpu.memory_space<smem>>
    %701 = vector.broadcast %700 : f32 to vector<16x16xf32>
    %702 = arith.mulf %701, %691 : vector<16x16xf32>
    %703 = arith.addf %685, %702 : vector<16x16xf32>
    %c143 = arith.constant 143 : index
    %704 = memref.load %arg4[%c143] : memref<144xf32, #tpu.memory_space<smem>>
    %705 = vector.broadcast %704 : f32 to vector<16x16xf32>
    %706 = arith.mulf %705, %691 : vector<16x16xf32>
    %707 = arith.addf %689, %706 : vector<16x16xf32>
    %cst_146 = arith.constant 0.000000e+00 : f32
    %708 = vector.broadcast %cst_146 : f32 to vector<16x16xf32>
    %709 = arith.maximumf %695, %708 : vector<16x16xf32>
    %cst_147 = arith.constant 0.000000e+00 : f32
    %710 = vector.broadcast %cst_147 : f32 to vector<16x16xf32>
    %711 = arith.maximumf %699, %710 : vector<16x16xf32>
    %cst_148 = arith.constant 0.000000e+00 : f32
    %712 = vector.broadcast %cst_148 : f32 to vector<16x16xf32>
    %713 = arith.maximumf %703, %712 : vector<16x16xf32>
    %cst_149 = arith.constant 0.000000e+00 : f32
    %714 = vector.broadcast %cst_149 : f32 to vector<16x16xf32>
    %715 = arith.maximumf %707, %714 : vector<16x16xf32>
    %c0_150 = arith.constant 0 : index
    %c1_151 = arith.constant 1 : index
    %c1_152 = arith.constant 1 : index
    %716 = vector.load %arg9[%c0_150, %c1_151, %c1_152] : memref<4x18x18xf32, #tpu.memory_space<vmem>>, vector<1x16x16xf32>
    %717 = vector.shape_cast %716 : vector<1x16x16xf32> to vector<16x16xf32>
    %718 = vector.shape_cast %709 : vector<16x16xf32> to vector<1x16x16xf32>
    tpu.vector_store %arg9[%c0_150, %c1_151, %c1_152], %718 {strides = array<i32>} : memref<4x18x18xf32, #tpu.memory_space<vmem>>, vector<1x16x16xf32>,
    %c1_153 = arith.constant 1 : index
    %c1_154 = arith.constant 1 : index
    %c1_155 = arith.constant 1 : index
    %719 = vector.load %arg9[%c1_153, %c1_154, %c1_155] : memref<4x18x18xf32, #tpu.memory_space<vmem>>, vector<1x16x16xf32>
    %720 = vector.shape_cast %719 : vector<1x16x16xf32> to vector<16x16xf32>
    %721 = vector.shape_cast %711 : vector<16x16xf32> to vector<1x16x16xf32>
    tpu.vector_store %arg9[%c1_153, %c1_154, %c1_155], %721 {strides = array<i32>} : memref<4x18x18xf32, #tpu.memory_space<vmem>>, vector<1x16x16xf32>,
    %c2_156 = arith.constant 2 : index
    %c1_157 = arith.constant 1 : index
    %c1_158 = arith.constant 1 : index
    %722 = vector.load %arg9[%c2_156, %c1_157, %c1_158] : memref<4x18x18xf32, #tpu.memory_space<vmem>>, vector<1x16x16xf32>
    %723 = vector.shape_cast %722 : vector<1x16x16xf32> to vector<16x16xf32>
    %724 = vector.shape_cast %713 : vector<16x16xf32> to vector<1x16x16xf32>
    tpu.vector_store %arg9[%c2_156, %c1_157, %c1_158], %724 {strides = array<i32>} : memref<4x18x18xf32, #tpu.memory_space<vmem>>, vector<1x16x16xf32>,
    %c3_159 = arith.constant 3 : index
    %c1_160 = arith.constant 1 : index
    %c1_161 = arith.constant 1 : index
    %725 = vector.load %arg9[%c3_159, %c1_160, %c1_161] : memref<4x18x18xf32, #tpu.memory_space<vmem>>, vector<1x16x16xf32>
    %726 = vector.shape_cast %725 : vector<1x16x16xf32> to vector<16x16xf32>
    %727 = vector.shape_cast %715 : vector<16x16xf32> to vector<1x16x16xf32>
    tpu.vector_store %arg9[%c3_159, %c1_160, %c1_161], %727 {strides = array<i32>} : memref<4x18x18xf32, #tpu.memory_space<vmem>>, vector<1x16x16xf32>,
    %c0_162 = arith.constant 0 : index
    %728 = memref.load %arg7[%c0_162] : memref<4xf32, #tpu.memory_space<smem>>
    %729 = vector.broadcast %728 : f32 to vector<16x16xf32>
    %c1_163 = arith.constant 1 : index
    %730 = memref.load %arg7[%c1_163] : memref<4xf32, #tpu.memory_space<smem>>
    %731 = vector.broadcast %730 : f32 to vector<16x16xf32>
    %c2_164 = arith.constant 2 : index
    %732 = memref.load %arg7[%c2_164] : memref<4xf32, #tpu.memory_space<smem>>
    %733 = vector.broadcast %732 : f32 to vector<16x16xf32>
    %c3_165 = arith.constant 3 : index
    %734 = memref.load %arg7[%c3_165] : memref<4xf32, #tpu.memory_space<smem>>
    %735 = vector.broadcast %734 : f32 to vector<16x16xf32>
    %c0_166 = arith.constant 0 : index
    %c0_167 = arith.constant 0 : index
    %c0_168 = arith.constant 0 : index
    %736 = vector.load %arg9[%c0_166, %c0_167, %c0_168] : memref<4x18x18xf32, #tpu.memory_space<vmem>>, vector<1x16x16xf32>
    %737 = vector.shape_cast %736 : vector<1x16x16xf32> to vector<16x16xf32>
    %c0_169 = arith.constant 0 : index
    %738 = memref.load %arg6[%c0_169] : memref<144xf32, #tpu.memory_space<smem>>
    %739 = vector.broadcast %738 : f32 to vector<16x16xf32>
    %740 = arith.mulf %739, %737 : vector<16x16xf32>
    %741 = arith.addf %729, %740 : vector<16x16xf32>
    %c36_170 = arith.constant 36 : index
    %742 = memref.load %arg6[%c36_170] : memref<144xf32, #tpu.memory_space<smem>>
    %743 = vector.broadcast %742 : f32 to vector<16x16xf32>
    %744 = arith.mulf %743, %737 : vector<16x16xf32>
    %745 = arith.addf %731, %744 : vector<16x16xf32>
    %c72_171 = arith.constant 72 : index
    %746 = memref.load %arg6[%c72_171] : memref<144xf32, #tpu.memory_space<smem>>
    %747 = vector.broadcast %746 : f32 to vector<16x16xf32>
    %748 = arith.mulf %747, %737 : vector<16x16xf32>
    %749 = arith.addf %733, %748 : vector<16x16xf32>
    %c108_172 = arith.constant 108 : index
    %750 = memref.load %arg6[%c108_172] : memref<144xf32, #tpu.memory_space<smem>>
    %751 = vector.broadcast %750 : f32 to vector<16x16xf32>
    %752 = arith.mulf %751, %737 : vector<16x16xf32>
    %753 = arith.addf %735, %752 : vector<16x16xf32>
    %c1_173 = arith.constant 1 : index
    %c0_174 = arith.constant 0 : index
    %c0_175 = arith.constant 0 : index
    %754 = vector.load %arg9[%c1_173, %c0_174, %c0_175] : memref<4x18x18xf32, #tpu.memory_space<vmem>>, vector<1x16x16xf32>
    %755 = vector.shape_cast %754 : vector<1x16x16xf32> to vector<16x16xf32>
    %c9_176 = arith.constant 9 : index
    %756 = memref.load %arg6[%c9_176] : memref<144xf32, #tpu.memory_space<smem>>
    %757 = vector.broadcast %756 : f32 to vector<16x16xf32>
    %758 = arith.mulf %757, %755 : vector<16x16xf32>
    %759 = arith.addf %741, %758 : vector<16x16xf32>
    %c45_177 = arith.constant 45 : index
    %760 = memref.load %arg6[%c45_177] : memref<144xf32, #tpu.memory_space<smem>>
    %761 = vector.broadcast %760 : f32 to vector<16x16xf32>
    %762 = arith.mulf %761, %755 : vector<16x16xf32>
    %763 = arith.addf %745, %762 : vector<16x16xf32>
    %c81_178 = arith.constant 81 : index
    %764 = memref.load %arg6[%c81_178] : memref<144xf32, #tpu.memory_space<smem>>
    %765 = vector.broadcast %764 : f32 to vector<16x16xf32>
    %766 = arith.mulf %765, %755 : vector<16x16xf32>
    %767 = arith.addf %749, %766 : vector<16x16xf32>
    %c117_179 = arith.constant 117 : index
    %768 = memref.load %arg6[%c117_179] : memref<144xf32, #tpu.memory_space<smem>>
    %769 = vector.broadcast %768 : f32 to vector<16x16xf32>
    %770 = arith.mulf %769, %755 : vector<16x16xf32>
    %771 = arith.addf %753, %770 : vector<16x16xf32>
    %c2_180 = arith.constant 2 : index
    %c0_181 = arith.constant 0 : index
    %c0_182 = arith.constant 0 : index
    %772 = vector.load %arg9[%c2_180, %c0_181, %c0_182] : memref<4x18x18xf32, #tpu.memory_space<vmem>>, vector<1x16x16xf32>
    %773 = vector.shape_cast %772 : vector<1x16x16xf32> to vector<16x16xf32>
    %c18_183 = arith.constant 18 : index
    %774 = memref.load %arg6[%c18_183] : memref<144xf32, #tpu.memory_space<smem>>
    %775 = vector.broadcast %774 : f32 to vector<16x16xf32>
    %776 = arith.mulf %775, %773 : vector<16x16xf32>
    %777 = arith.addf %759, %776 : vector<16x16xf32>
    %c54_184 = arith.constant 54 : index
    %778 = memref.load %arg6[%c54_184] : memref<144xf32, #tpu.memory_space<smem>>
    %779 = vector.broadcast %778 : f32 to vector<16x16xf32>
    %780 = arith.mulf %779, %773 : vector<16x16xf32>
    %781 = arith.addf %763, %780 : vector<16x16xf32>
    %c90_185 = arith.constant 90 : index
    %782 = memref.load %arg6[%c90_185] : memref<144xf32, #tpu.memory_space<smem>>
    %783 = vector.broadcast %782 : f32 to vector<16x16xf32>
    %784 = arith.mulf %783, %773 : vector<16x16xf32>
    %785 = arith.addf %767, %784 : vector<16x16xf32>
    %c126_186 = arith.constant 126 : index
    %786 = memref.load %arg6[%c126_186] : memref<144xf32, #tpu.memory_space<smem>>
    %787 = vector.broadcast %786 : f32 to vector<16x16xf32>
    %788 = arith.mulf %787, %773 : vector<16x16xf32>
    %789 = arith.addf %771, %788 : vector<16x16xf32>
    %c3_187 = arith.constant 3 : index
    %c0_188 = arith.constant 0 : index
    %c0_189 = arith.constant 0 : index
    %790 = vector.load %arg9[%c3_187, %c0_188, %c0_189] : memref<4x18x18xf32, #tpu.memory_space<vmem>>, vector<1x16x16xf32>
    %791 = vector.shape_cast %790 : vector<1x16x16xf32> to vector<16x16xf32>
    %c27_190 = arith.constant 27 : index
    %792 = memref.load %arg6[%c27_190] : memref<144xf32, #tpu.memory_space<smem>>
    %793 = vector.broadcast %792 : f32 to vector<16x16xf32>
    %794 = arith.mulf %793, %791 : vector<16x16xf32>
    %795 = arith.addf %777, %794 : vector<16x16xf32>
    %c63_191 = arith.constant 63 : index
    %796 = memref.load %arg6[%c63_191] : memref<144xf32, #tpu.memory_space<smem>>
    %797 = vector.broadcast %796 : f32 to vector<16x16xf32>
    %798 = arith.mulf %797, %791 : vector<16x16xf32>
    %799 = arith.addf %781, %798 : vector<16x16xf32>
    %c99_192 = arith.constant 99 : index
    %800 = memref.load %arg6[%c99_192] : memref<144xf32, #tpu.memory_space<smem>>
    %801 = vector.broadcast %800 : f32 to vector<16x16xf32>
    %802 = arith.mulf %801, %791 : vector<16x16xf32>
    %803 = arith.addf %785, %802 : vector<16x16xf32>
    %c135_193 = arith.constant 135 : index
    %804 = memref.load %arg6[%c135_193] : memref<144xf32, #tpu.memory_space<smem>>
    %805 = vector.broadcast %804 : f32 to vector<16x16xf32>
    %806 = arith.mulf %805, %791 : vector<16x16xf32>
    %807 = arith.addf %789, %806 : vector<16x16xf32>
    %c0_194 = arith.constant 0 : index
    %c0_195 = arith.constant 0 : index
    %c1_196 = arith.constant 1 : index
    %808 = vector.load %arg9[%c0_194, %c0_195, %c1_196] : memref<4x18x18xf32, #tpu.memory_space<vmem>>, vector<1x16x16xf32>
    %809 = vector.shape_cast %808 : vector<1x16x16xf32> to vector<16x16xf32>
    %c1_197 = arith.constant 1 : index
    %810 = memref.load %arg6[%c1_197] : memref<144xf32, #tpu.memory_space<smem>>
    %811 = vector.broadcast %810 : f32 to vector<16x16xf32>
    %812 = arith.mulf %811, %809 : vector<16x16xf32>
    %813 = arith.addf %795, %812 : vector<16x16xf32>
    %c37_198 = arith.constant 37 : index
    %814 = memref.load %arg6[%c37_198] : memref<144xf32, #tpu.memory_space<smem>>
    %815 = vector.broadcast %814 : f32 to vector<16x16xf32>
    %816 = arith.mulf %815, %809 : vector<16x16xf32>
    %817 = arith.addf %799, %816 : vector<16x16xf32>
    %c73_199 = arith.constant 73 : index
    %818 = memref.load %arg6[%c73_199] : memref<144xf32, #tpu.memory_space<smem>>
    %819 = vector.broadcast %818 : f32 to vector<16x16xf32>
    %820 = arith.mulf %819, %809 : vector<16x16xf32>
    %821 = arith.addf %803, %820 : vector<16x16xf32>
    %c109_200 = arith.constant 109 : index
    %822 = memref.load %arg6[%c109_200] : memref<144xf32, #tpu.memory_space<smem>>
    %823 = vector.broadcast %822 : f32 to vector<16x16xf32>
    %824 = arith.mulf %823, %809 : vector<16x16xf32>
    %825 = arith.addf %807, %824 : vector<16x16xf32>
    %c1_201 = arith.constant 1 : index
    %c0_202 = arith.constant 0 : index
    %c1_203 = arith.constant 1 : index
    %826 = vector.load %arg9[%c1_201, %c0_202, %c1_203] : memref<4x18x18xf32, #tpu.memory_space<vmem>>, vector<1x16x16xf32>
    %827 = vector.shape_cast %826 : vector<1x16x16xf32> to vector<16x16xf32>
    %c10_204 = arith.constant 10 : index
    %828 = memref.load %arg6[%c10_204] : memref<144xf32, #tpu.memory_space<smem>>
    %829 = vector.broadcast %828 : f32 to vector<16x16xf32>
    %830 = arith.mulf %829, %827 : vector<16x16xf32>
    %831 = arith.addf %813, %830 : vector<16x16xf32>
    %c46_205 = arith.constant 46 : index
    %832 = memref.load %arg6[%c46_205] : memref<144xf32, #tpu.memory_space<smem>>
    %833 = vector.broadcast %832 : f32 to vector<16x16xf32>
    %834 = arith.mulf %833, %827 : vector<16x16xf32>
    %835 = arith.addf %817, %834 : vector<16x16xf32>
    %c82_206 = arith.constant 82 : index
    %836 = memref.load %arg6[%c82_206] : memref<144xf32, #tpu.memory_space<smem>>
    %837 = vector.broadcast %836 : f32 to vector<16x16xf32>
    %838 = arith.mulf %837, %827 : vector<16x16xf32>
    %839 = arith.addf %821, %838 : vector<16x16xf32>
    %c118_207 = arith.constant 118 : index
    %840 = memref.load %arg6[%c118_207] : memref<144xf32, #tpu.memory_space<smem>>
    %841 = vector.broadcast %840 : f32 to vector<16x16xf32>
    %842 = arith.mulf %841, %827 : vector<16x16xf32>
    %843 = arith.addf %825, %842 : vector<16x16xf32>
    %c2_208 = arith.constant 2 : index
    %c0_209 = arith.constant 0 : index
    %c1_210 = arith.constant 1 : index
    %844 = vector.load %arg9[%c2_208, %c0_209, %c1_210] : memref<4x18x18xf32, #tpu.memory_space<vmem>>, vector<1x16x16xf32>
    %845 = vector.shape_cast %844 : vector<1x16x16xf32> to vector<16x16xf32>
    %c19_211 = arith.constant 19 : index
    %846 = memref.load %arg6[%c19_211] : memref<144xf32, #tpu.memory_space<smem>>
    %847 = vector.broadcast %846 : f32 to vector<16x16xf32>
    %848 = arith.mulf %847, %845 : vector<16x16xf32>
    %849 = arith.addf %831, %848 : vector<16x16xf32>
    %c55_212 = arith.constant 55 : index
    %850 = memref.load %arg6[%c55_212] : memref<144xf32, #tpu.memory_space<smem>>
    %851 = vector.broadcast %850 : f32 to vector<16x16xf32>
    %852 = arith.mulf %851, %845 : vector<16x16xf32>
    %853 = arith.addf %835, %852 : vector<16x16xf32>
    %c91_213 = arith.constant 91 : index
    %854 = memref.load %arg6[%c91_213] : memref<144xf32, #tpu.memory_space<smem>>
    %855 = vector.broadcast %854 : f32 to vector<16x16xf32>
    %856 = arith.mulf %855, %845 : vector<16x16xf32>
    %857 = arith.addf %839, %856 : vector<16x16xf32>
    %c127_214 = arith.constant 127 : index
    %858 = memref.load %arg6[%c127_214] : memref<144xf32, #tpu.memory_space<smem>>
    %859 = vector.broadcast %858 : f32 to vector<16x16xf32>
    %860 = arith.mulf %859, %845 : vector<16x16xf32>
    %861 = arith.addf %843, %860 : vector<16x16xf32>
    %c3_215 = arith.constant 3 : index
    %c0_216 = arith.constant 0 : index
    %c1_217 = arith.constant 1 : index
    %862 = vector.load %arg9[%c3_215, %c0_216, %c1_217] : memref<4x18x18xf32, #tpu.memory_space<vmem>>, vector<1x16x16xf32>
    %863 = vector.shape_cast %862 : vector<1x16x16xf32> to vector<16x16xf32>
    %c28_218 = arith.constant 28 : index
    %864 = memref.load %arg6[%c28_218] : memref<144xf32, #tpu.memory_space<smem>>
    %865 = vector.broadcast %864 : f32 to vector<16x16xf32>
    %866 = arith.mulf %865, %863 : vector<16x16xf32>
    %867 = arith.addf %849, %866 : vector<16x16xf32>
    %c64_219 = arith.constant 64 : index
    %868 = memref.load %arg6[%c64_219] : memref<144xf32, #tpu.memory_space<smem>>
    %869 = vector.broadcast %868 : f32 to vector<16x16xf32>
    %870 = arith.mulf %869, %863 : vector<16x16xf32>
    %871 = arith.addf %853, %870 : vector<16x16xf32>
    %c100_220 = arith.constant 100 : index
    %872 = memref.load %arg6[%c100_220] : memref<144xf32, #tpu.memory_space<smem>>
    %873 = vector.broadcast %872 : f32 to vector<16x16xf32>
    %874 = arith.mulf %873, %863 : vector<16x16xf32>
    %875 = arith.addf %857, %874 : vector<16x16xf32>
    %c136_221 = arith.constant 136 : index
    %876 = memref.load %arg6[%c136_221] : memref<144xf32, #tpu.memory_space<smem>>
    %877 = vector.broadcast %876 : f32 to vector<16x16xf32>
    %878 = arith.mulf %877, %863 : vector<16x16xf32>
    %879 = arith.addf %861, %878 : vector<16x16xf32>
    %c0_222 = arith.constant 0 : index
    %c0_223 = arith.constant 0 : index
    %c2_224 = arith.constant 2 : index
    %880 = vector.load %arg9[%c0_222, %c0_223, %c2_224] : memref<4x18x18xf32, #tpu.memory_space<vmem>>, vector<1x16x16xf32>
    %881 = vector.shape_cast %880 : vector<1x16x16xf32> to vector<16x16xf32>
    %c2_225 = arith.constant 2 : index
    %882 = memref.load %arg6[%c2_225] : memref<144xf32, #tpu.memory_space<smem>>
    %883 = vector.broadcast %882 : f32 to vector<16x16xf32>
    %884 = arith.mulf %883, %881 : vector<16x16xf32>
    %885 = arith.addf %867, %884 : vector<16x16xf32>
    %c38_226 = arith.constant 38 : index
    %886 = memref.load %arg6[%c38_226] : memref<144xf32, #tpu.memory_space<smem>>
    %887 = vector.broadcast %886 : f32 to vector<16x16xf32>
    %888 = arith.mulf %887, %881 : vector<16x16xf32>
    %889 = arith.addf %871, %888 : vector<16x16xf32>
    %c74_227 = arith.constant 74 : index
    %890 = memref.load %arg6[%c74_227] : memref<144xf32, #tpu.memory_space<smem>>
    %891 = vector.broadcast %890 : f32 to vector<16x16xf32>
    %892 = arith.mulf %891, %881 : vector<16x16xf32>
    %893 = arith.addf %875, %892 : vector<16x16xf32>
    %c110_228 = arith.constant 110 : index
    %894 = memref.load %arg6[%c110_228] : memref<144xf32, #tpu.memory_space<smem>>
    %895 = vector.broadcast %894 : f32 to vector<16x16xf32>
    %896 = arith.mulf %895, %881 : vector<16x16xf32>
    %897 = arith.addf %879, %896 : vector<16x16xf32>
    %c1_229 = arith.constant 1 : index
    %c0_230 = arith.constant 0 : index
    %c2_231 = arith.constant 2 : index
    %898 = vector.load %arg9[%c1_229, %c0_230, %c2_231] : memref<4x18x18xf32, #tpu.memory_space<vmem>>, vector<1x16x16xf32>
    %899 = vector.shape_cast %898 : vector<1x16x16xf32> to vector<16x16xf32>
    %c11_232 = arith.constant 11 : index
    %900 = memref.load %arg6[%c11_232] : memref<144xf32, #tpu.memory_space<smem>>
    %901 = vector.broadcast %900 : f32 to vector<16x16xf32>
    %902 = arith.mulf %901, %899 : vector<16x16xf32>
    %903 = arith.addf %885, %902 : vector<16x16xf32>
    %c47_233 = arith.constant 47 : index
    %904 = memref.load %arg6[%c47_233] : memref<144xf32, #tpu.memory_space<smem>>
    %905 = vector.broadcast %904 : f32 to vector<16x16xf32>
    %906 = arith.mulf %905, %899 : vector<16x16xf32>
    %907 = arith.addf %889, %906 : vector<16x16xf32>
    %c83_234 = arith.constant 83 : index
    %908 = memref.load %arg6[%c83_234] : memref<144xf32, #tpu.memory_space<smem>>
    %909 = vector.broadcast %908 : f32 to vector<16x16xf32>
    %910 = arith.mulf %909, %899 : vector<16x16xf32>
    %911 = arith.addf %893, %910 : vector<16x16xf32>
    %c119_235 = arith.constant 119 : index
    %912 = memref.load %arg6[%c119_235] : memref<144xf32, #tpu.memory_space<smem>>
    %913 = vector.broadcast %912 : f32 to vector<16x16xf32>
    %914 = arith.mulf %913, %899 : vector<16x16xf32>
    %915 = arith.addf %897, %914 : vector<16x16xf32>
    %c2_236 = arith.constant 2 : index
    %c0_237 = arith.constant 0 : index
    %c2_238 = arith.constant 2 : index
    %916 = vector.load %arg9[%c2_236, %c0_237, %c2_238] : memref<4x18x18xf32, #tpu.memory_space<vmem>>, vector<1x16x16xf32>
    %917 = vector.shape_cast %916 : vector<1x16x16xf32> to vector<16x16xf32>
    %c20_239 = arith.constant 20 : index
    %918 = memref.load %arg6[%c20_239] : memref<144xf32, #tpu.memory_space<smem>>
    %919 = vector.broadcast %918 : f32 to vector<16x16xf32>
    %920 = arith.mulf %919, %917 : vector<16x16xf32>
    %921 = arith.addf %903, %920 : vector<16x16xf32>
    %c56_240 = arith.constant 56 : index
    %922 = memref.load %arg6[%c56_240] : memref<144xf32, #tpu.memory_space<smem>>
    %923 = vector.broadcast %922 : f32 to vector<16x16xf32>
    %924 = arith.mulf %923, %917 : vector<16x16xf32>
    %925 = arith.addf %907, %924 : vector<16x16xf32>
    %c92_241 = arith.constant 92 : index
    %926 = memref.load %arg6[%c92_241] : memref<144xf32, #tpu.memory_space<smem>>
    %927 = vector.broadcast %926 : f32 to vector<16x16xf32>
    %928 = arith.mulf %927, %917 : vector<16x16xf32>
    %929 = arith.addf %911, %928 : vector<16x16xf32>
    %c128_242 = arith.constant 128 : index
    %930 = memref.load %arg6[%c128_242] : memref<144xf32, #tpu.memory_space<smem>>
    %931 = vector.broadcast %930 : f32 to vector<16x16xf32>
    %932 = arith.mulf %931, %917 : vector<16x16xf32>
    %933 = arith.addf %915, %932 : vector<16x16xf32>
    %c3_243 = arith.constant 3 : index
    %c0_244 = arith.constant 0 : index
    %c2_245 = arith.constant 2 : index
    %934 = vector.load %arg9[%c3_243, %c0_244, %c2_245] : memref<4x18x18xf32, #tpu.memory_space<vmem>>, vector<1x16x16xf32>
    %935 = vector.shape_cast %934 : vector<1x16x16xf32> to vector<16x16xf32>
    %c29_246 = arith.constant 29 : index
    %936 = memref.load %arg6[%c29_246] : memref<144xf32, #tpu.memory_space<smem>>
    %937 = vector.broadcast %936 : f32 to vector<16x16xf32>
    %938 = arith.mulf %937, %935 : vector<16x16xf32>
    %939 = arith.addf %921, %938 : vector<16x16xf32>
    %c65_247 = arith.constant 65 : index
    %940 = memref.load %arg6[%c65_247] : memref<144xf32, #tpu.memory_space<smem>>
    %941 = vector.broadcast %940 : f32 to vector<16x16xf32>
    %942 = arith.mulf %941, %935 : vector<16x16xf32>
    %943 = arith.addf %925, %942 : vector<16x16xf32>
    %c101_248 = arith.constant 101 : index
    %944 = memref.load %arg6[%c101_248] : memref<144xf32, #tpu.memory_space<smem>>
    %945 = vector.broadcast %944 : f32 to vector<16x16xf32>
    %946 = arith.mulf %945, %935 : vector<16x16xf32>
    %947 = arith.addf %929, %946 : vector<16x16xf32>
    %c137_249 = arith.constant 137 : index
    %948 = memref.load %arg6[%c137_249] : memref<144xf32, #tpu.memory_space<smem>>
    %949 = vector.broadcast %948 : f32 to vector<16x16xf32>
    %950 = arith.mulf %949, %935 : vector<16x16xf32>
    %951 = arith.addf %933, %950 : vector<16x16xf32>
    %c0_250 = arith.constant 0 : index
    %c1_251 = arith.constant 1 : index
    %c0_252 = arith.constant 0 : index
    %952 = vector.load %arg9[%c0_250, %c1_251, %c0_252] : memref<4x18x18xf32, #tpu.memory_space<vmem>>, vector<1x16x16xf32>
    %953 = vector.shape_cast %952 : vector<1x16x16xf32> to vector<16x16xf32>
    %c3_253 = arith.constant 3 : index
    %954 = memref.load %arg6[%c3_253] : memref<144xf32, #tpu.memory_space<smem>>
    %955 = vector.broadcast %954 : f32 to vector<16x16xf32>
    %956 = arith.mulf %955, %953 : vector<16x16xf32>
    %957 = arith.addf %939, %956 : vector<16x16xf32>
    %c39_254 = arith.constant 39 : index
    %958 = memref.load %arg6[%c39_254] : memref<144xf32, #tpu.memory_space<smem>>
    %959 = vector.broadcast %958 : f32 to vector<16x16xf32>
    %960 = arith.mulf %959, %953 : vector<16x16xf32>
    %961 = arith.addf %943, %960 : vector<16x16xf32>
    %c75_255 = arith.constant 75 : index
    %962 = memref.load %arg6[%c75_255] : memref<144xf32, #tpu.memory_space<smem>>
    %963 = vector.broadcast %962 : f32 to vector<16x16xf32>
    %964 = arith.mulf %963, %953 : vector<16x16xf32>
    %965 = arith.addf %947, %964 : vector<16x16xf32>
    %c111_256 = arith.constant 111 : index
    %966 = memref.load %arg6[%c111_256] : memref<144xf32, #tpu.memory_space<smem>>
    %967 = vector.broadcast %966 : f32 to vector<16x16xf32>
    %968 = arith.mulf %967, %953 : vector<16x16xf32>
    %969 = arith.addf %951, %968 : vector<16x16xf32>
    %c1_257 = arith.constant 1 : index
    %c1_258 = arith.constant 1 : index
    %c0_259 = arith.constant 0 : index
    %970 = vector.load %arg9[%c1_257, %c1_258, %c0_259] : memref<4x18x18xf32, #tpu.memory_space<vmem>>, vector<1x16x16xf32>
    %971 = vector.shape_cast %970 : vector<1x16x16xf32> to vector<16x16xf32>
    %c12_260 = arith.constant 12 : index
    %972 = memref.load %arg6[%c12_260] : memref<144xf32, #tpu.memory_space<smem>>
    %973 = vector.broadcast %972 : f32 to vector<16x16xf32>
    %974 = arith.mulf %973, %971 : vector<16x16xf32>
    %975 = arith.addf %957, %974 : vector<16x16xf32>
    %c48_261 = arith.constant 48 : index
    %976 = memref.load %arg6[%c48_261] : memref<144xf32, #tpu.memory_space<smem>>
    %977 = vector.broadcast %976 : f32 to vector<16x16xf32>
    %978 = arith.mulf %977, %971 : vector<16x16xf32>
    %979 = arith.addf %961, %978 : vector<16x16xf32>
    %c84_262 = arith.constant 84 : index
    %980 = memref.load %arg6[%c84_262] : memref<144xf32, #tpu.memory_space<smem>>
    %981 = vector.broadcast %980 : f32 to vector<16x16xf32>
    %982 = arith.mulf %981, %971 : vector<16x16xf32>
    %983 = arith.addf %965, %982 : vector<16x16xf32>
    %c120_263 = arith.constant 120 : index
    %984 = memref.load %arg6[%c120_263] : memref<144xf32, #tpu.memory_space<smem>>
    %985 = vector.broadcast %984 : f32 to vector<16x16xf32>
    %986 = arith.mulf %985, %971 : vector<16x16xf32>
    %987 = arith.addf %969, %986 : vector<16x16xf32>
    %c2_264 = arith.constant 2 : index
    %c1_265 = arith.constant 1 : index
    %c0_266 = arith.constant 0 : index
    %988 = vector.load %arg9[%c2_264, %c1_265, %c0_266] : memref<4x18x18xf32, #tpu.memory_space<vmem>>, vector<1x16x16xf32>
    %989 = vector.shape_cast %988 : vector<1x16x16xf32> to vector<16x16xf32>
    %c21_267 = arith.constant 21 : index
    %990 = memref.load %arg6[%c21_267] : memref<144xf32, #tpu.memory_space<smem>>
    %991 = vector.broadcast %990 : f32 to vector<16x16xf32>
    %992 = arith.mulf %991, %989 : vector<16x16xf32>
    %993 = arith.addf %975, %992 : vector<16x16xf32>
    %c57_268 = arith.constant 57 : index
    %994 = memref.load %arg6[%c57_268] : memref<144xf32, #tpu.memory_space<smem>>
    %995 = vector.broadcast %994 : f32 to vector<16x16xf32>
    %996 = arith.mulf %995, %989 : vector<16x16xf32>
    %997 = arith.addf %979, %996 : vector<16x16xf32>
    %c93_269 = arith.constant 93 : index
    %998 = memref.load %arg6[%c93_269] : memref<144xf32, #tpu.memory_space<smem>>
    %999 = vector.broadcast %998 : f32 to vector<16x16xf32>
    %1000 = arith.mulf %999, %989 : vector<16x16xf32>
    %1001 = arith.addf %983, %1000 : vector<16x16xf32>
    %c129_270 = arith.constant 129 : index
    %1002 = memref.load %arg6[%c129_270] : memref<144xf32, #tpu.memory_space<smem>>
    %1003 = vector.broadcast %1002 : f32 to vector<16x16xf32>
    %1004 = arith.mulf %1003, %989 : vector<16x16xf32>
    %1005 = arith.addf %987, %1004 : vector<16x16xf32>
    %c3_271 = arith.constant 3 : index
    %c1_272 = arith.constant 1 : index
    %c0_273 = arith.constant 0 : index
    %1006 = vector.load %arg9[%c3_271, %c1_272, %c0_273] : memref<4x18x18xf32, #tpu.memory_space<vmem>>, vector<1x16x16xf32>
    %1007 = vector.shape_cast %1006 : vector<1x16x16xf32> to vector<16x16xf32>
    %c30_274 = arith.constant 30 : index
    %1008 = memref.load %arg6[%c30_274] : memref<144xf32, #tpu.memory_space<smem>>
    %1009 = vector.broadcast %1008 : f32 to vector<16x16xf32>
    %1010 = arith.mulf %1009, %1007 : vector<16x16xf32>
    %1011 = arith.addf %993, %1010 : vector<16x16xf32>
    %c66_275 = arith.constant 66 : index
    %1012 = memref.load %arg6[%c66_275] : memref<144xf32, #tpu.memory_space<smem>>
    %1013 = vector.broadcast %1012 : f32 to vector<16x16xf32>
    %1014 = arith.mulf %1013, %1007 : vector<16x16xf32>
    %1015 = arith.addf %997, %1014 : vector<16x16xf32>
    %c102_276 = arith.constant 102 : index
    %1016 = memref.load %arg6[%c102_276] : memref<144xf32, #tpu.memory_space<smem>>
    %1017 = vector.broadcast %1016 : f32 to vector<16x16xf32>
    %1018 = arith.mulf %1017, %1007 : vector<16x16xf32>
    %1019 = arith.addf %1001, %1018 : vector<16x16xf32>
    %c138_277 = arith.constant 138 : index
    %1020 = memref.load %arg6[%c138_277] : memref<144xf32, #tpu.memory_space<smem>>
    %1021 = vector.broadcast %1020 : f32 to vector<16x16xf32>
    %1022 = arith.mulf %1021, %1007 : vector<16x16xf32>
    %1023 = arith.addf %1005, %1022 : vector<16x16xf32>
    %c0_278 = arith.constant 0 : index
    %c1_279 = arith.constant 1 : index
    %c1_280 = arith.constant 1 : index
    %1024 = vector.load %arg9[%c0_278, %c1_279, %c1_280] : memref<4x18x18xf32, #tpu.memory_space<vmem>>, vector<1x16x16xf32>
    %1025 = vector.shape_cast %1024 : vector<1x16x16xf32> to vector<16x16xf32>
    %c4_281 = arith.constant 4 : index
    %1026 = memref.load %arg6[%c4_281] : memref<144xf32, #tpu.memory_space<smem>>
    %1027 = vector.broadcast %1026 : f32 to vector<16x16xf32>
    %1028 = arith.mulf %1027, %1025 : vector<16x16xf32>
    %1029 = arith.addf %1011, %1028 : vector<16x16xf32>
    %c40_282 = arith.constant 40 : index
    %1030 = memref.load %arg6[%c40_282] : memref<144xf32, #tpu.memory_space<smem>>
    %1031 = vector.broadcast %1030 : f32 to vector<16x16xf32>
    %1032 = arith.mulf %1031, %1025 : vector<16x16xf32>
    %1033 = arith.addf %1015, %1032 : vector<16x16xf32>
    %c76_283 = arith.constant 76 : index
    %1034 = memref.load %arg6[%c76_283] : memref<144xf32, #tpu.memory_space<smem>>
    %1035 = vector.broadcast %1034 : f32 to vector<16x16xf32>
    %1036 = arith.mulf %1035, %1025 : vector<16x16xf32>
    %1037 = arith.addf %1019, %1036 : vector<16x16xf32>
    %c112_284 = arith.constant 112 : index
    %1038 = memref.load %arg6[%c112_284] : memref<144xf32, #tpu.memory_space<smem>>
    %1039 = vector.broadcast %1038 : f32 to vector<16x16xf32>
    %1040 = arith.mulf %1039, %1025 : vector<16x16xf32>
    %1041 = arith.addf %1023, %1040 : vector<16x16xf32>
    %c1_285 = arith.constant 1 : index
    %c1_286 = arith.constant 1 : index
    %c1_287 = arith.constant 1 : index
    %1042 = vector.load %arg9[%c1_285, %c1_286, %c1_287] : memref<4x18x18xf32, #tpu.memory_space<vmem>>, vector<1x16x16xf32>
    %1043 = vector.shape_cast %1042 : vector<1x16x16xf32> to vector<16x16xf32>
    %c13_288 = arith.constant 13 : index
    %1044 = memref.load %arg6[%c13_288] : memref<144xf32, #tpu.memory_space<smem>>
    %1045 = vector.broadcast %1044 : f32 to vector<16x16xf32>
    %1046 = arith.mulf %1045, %1043 : vector<16x16xf32>
    %1047 = arith.addf %1029, %1046 : vector<16x16xf32>
    %c49_289 = arith.constant 49 : index
    %1048 = memref.load %arg6[%c49_289] : memref<144xf32, #tpu.memory_space<smem>>
    %1049 = vector.broadcast %1048 : f32 to vector<16x16xf32>
    %1050 = arith.mulf %1049, %1043 : vector<16x16xf32>
    %1051 = arith.addf %1033, %1050 : vector<16x16xf32>
    %c85_290 = arith.constant 85 : index
    %1052 = memref.load %arg6[%c85_290] : memref<144xf32, #tpu.memory_space<smem>>
    %1053 = vector.broadcast %1052 : f32 to vector<16x16xf32>
    %1054 = arith.mulf %1053, %1043 : vector<16x16xf32>
    %1055 = arith.addf %1037, %1054 : vector<16x16xf32>
    %c121_291 = arith.constant 121 : index
    %1056 = memref.load %arg6[%c121_291] : memref<144xf32, #tpu.memory_space<smem>>
    %1057 = vector.broadcast %1056 : f32 to vector<16x16xf32>
    %1058 = arith.mulf %1057, %1043 : vector<16x16xf32>
    %1059 = arith.addf %1041, %1058 : vector<16x16xf32>
    %c2_292 = arith.constant 2 : index
    %c1_293 = arith.constant 1 : index
    %c1_294 = arith.constant 1 : index
    %1060 = vector.load %arg9[%c2_292, %c1_293, %c1_294] : memref<4x18x18xf32, #tpu.memory_space<vmem>>, vector<1x16x16xf32>
    %1061 = vector.shape_cast %1060 : vector<1x16x16xf32> to vector<16x16xf32>
    %c22_295 = arith.constant 22 : index
    %1062 = memref.load %arg6[%c22_295] : memref<144xf32, #tpu.memory_space<smem>>
    %1063 = vector.broadcast %1062 : f32 to vector<16x16xf32>
    %1064 = arith.mulf %1063, %1061 : vector<16x16xf32>
    %1065 = arith.addf %1047, %1064 : vector<16x16xf32>
    %c58_296 = arith.constant 58 : index
    %1066 = memref.load %arg6[%c58_296] : memref<144xf32, #tpu.memory_space<smem>>
    %1067 = vector.broadcast %1066 : f32 to vector<16x16xf32>
    %1068 = arith.mulf %1067, %1061 : vector<16x16xf32>
    %1069 = arith.addf %1051, %1068 : vector<16x16xf32>
    %c94_297 = arith.constant 94 : index
    %1070 = memref.load %arg6[%c94_297] : memref<144xf32, #tpu.memory_space<smem>>
    %1071 = vector.broadcast %1070 : f32 to vector<16x16xf32>
    %1072 = arith.mulf %1071, %1061 : vector<16x16xf32>
    %1073 = arith.addf %1055, %1072 : vector<16x16xf32>
    %c130_298 = arith.constant 130 : index
    %1074 = memref.load %arg6[%c130_298] : memref<144xf32, #tpu.memory_space<smem>>
    %1075 = vector.broadcast %1074 : f32 to vector<16x16xf32>
    %1076 = arith.mulf %1075, %1061 : vector<16x16xf32>
    %1077 = arith.addf %1059, %1076 : vector<16x16xf32>
    %c3_299 = arith.constant 3 : index
    %c1_300 = arith.constant 1 : index
    %c1_301 = arith.constant 1 : index
    %1078 = vector.load %arg9[%c3_299, %c1_300, %c1_301] : memref<4x18x18xf32, #tpu.memory_space<vmem>>, vector<1x16x16xf32>
    %1079 = vector.shape_cast %1078 : vector<1x16x16xf32> to vector<16x16xf32>
    %c31_302 = arith.constant 31 : index
    %1080 = memref.load %arg6[%c31_302] : memref<144xf32, #tpu.memory_space<smem>>
    %1081 = vector.broadcast %1080 : f32 to vector<16x16xf32>
    %1082 = arith.mulf %1081, %1079 : vector<16x16xf32>
    %1083 = arith.addf %1065, %1082 : vector<16x16xf32>
    %c67_303 = arith.constant 67 : index
    %1084 = memref.load %arg6[%c67_303] : memref<144xf32, #tpu.memory_space<smem>>
    %1085 = vector.broadcast %1084 : f32 to vector<16x16xf32>
    %1086 = arith.mulf %1085, %1079 : vector<16x16xf32>
    %1087 = arith.addf %1069, %1086 : vector<16x16xf32>
    %c103_304 = arith.constant 103 : index
    %1088 = memref.load %arg6[%c103_304] : memref<144xf32, #tpu.memory_space<smem>>
    %1089 = vector.broadcast %1088 : f32 to vector<16x16xf32>
    %1090 = arith.mulf %1089, %1079 : vector<16x16xf32>
    %1091 = arith.addf %1073, %1090 : vector<16x16xf32>
    %c139_305 = arith.constant 139 : index
    %1092 = memref.load %arg6[%c139_305] : memref<144xf32, #tpu.memory_space<smem>>
    %1093 = vector.broadcast %1092 : f32 to vector<16x16xf32>
    %1094 = arith.mulf %1093, %1079 : vector<16x16xf32>
    %1095 = arith.addf %1077, %1094 : vector<16x16xf32>
    %c0_306 = arith.constant 0 : index
    %c1_307 = arith.constant 1 : index
    %c2_308 = arith.constant 2 : index
    %1096 = vector.load %arg9[%c0_306, %c1_307, %c2_308] : memref<4x18x18xf32, #tpu.memory_space<vmem>>, vector<1x16x16xf32>
    %1097 = vector.shape_cast %1096 : vector<1x16x16xf32> to vector<16x16xf32>
    %c5_309 = arith.constant 5 : index
    %1098 = memref.load %arg6[%c5_309] : memref<144xf32, #tpu.memory_space<smem>>
    %1099 = vector.broadcast %1098 : f32 to vector<16x16xf32>
    %1100 = arith.mulf %1099, %1097 : vector<16x16xf32>
    %1101 = arith.addf %1083, %1100 : vector<16x16xf32>
    %c41_310 = arith.constant 41 : index
    %1102 = memref.load %arg6[%c41_310] : memref<144xf32, #tpu.memory_space<smem>>
    %1103 = vector.broadcast %1102 : f32 to vector<16x16xf32>
    %1104 = arith.mulf %1103, %1097 : vector<16x16xf32>
    %1105 = arith.addf %1087, %1104 : vector<16x16xf32>
    %c77_311 = arith.constant 77 : index
    %1106 = memref.load %arg6[%c77_311] : memref<144xf32, #tpu.memory_space<smem>>
    %1107 = vector.broadcast %1106 : f32 to vector<16x16xf32>
    %1108 = arith.mulf %1107, %1097 : vector<16x16xf32>
    %1109 = arith.addf %1091, %1108 : vector<16x16xf32>
    %c113_312 = arith.constant 113 : index
    %1110 = memref.load %arg6[%c113_312] : memref<144xf32, #tpu.memory_space<smem>>
    %1111 = vector.broadcast %1110 : f32 to vector<16x16xf32>
    %1112 = arith.mulf %1111, %1097 : vector<16x16xf32>
    %1113 = arith.addf %1095, %1112 : vector<16x16xf32>
    %c1_313 = arith.constant 1 : index
    %c1_314 = arith.constant 1 : index
    %c2_315 = arith.constant 2 : index
    %1114 = vector.load %arg9[%c1_313, %c1_314, %c2_315] : memref<4x18x18xf32, #tpu.memory_space<vmem>>, vector<1x16x16xf32>
    %1115 = vector.shape_cast %1114 : vector<1x16x16xf32> to vector<16x16xf32>
    %c14_316 = arith.constant 14 : index
    %1116 = memref.load %arg6[%c14_316] : memref<144xf32, #tpu.memory_space<smem>>
    %1117 = vector.broadcast %1116 : f32 to vector<16x16xf32>
    %1118 = arith.mulf %1117, %1115 : vector<16x16xf32>
    %1119 = arith.addf %1101, %1118 : vector<16x16xf32>
    %c50_317 = arith.constant 50 : index
    %1120 = memref.load %arg6[%c50_317] : memref<144xf32, #tpu.memory_space<smem>>
    %1121 = vector.broadcast %1120 : f32 to vector<16x16xf32>
    %1122 = arith.mulf %1121, %1115 : vector<16x16xf32>
    %1123 = arith.addf %1105, %1122 : vector<16x16xf32>
    %c86_318 = arith.constant 86 : index
    %1124 = memref.load %arg6[%c86_318] : memref<144xf32, #tpu.memory_space<smem>>
    %1125 = vector.broadcast %1124 : f32 to vector<16x16xf32>
    %1126 = arith.mulf %1125, %1115 : vector<16x16xf32>
    %1127 = arith.addf %1109, %1126 : vector<16x16xf32>
    %c122_319 = arith.constant 122 : index
    %1128 = memref.load %arg6[%c122_319] : memref<144xf32, #tpu.memory_space<smem>>
    %1129 = vector.broadcast %1128 : f32 to vector<16x16xf32>
    %1130 = arith.mulf %1129, %1115 : vector<16x16xf32>
    %1131 = arith.addf %1113, %1130 : vector<16x16xf32>
    %c2_320 = arith.constant 2 : index
    %c1_321 = arith.constant 1 : index
    %c2_322 = arith.constant 2 : index
    %1132 = vector.load %arg9[%c2_320, %c1_321, %c2_322] : memref<4x18x18xf32, #tpu.memory_space<vmem>>, vector<1x16x16xf32>
    %1133 = vector.shape_cast %1132 : vector<1x16x16xf32> to vector<16x16xf32>
    %c23_323 = arith.constant 23 : index
    %1134 = memref.load %arg6[%c23_323] : memref<144xf32, #tpu.memory_space<smem>>
    %1135 = vector.broadcast %1134 : f32 to vector<16x16xf32>
    %1136 = arith.mulf %1135, %1133 : vector<16x16xf32>
    %1137 = arith.addf %1119, %1136 : vector<16x16xf32>
    %c59_324 = arith.constant 59 : index
    %1138 = memref.load %arg6[%c59_324] : memref<144xf32, #tpu.memory_space<smem>>
    %1139 = vector.broadcast %1138 : f32 to vector<16x16xf32>
    %1140 = arith.mulf %1139, %1133 : vector<16x16xf32>
    %1141 = arith.addf %1123, %1140 : vector<16x16xf32>
    %c95_325 = arith.constant 95 : index
    %1142 = memref.load %arg6[%c95_325] : memref<144xf32, #tpu.memory_space<smem>>
    %1143 = vector.broadcast %1142 : f32 to vector<16x16xf32>
    %1144 = arith.mulf %1143, %1133 : vector<16x16xf32>
    %1145 = arith.addf %1127, %1144 : vector<16x16xf32>
    %c131_326 = arith.constant 131 : index
    %1146 = memref.load %arg6[%c131_326] : memref<144xf32, #tpu.memory_space<smem>>
    %1147 = vector.broadcast %1146 : f32 to vector<16x16xf32>
    %1148 = arith.mulf %1147, %1133 : vector<16x16xf32>
    %1149 = arith.addf %1131, %1148 : vector<16x16xf32>
    %c3_327 = arith.constant 3 : index
    %c1_328 = arith.constant 1 : index
    %c2_329 = arith.constant 2 : index
    %1150 = vector.load %arg9[%c3_327, %c1_328, %c2_329] : memref<4x18x18xf32, #tpu.memory_space<vmem>>, vector<1x16x16xf32>
    %1151 = vector.shape_cast %1150 : vector<1x16x16xf32> to vector<16x16xf32>
    %c32_330 = arith.constant 32 : index
    %1152 = memref.load %arg6[%c32_330] : memref<144xf32, #tpu.memory_space<smem>>
    %1153 = vector.broadcast %1152 : f32 to vector<16x16xf32>
    %1154 = arith.mulf %1153, %1151 : vector<16x16xf32>
    %1155 = arith.addf %1137, %1154 : vector<16x16xf32>
    %c68_331 = arith.constant 68 : index
    %1156 = memref.load %arg6[%c68_331] : memref<144xf32, #tpu.memory_space<smem>>
    %1157 = vector.broadcast %1156 : f32 to vector<16x16xf32>
    %1158 = arith.mulf %1157, %1151 : vector<16x16xf32>
    %1159 = arith.addf %1141, %1158 : vector<16x16xf32>
    %c104_332 = arith.constant 104 : index
    %1160 = memref.load %arg6[%c104_332] : memref<144xf32, #tpu.memory_space<smem>>
    %1161 = vector.broadcast %1160 : f32 to vector<16x16xf32>
    %1162 = arith.mulf %1161, %1151 : vector<16x16xf32>
    %1163 = arith.addf %1145, %1162 : vector<16x16xf32>
    %c140_333 = arith.constant 140 : index
    %1164 = memref.load %arg6[%c140_333] : memref<144xf32, #tpu.memory_space<smem>>
    %1165 = vector.broadcast %1164 : f32 to vector<16x16xf32>
    %1166 = arith.mulf %1165, %1151 : vector<16x16xf32>
    %1167 = arith.addf %1149, %1166 : vector<16x16xf32>
    %c0_334 = arith.constant 0 : index
    %c2_335 = arith.constant 2 : index
    %c0_336 = arith.constant 0 : index
    %1168 = vector.load %arg9[%c0_334, %c2_335, %c0_336] : memref<4x18x18xf32, #tpu.memory_space<vmem>>, vector<1x16x16xf32>
    %1169 = vector.shape_cast %1168 : vector<1x16x16xf32> to vector<16x16xf32>
    %c6_337 = arith.constant 6 : index
    %1170 = memref.load %arg6[%c6_337] : memref<144xf32, #tpu.memory_space<smem>>
    %1171 = vector.broadcast %1170 : f32 to vector<16x16xf32>
    %1172 = arith.mulf %1171, %1169 : vector<16x16xf32>
    %1173 = arith.addf %1155, %1172 : vector<16x16xf32>
    %c42_338 = arith.constant 42 : index
    %1174 = memref.load %arg6[%c42_338] : memref<144xf32, #tpu.memory_space<smem>>
    %1175 = vector.broadcast %1174 : f32 to vector<16x16xf32>
    %1176 = arith.mulf %1175, %1169 : vector<16x16xf32>
    %1177 = arith.addf %1159, %1176 : vector<16x16xf32>
    %c78_339 = arith.constant 78 : index
    %1178 = memref.load %arg6[%c78_339] : memref<144xf32, #tpu.memory_space<smem>>
    %1179 = vector.broadcast %1178 : f32 to vector<16x16xf32>
    %1180 = arith.mulf %1179, %1169 : vector<16x16xf32>
    %1181 = arith.addf %1163, %1180 : vector<16x16xf32>
    %c114_340 = arith.constant 114 : index
    %1182 = memref.load %arg6[%c114_340] : memref<144xf32, #tpu.memory_space<smem>>
    %1183 = vector.broadcast %1182 : f32 to vector<16x16xf32>
    %1184 = arith.mulf %1183, %1169 : vector<16x16xf32>
    %1185 = arith.addf %1167, %1184 : vector<16x16xf32>
    %c1_341 = arith.constant 1 : index
    %c2_342 = arith.constant 2 : index
    %c0_343 = arith.constant 0 : index
    %1186 = vector.load %arg9[%c1_341, %c2_342, %c0_343] : memref<4x18x18xf32, #tpu.memory_space<vmem>>, vector<1x16x16xf32>
    %1187 = vector.shape_cast %1186 : vector<1x16x16xf32> to vector<16x16xf32>
    %c15_344 = arith.constant 15 : index
    %1188 = memref.load %arg6[%c15_344] : memref<144xf32, #tpu.memory_space<smem>>
    %1189 = vector.broadcast %1188 : f32 to vector<16x16xf32>
    %1190 = arith.mulf %1189, %1187 : vector<16x16xf32>
    %1191 = arith.addf %1173, %1190 : vector<16x16xf32>
    %c51_345 = arith.constant 51 : index
    %1192 = memref.load %arg6[%c51_345] : memref<144xf32, #tpu.memory_space<smem>>
    %1193 = vector.broadcast %1192 : f32 to vector<16x16xf32>
    %1194 = arith.mulf %1193, %1187 : vector<16x16xf32>
    %1195 = arith.addf %1177, %1194 : vector<16x16xf32>
    %c87_346 = arith.constant 87 : index
    %1196 = memref.load %arg6[%c87_346] : memref<144xf32, #tpu.memory_space<smem>>
    %1197 = vector.broadcast %1196 : f32 to vector<16x16xf32>
    %1198 = arith.mulf %1197, %1187 : vector<16x16xf32>
    %1199 = arith.addf %1181, %1198 : vector<16x16xf32>
    %c123_347 = arith.constant 123 : index
    %1200 = memref.load %arg6[%c123_347] : memref<144xf32, #tpu.memory_space<smem>>
    %1201 = vector.broadcast %1200 : f32 to vector<16x16xf32>
    %1202 = arith.mulf %1201, %1187 : vector<16x16xf32>
    %1203 = arith.addf %1185, %1202 : vector<16x16xf32>
    %c2_348 = arith.constant 2 : index
    %c2_349 = arith.constant 2 : index
    %c0_350 = arith.constant 0 : index
    %1204 = vector.load %arg9[%c2_348, %c2_349, %c0_350] : memref<4x18x18xf32, #tpu.memory_space<vmem>>, vector<1x16x16xf32>
    %1205 = vector.shape_cast %1204 : vector<1x16x16xf32> to vector<16x16xf32>
    %c24_351 = arith.constant 24 : index
    %1206 = memref.load %arg6[%c24_351] : memref<144xf32, #tpu.memory_space<smem>>
    %1207 = vector.broadcast %1206 : f32 to vector<16x16xf32>
    %1208 = arith.mulf %1207, %1205 : vector<16x16xf32>
    %1209 = arith.addf %1191, %1208 : vector<16x16xf32>
    %c60_352 = arith.constant 60 : index
    %1210 = memref.load %arg6[%c60_352] : memref<144xf32, #tpu.memory_space<smem>>
    %1211 = vector.broadcast %1210 : f32 to vector<16x16xf32>
    %1212 = arith.mulf %1211, %1205 : vector<16x16xf32>
    %1213 = arith.addf %1195, %1212 : vector<16x16xf32>
    %c96_353 = arith.constant 96 : index
    %1214 = memref.load %arg6[%c96_353] : memref<144xf32, #tpu.memory_space<smem>>
    %1215 = vector.broadcast %1214 : f32 to vector<16x16xf32>
    %1216 = arith.mulf %1215, %1205 : vector<16x16xf32>
    %1217 = arith.addf %1199, %1216 : vector<16x16xf32>
    %c132_354 = arith.constant 132 : index
    %1218 = memref.load %arg6[%c132_354] : memref<144xf32, #tpu.memory_space<smem>>
    %1219 = vector.broadcast %1218 : f32 to vector<16x16xf32>
    %1220 = arith.mulf %1219, %1205 : vector<16x16xf32>
    %1221 = arith.addf %1203, %1220 : vector<16x16xf32>
    %c3_355 = arith.constant 3 : index
    %c2_356 = arith.constant 2 : index
    %c0_357 = arith.constant 0 : index
    %1222 = vector.load %arg9[%c3_355, %c2_356, %c0_357] : memref<4x18x18xf32, #tpu.memory_space<vmem>>, vector<1x16x16xf32>
    %1223 = vector.shape_cast %1222 : vector<1x16x16xf32> to vector<16x16xf32>
    %c33_358 = arith.constant 33 : index
    %1224 = memref.load %arg6[%c33_358] : memref<144xf32, #tpu.memory_space<smem>>
    %1225 = vector.broadcast %1224 : f32 to vector<16x16xf32>
    %1226 = arith.mulf %1225, %1223 : vector<16x16xf32>
    %1227 = arith.addf %1209, %1226 : vector<16x16xf32>
    %c69_359 = arith.constant 69 : index
    %1228 = memref.load %arg6[%c69_359] : memref<144xf32, #tpu.memory_space<smem>>
    %1229 = vector.broadcast %1228 : f32 to vector<16x16xf32>
    %1230 = arith.mulf %1229, %1223 : vector<16x16xf32>
    %1231 = arith.addf %1213, %1230 : vector<16x16xf32>
    %c105_360 = arith.constant 105 : index
    %1232 = memref.load %arg6[%c105_360] : memref<144xf32, #tpu.memory_space<smem>>
    %1233 = vector.broadcast %1232 : f32 to vector<16x16xf32>
    %1234 = arith.mulf %1233, %1223 : vector<16x16xf32>
    %1235 = arith.addf %1217, %1234 : vector<16x16xf32>
    %c141_361 = arith.constant 141 : index
    %1236 = memref.load %arg6[%c141_361] : memref<144xf32, #tpu.memory_space<smem>>
    %1237 = vector.broadcast %1236 : f32 to vector<16x16xf32>
    %1238 = arith.mulf %1237, %1223 : vector<16x16xf32>
    %1239 = arith.addf %1221, %1238 : vector<16x16xf32>
    %c0_362 = arith.constant 0 : index
    %c2_363 = arith.constant 2 : index
    %c1_364 = arith.constant 1 : index
    %1240 = vector.load %arg9[%c0_362, %c2_363, %c1_364] : memref<4x18x18xf32, #tpu.memory_space<vmem>>, vector<1x16x16xf32>
    %1241 = vector.shape_cast %1240 : vector<1x16x16xf32> to vector<16x16xf32>
    %c7_365 = arith.constant 7 : index
    %1242 = memref.load %arg6[%c7_365] : memref<144xf32, #tpu.memory_space<smem>>
    %1243 = vector.broadcast %1242 : f32 to vector<16x16xf32>
    %1244 = arith.mulf %1243, %1241 : vector<16x16xf32>
    %1245 = arith.addf %1227, %1244 : vector<16x16xf32>
    %c43_366 = arith.constant 43 : index
    %1246 = memref.load %arg6[%c43_366] : memref<144xf32, #tpu.memory_space<smem>>
    %1247 = vector.broadcast %1246 : f32 to vector<16x16xf32>
    %1248 = arith.mulf %1247, %1241 : vector<16x16xf32>
    %1249 = arith.addf %1231, %1248 : vector<16x16xf32>
    %c79_367 = arith.constant 79 : index
    %1250 = memref.load %arg6[%c79_367] : memref<144xf32, #tpu.memory_space<smem>>
    %1251 = vector.broadcast %1250 : f32 to vector<16x16xf32>
    %1252 = arith.mulf %1251, %1241 : vector<16x16xf32>
    %1253 = arith.addf %1235, %1252 : vector<16x16xf32>
    %c115_368 = arith.constant 115 : index
    %1254 = memref.load %arg6[%c115_368] : memref<144xf32, #tpu.memory_space<smem>>
    %1255 = vector.broadcast %1254 : f32 to vector<16x16xf32>
    %1256 = arith.mulf %1255, %1241 : vector<16x16xf32>
    %1257 = arith.addf %1239, %1256 : vector<16x16xf32>
    %c1_369 = arith.constant 1 : index
    %c2_370 = arith.constant 2 : index
    %c1_371 = arith.constant 1 : index
    %1258 = vector.load %arg9[%c1_369, %c2_370, %c1_371] : memref<4x18x18xf32, #tpu.memory_space<vmem>>, vector<1x16x16xf32>
    %1259 = vector.shape_cast %1258 : vector<1x16x16xf32> to vector<16x16xf32>
    %c16_372 = arith.constant 16 : index
    %1260 = memref.load %arg6[%c16_372] : memref<144xf32, #tpu.memory_space<smem>>
    %1261 = vector.broadcast %1260 : f32 to vector<16x16xf32>
    %1262 = arith.mulf %1261, %1259 : vector<16x16xf32>
    %1263 = arith.addf %1245, %1262 : vector<16x16xf32>
    %c52_373 = arith.constant 52 : index
    %1264 = memref.load %arg6[%c52_373] : memref<144xf32, #tpu.memory_space<smem>>
    %1265 = vector.broadcast %1264 : f32 to vector<16x16xf32>
    %1266 = arith.mulf %1265, %1259 : vector<16x16xf32>
    %1267 = arith.addf %1249, %1266 : vector<16x16xf32>
    %c88_374 = arith.constant 88 : index
    %1268 = memref.load %arg6[%c88_374] : memref<144xf32, #tpu.memory_space<smem>>
    %1269 = vector.broadcast %1268 : f32 to vector<16x16xf32>
    %1270 = arith.mulf %1269, %1259 : vector<16x16xf32>
    %1271 = arith.addf %1253, %1270 : vector<16x16xf32>
    %c124_375 = arith.constant 124 : index
    %1272 = memref.load %arg6[%c124_375] : memref<144xf32, #tpu.memory_space<smem>>
    %1273 = vector.broadcast %1272 : f32 to vector<16x16xf32>
    %1274 = arith.mulf %1273, %1259 : vector<16x16xf32>
    %1275 = arith.addf %1257, %1274 : vector<16x16xf32>
    %c2_376 = arith.constant 2 : index
    %c2_377 = arith.constant 2 : index
    %c1_378 = arith.constant 1 : index
    %1276 = vector.load %arg9[%c2_376, %c2_377, %c1_378] : memref<4x18x18xf32, #tpu.memory_space<vmem>>, vector<1x16x16xf32>
    %1277 = vector.shape_cast %1276 : vector<1x16x16xf32> to vector<16x16xf32>
    %c25_379 = arith.constant 25 : index
    %1278 = memref.load %arg6[%c25_379] : memref<144xf32, #tpu.memory_space<smem>>
    %1279 = vector.broadcast %1278 : f32 to vector<16x16xf32>
    %1280 = arith.mulf %1279, %1277 : vector<16x16xf32>
    %1281 = arith.addf %1263, %1280 : vector<16x16xf32>
    %c61_380 = arith.constant 61 : index
    %1282 = memref.load %arg6[%c61_380] : memref<144xf32, #tpu.memory_space<smem>>
    %1283 = vector.broadcast %1282 : f32 to vector<16x16xf32>
    %1284 = arith.mulf %1283, %1277 : vector<16x16xf32>
    %1285 = arith.addf %1267, %1284 : vector<16x16xf32>
    %c97_381 = arith.constant 97 : index
    %1286 = memref.load %arg6[%c97_381] : memref<144xf32, #tpu.memory_space<smem>>
    %1287 = vector.broadcast %1286 : f32 to vector<16x16xf32>
    %1288 = arith.mulf %1287, %1277 : vector<16x16xf32>
    %1289 = arith.addf %1271, %1288 : vector<16x16xf32>
    %c133_382 = arith.constant 133 : index
    %1290 = memref.load %arg6[%c133_382] : memref<144xf32, #tpu.memory_space<smem>>
    %1291 = vector.broadcast %1290 : f32 to vector<16x16xf32>
    %1292 = arith.mulf %1291, %1277 : vector<16x16xf32>
    %1293 = arith.addf %1275, %1292 : vector<16x16xf32>
    %c3_383 = arith.constant 3 : index
    %c2_384 = arith.constant 2 : index
    %c1_385 = arith.constant 1 : index
    %1294 = vector.load %arg9[%c3_383, %c2_384, %c1_385] : memref<4x18x18xf32, #tpu.memory_space<vmem>>, vector<1x16x16xf32>
    %1295 = vector.shape_cast %1294 : vector<1x16x16xf32> to vector<16x16xf32>
    %c34_386 = arith.constant 34 : index
    %1296 = memref.load %arg6[%c34_386] : memref<144xf32, #tpu.memory_space<smem>>
    %1297 = vector.broadcast %1296 : f32 to vector<16x16xf32>
    %1298 = arith.mulf %1297, %1295 : vector<16x16xf32>
    %1299 = arith.addf %1281, %1298 : vector<16x16xf32>
    %c70_387 = arith.constant 70 : index
    %1300 = memref.load %arg6[%c70_387] : memref<144xf32, #tpu.memory_space<smem>>
    %1301 = vector.broadcast %1300 : f32 to vector<16x16xf32>
    %1302 = arith.mulf %1301, %1295 : vector<16x16xf32>
    %1303 = arith.addf %1285, %1302 : vector<16x16xf32>
    %c106_388 = arith.constant 106 : index
    %1304 = memref.load %arg6[%c106_388] : memref<144xf32, #tpu.memory_space<smem>>
    %1305 = vector.broadcast %1304 : f32 to vector<16x16xf32>
    %1306 = arith.mulf %1305, %1295 : vector<16x16xf32>
    %1307 = arith.addf %1289, %1306 : vector<16x16xf32>
    %c142_389 = arith.constant 142 : index
    %1308 = memref.load %arg6[%c142_389] : memref<144xf32, #tpu.memory_space<smem>>
    %1309 = vector.broadcast %1308 : f32 to vector<16x16xf32>
    %1310 = arith.mulf %1309, %1295 : vector<16x16xf32>
    %1311 = arith.addf %1293, %1310 : vector<16x16xf32>
    %c0_390 = arith.constant 0 : index
    %c2_391 = arith.constant 2 : index
    %c2_392 = arith.constant 2 : index
    %1312 = vector.load %arg9[%c0_390, %c2_391, %c2_392] : memref<4x18x18xf32, #tpu.memory_space<vmem>>, vector<1x16x16xf32>
    %1313 = vector.shape_cast %1312 : vector<1x16x16xf32> to vector<16x16xf32>
    %c8_393 = arith.constant 8 : index
    %1314 = memref.load %arg6[%c8_393] : memref<144xf32, #tpu.memory_space<smem>>
    %1315 = vector.broadcast %1314 : f32 to vector<16x16xf32>
    %1316 = arith.mulf %1315, %1313 : vector<16x16xf32>
    %1317 = arith.addf %1299, %1316 : vector<16x16xf32>
    %c44_394 = arith.constant 44 : index
    %1318 = memref.load %arg6[%c44_394] : memref<144xf32, #tpu.memory_space<smem>>
    %1319 = vector.broadcast %1318 : f32 to vector<16x16xf32>
    %1320 = arith.mulf %1319, %1313 : vector<16x16xf32>
    %1321 = arith.addf %1303, %1320 : vector<16x16xf32>
    %c80_395 = arith.constant 80 : index
    %1322 = memref.load %arg6[%c80_395] : memref<144xf32, #tpu.memory_space<smem>>
    %1323 = vector.broadcast %1322 : f32 to vector<16x16xf32>
    %1324 = arith.mulf %1323, %1313 : vector<16x16xf32>
    %1325 = arith.addf %1307, %1324 : vector<16x16xf32>
    %c116_396 = arith.constant 116 : index
    %1326 = memref.load %arg6[%c116_396] : memref<144xf32, #tpu.memory_space<smem>>
    %1327 = vector.broadcast %1326 : f32 to vector<16x16xf32>
    %1328 = arith.mulf %1327, %1313 : vector<16x16xf32>
    %1329 = arith.addf %1311, %1328 : vector<16x16xf32>
    %c1_397 = arith.constant 1 : index
    %c2_398 = arith.constant 2 : index
    %c2_399 = arith.constant 2 : index
    %1330 = vector.load %arg9[%c1_397, %c2_398, %c2_399] : memref<4x18x18xf32, #tpu.memory_space<vmem>>, vector<1x16x16xf32>
    %1331 = vector.shape_cast %1330 : vector<1x16x16xf32> to vector<16x16xf32>
    %c17_400 = arith.constant 17 : index
    %1332 = memref.load %arg6[%c17_400] : memref<144xf32, #tpu.memory_space<smem>>
    %1333 = vector.broadcast %1332 : f32 to vector<16x16xf32>
    %1334 = arith.mulf %1333, %1331 : vector<16x16xf32>
    %1335 = arith.addf %1317, %1334 : vector<16x16xf32>
    %c53_401 = arith.constant 53 : index
    %1336 = memref.load %arg6[%c53_401] : memref<144xf32, #tpu.memory_space<smem>>
    %1337 = vector.broadcast %1336 : f32 to vector<16x16xf32>
    %1338 = arith.mulf %1337, %1331 : vector<16x16xf32>
    %1339 = arith.addf %1321, %1338 : vector<16x16xf32>
    %c89_402 = arith.constant 89 : index
    %1340 = memref.load %arg6[%c89_402] : memref<144xf32, #tpu.memory_space<smem>>
    %1341 = vector.broadcast %1340 : f32 to vector<16x16xf32>
    %1342 = arith.mulf %1341, %1331 : vector<16x16xf32>
    %1343 = arith.addf %1325, %1342 : vector<16x16xf32>
    %c125_403 = arith.constant 125 : index
    %1344 = memref.load %arg6[%c125_403] : memref<144xf32, #tpu.memory_space<smem>>
    %1345 = vector.broadcast %1344 : f32 to vector<16x16xf32>
    %1346 = arith.mulf %1345, %1331 : vector<16x16xf32>
    %1347 = arith.addf %1329, %1346 : vector<16x16xf32>
    %c2_404 = arith.constant 2 : index
    %c2_405 = arith.constant 2 : index
    %c2_406 = arith.constant 2 : index
    %1348 = vector.load %arg9[%c2_404, %c2_405, %c2_406] : memref<4x18x18xf32, #tpu.memory_space<vmem>>, vector<1x16x16xf32>
    %1349 = vector.shape_cast %1348 : vector<1x16x16xf32> to vector<16x16xf32>
    %c26_407 = arith.constant 26 : index
    %1350 = memref.load %arg6[%c26_407] : memref<144xf32, #tpu.memory_space<smem>>
    %1351 = vector.broadcast %1350 : f32 to vector<16x16xf32>
    %1352 = arith.mulf %1351, %1349 : vector<16x16xf32>
    %1353 = arith.addf %1335, %1352 : vector<16x16xf32>
    %c62_408 = arith.constant 62 : index
    %1354 = memref.load %arg6[%c62_408] : memref<144xf32, #tpu.memory_space<smem>>
    %1355 = vector.broadcast %1354 : f32 to vector<16x16xf32>
    %1356 = arith.mulf %1355, %1349 : vector<16x16xf32>
    %1357 = arith.addf %1339, %1356 : vector<16x16xf32>
    %c98_409 = arith.constant 98 : index
    %1358 = memref.load %arg6[%c98_409] : memref<144xf32, #tpu.memory_space<smem>>
    %1359 = vector.broadcast %1358 : f32 to vector<16x16xf32>
    %1360 = arith.mulf %1359, %1349 : vector<16x16xf32>
    %1361 = arith.addf %1343, %1360 : vector<16x16xf32>
    %c134_410 = arith.constant 134 : index
    %1362 = memref.load %arg6[%c134_410] : memref<144xf32, #tpu.memory_space<smem>>
    %1363 = vector.broadcast %1362 : f32 to vector<16x16xf32>
    %1364 = arith.mulf %1363, %1349 : vector<16x16xf32>
    %1365 = arith.addf %1347, %1364 : vector<16x16xf32>
    %c3_411 = arith.constant 3 : index
    %c2_412 = arith.constant 2 : index
    %c2_413 = arith.constant 2 : index
    %1366 = vector.load %arg9[%c3_411, %c2_412, %c2_413] : memref<4x18x18xf32, #tpu.memory_space<vmem>>, vector<1x16x16xf32>
    %1367 = vector.shape_cast %1366 : vector<1x16x16xf32> to vector<16x16xf32>
    %c35_414 = arith.constant 35 : index
    %1368 = memref.load %arg6[%c35_414] : memref<144xf32, #tpu.memory_space<smem>>
    %1369 = vector.broadcast %1368 : f32 to vector<16x16xf32>
    %1370 = arith.mulf %1369, %1367 : vector<16x16xf32>
    %1371 = arith.addf %1353, %1370 : vector<16x16xf32>
    %c71_415 = arith.constant 71 : index
    %1372 = memref.load %arg6[%c71_415] : memref<144xf32, #tpu.memory_space<smem>>
    %1373 = vector.broadcast %1372 : f32 to vector<16x16xf32>
    %1374 = arith.mulf %1373, %1367 : vector<16x16xf32>
    %1375 = arith.addf %1357, %1374 : vector<16x16xf32>
    %c107_416 = arith.constant 107 : index
    %1376 = memref.load %arg6[%c107_416] : memref<144xf32, #tpu.memory_space<smem>>
    %1377 = vector.broadcast %1376 : f32 to vector<16x16xf32>
    %1378 = arith.mulf %1377, %1367 : vector<16x16xf32>
    %1379 = arith.addf %1361, %1378 : vector<16x16xf32>
    %c143_417 = arith.constant 143 : index
    %1380 = memref.load %arg6[%c143_417] : memref<144xf32, #tpu.memory_space<smem>>
    %1381 = vector.broadcast %1380 : f32 to vector<16x16xf32>
    %1382 = arith.mulf %1381, %1367 : vector<16x16xf32>
    %1383 = arith.addf %1365, %1382 : vector<16x16xf32>
    %1384 = vector.extract_strided_slice %1 {offsets = [0, 0, 0], sizes = [1, 16, 16], strides = [1, 1, 1]} : vector<4x16x16xf32> to vector<1x16x16xf32>
    %1385 = vector.shape_cast %1384 : vector<1x16x16xf32> to vector<16x16xf32>
    %1386 = arith.addf %1371, %1385 : vector<16x16xf32>
    %cst_418 = arith.constant 0.000000e+00 : f32
    %1387 = vector.broadcast %cst_418 : f32 to vector<16x16xf32>
    %1388 = arith.maximumf %1386, %1387 : vector<16x16xf32>
    %c0_419 = arith.constant 0 : index
    %c0_420 = arith.constant 0 : index
    %c0_421 = arith.constant 0 : index
    %c0_422 = arith.constant 0 : index
    %1389 = vector.load %arg8[%c0_419, %c0_420, %c0_421, %c0_422] : memref<1x4x16x16xf32, #tpu.memory_space<vmem>>, vector<1x1x16x16xf32>
    %1390 = vector.shape_cast %1389 : vector<1x1x16x16xf32> to vector<16x16xf32>
    %1391 = vector.shape_cast %1388 : vector<16x16xf32> to vector<1x1x16x16xf32>
    tpu.vector_store %arg8[%c0_419, %c0_420, %c0_421, %c0_422], %1391 {strides = array<i32>} : memref<1x4x16x16xf32, #tpu.memory_space<vmem>>, vector<1x1x16x16xf32>,
    %1392 = vector.extract_strided_slice %1 {offsets = [1, 0, 0], sizes = [1, 16, 16], strides = [1, 1, 1]} : vector<4x16x16xf32> to vector<1x16x16xf32>
    %1393 = vector.shape_cast %1392 : vector<1x16x16xf32> to vector<16x16xf32>
    %1394 = arith.addf %1375, %1393 : vector<16x16xf32>
    %cst_423 = arith.constant 0.000000e+00 : f32
    %1395 = vector.broadcast %cst_423 : f32 to vector<16x16xf32>
    %1396 = arith.maximumf %1394, %1395 : vector<16x16xf32>
    %c0_424 = arith.constant 0 : index
    %c1_425 = arith.constant 1 : index
    %c0_426 = arith.constant 0 : index
    %c0_427 = arith.constant 0 : index
    %1397 = vector.load %arg8[%c0_424, %c1_425, %c0_426, %c0_427] : memref<1x4x16x16xf32, #tpu.memory_space<vmem>>, vector<1x1x16x16xf32>
    %1398 = vector.shape_cast %1397 : vector<1x1x16x16xf32> to vector<16x16xf32>
    %1399 = vector.shape_cast %1396 : vector<16x16xf32> to vector<1x1x16x16xf32>
    tpu.vector_store %arg8[%c0_424, %c1_425, %c0_426, %c0_427], %1399 {strides = array<i32>} : memref<1x4x16x16xf32, #tpu.memory_space<vmem>>, vector<1x1x16x16xf32>,
    %1400 = vector.extract_strided_slice %1 {offsets = [2, 0, 0], sizes = [1, 16, 16], strides = [1, 1, 1]} : vector<4x16x16xf32> to vector<1x16x16xf32>
    %1401 = vector.shape_cast %1400 : vector<1x16x16xf32> to vector<16x16xf32>
    %1402 = arith.addf %1379, %1401 : vector<16x16xf32>
    %cst_428 = arith.constant 0.000000e+00 : f32
    %1403 = vector.broadcast %cst_428 : f32 to vector<16x16xf32>
    %1404 = arith.maximumf %1402, %1403 : vector<16x16xf32>
    %c0_429 = arith.constant 0 : index
    %c2_430 = arith.constant 2 : index
    %c0_431 = arith.constant 0 : index
    %c0_432 = arith.constant 0 : index
    %1405 = vector.load %arg8[%c0_429, %c2_430, %c0_431, %c0_432] : memref<1x4x16x16xf32, #tpu.memory_space<vmem>>, vector<1x1x16x16xf32>
    %1406 = vector.shape_cast %1405 : vector<1x1x16x16xf32> to vector<16x16xf32>
    %1407 = vector.shape_cast %1404 : vector<16x16xf32> to vector<1x1x16x16xf32>
    tpu.vector_store %arg8[%c0_429, %c2_430, %c0_431, %c0_432], %1407 {strides = array<i32>} : memref<1x4x16x16xf32, #tpu.memory_space<vmem>>, vector<1x1x16x16xf32>,
    %1408 = vector.extract_strided_slice %1 {offsets = [3, 0, 0], sizes = [1, 16, 16], strides = [1, 1, 1]} : vector<4x16x16xf32> to vector<1x16x16xf32>
    %1409 = vector.shape_cast %1408 : vector<1x16x16xf32> to vector<16x16xf32>
    %1410 = arith.addf %1383, %1409 : vector<16x16xf32>
    %cst_433 = arith.constant 0.000000e+00 : f32
    %1411 = vector.broadcast %cst_433 : f32 to vector<16x16xf32>
    %1412 = arith.maximumf %1410, %1411 : vector<16x16xf32>
    %c0_434 = arith.constant 0 : index
    %c3_435 = arith.constant 3 : index
    %c0_436 = arith.constant 0 : index
    %c0_437 = arith.constant 0 : index
    %1413 = vector.load %arg8[%c0_434, %c3_435, %c0_436, %c0_437] : memref<1x4x16x16xf32, #tpu.memory_space<vmem>>, vector<1x1x16x16xf32>
    %1414 = vector.shape_cast %1413 : vector<1x1x16x16xf32> to vector<16x16xf32>
    %1415 = vector.shape_cast %1412 : vector<16x16xf32> to vector<1x1x16x16xf32>
    tpu.vector_store %arg8[%c0_434, %c3_435, %c0_436, %c0_437], %1415 {strides = array<i32>} : memref<1x4x16x16xf32, #tpu.memory_space<vmem>>, vector<1x1x16x16xf32>,
    return
  }
  func.func @transform_0(%arg0: i32) -> (i32, i32, i32, i32) {
    %c0_i32 = arith.constant 0 : i32
    %c0_i32_0 = arith.constant 0 : i32
    %c0_i32_1 = arith.constant 0 : i32
    %c0_i32_2 = arith.constant 0 : i32
    return %arg0, %c0_i32, %c0_i32_0, %c0_i32_1 : i32, i32, i32, i32
  }
  func.func @transform_1(%arg0: i32) -> (i32, i32, i32) {
    %c0_i32 = arith.constant 0 : i32
    %c0_i32_0 = arith.constant 0 : i32
    %c0_i32_1 = arith.constant 0 : i32
    %c0_i32_2 = arith.constant 0 : i32
    return %c0_i32, %c0_i32_0, %c0_i32_1 : i32, i32, i32
  }
  func.func @transform_2(%arg0: i32) -> (i32, i32, i32) {
    %c0_i32 = arith.constant 0 : i32
    %c0_i32_0 = arith.constant 0 : i32
    %c0_i32_1 = arith.constant 0 : i32
    %c0_i32_2 = arith.constant 0 : i32
    return %c0_i32, %c0_i32_0, %c0_i32_1 : i32, i32, i32
  }
  func.func @transform_3(%arg0: i32) -> i32 {
    %c0_i32 = arith.constant 0 : i32
    %c0_i32_0 = arith.constant 0 : i32
    return %c0_i32 : i32
  }
  func.func @transform_4(%arg0: i32) -> i32 {
    %c0_i32 = arith.constant 0 : i32
    %c0_i32_0 = arith.constant 0 : i32
    return %c0_i32 : i32
  }
  func.func @transform_5(%arg0: i32) -> i32 {
    %c0_i32 = arith.constant 0 : i32
    %c0_i32_0 = arith.constant 0 : i32
    return %c0_i32 : i32
  }
  func.func @transform_6(%arg0: i32) -> i32 {
    %c0_i32 = arith.constant 0 : i32
    %c0_i32_0 = arith.constant 0 : i32
    return %c0_i32 : i32
  }
  func.func @transform_7(%arg0: i32) -> (i32, i32, i32, i32) {
    %c0_i32 = arith.constant 0 : i32
    %c0_i32_0 = arith.constant 0 : i32
    %c0_i32_1 = arith.constant 0 : i32
    %c0_i32_2 = arith.constant 0 : i32
    return %arg0, %c0_i32, %c0_i32_0, %c0_i32_1 : i32, i32, i32, i32
  }
}

</mosaic_0001>

<llo_original>
// kernel: tpu_custom_call.1
$region0: #{tpu_custom_call.1}
  #allocation0 [shape = 'u32[]', space=smem, size = 0x4, offset = 0x4, fixed_abs, tag = 'smem constant byte address 0x4 - core index']
  #allocation1 [shape = 'u32[144,128]{1,0:T(1,128)}', space=vmem, size = 0x12000, scoped, tag = 'internal scratch']
  #allocation2 [shape = 'f32[4,18,18]{2,1,0:T(8,128)}', space=vmem, size = 0xc000, scoped, tag = 'scratch operand']
  %s0 = inlined_call_operand.hbm [shape: f32[2,4,16,16], index: 0, kind: input, shape index: {}]
  %s1 = inlined_call_operand.hbm [shape: f32[4,16,16], index: 1, kind: input, shape index: {}]
  %s2 = inlined_call_operand.hbm [shape: f32[4,16,16], index: 2, kind: input, shape index: {}]
  %s3 = inlined_call_operand.vmem [shape: f32[144], index: 3, kind: input, shape index: {}]
  %s4 = inlined_call_operand.vmem [shape: f32[4], index: 4, kind: input, shape index: {}]
  %s5 = inlined_call_operand.vmem [shape: f32[144], index: 5, kind: input, shape index: {}]
  %s6 = inlined_call_operand.vmem [shape: f32[4], index: 6, kind: input, shape index: {}]
  %s7 = inlined_call_operand.hbm [shape: f32[2,4,16,16], index: 7, kind: output, shape index: {}]
  %s8 = sld [smem:[#allocation0]]
  $region89: #{tpu_custom_call.1} parent=0
    _
  %s10 = ssub.s32 1, %s8
  %s11 = scalar_select 0, %s10, %s8
  $region1: #{tpu_custom_call.1} parent=0
    #allocation3 [shape = 'u8[65536]{0}', space=vmem, size = 0x10000, scoped, tag = 'input window, operand 0']
    #allocation4 [shape = 's32[2]{0}', space=sflag, size = 0x8, scoped, tag = 'scoped memory for tpu_custom_call.1']
    #allocation5 [shape = 's32[2]{0}', space=sflag, size = 0x8, scoped, tag = 'scoped memory for tpu_custom_call.1']
    #allocation6 [shape = 's32[2]{0}', space=sflag, size = 0x8, scoped, tag = 'scoped memory for tpu_custom_call.1']
    #allocation7 [shape = 'u8[32768]{0}', space=vmem, size = 0x8000, scoped, tag = 'input window, operand 1, single buffered']
    #allocation8 [shape = 's32[1]{0}', space=sflag, size = 0x4, scoped, tag = 'scoped memory for tpu_custom_call.1']
    #allocation9 [shape = 'u8[32768]{0}', space=vmem, size = 0x8000, scoped, tag = 'input window, operand 2, single buffered']
    #allocation10 [shape = 'u8[1024]{0}', space=smem, size = 0x400, scoped, tag = 'input window, operand 3, single buffered']
    #allocation11 [shape = 'u8[512]{0}', space=smem, size = 0x200, scoped, tag = 'input window, operand 4, single buffered']
    #allocation12 [shape = 's32[1]{0}', space=sflag, size = 0x4, scoped, tag = 'scoped memory for tpu_custom_call.1']
    #allocation13 [shape = 'u8[1024]{0}', space=smem, size = 0x400, scoped, tag = 'input window, operand 5, single buffered']
    #allocation14 [shape = 'u8[512]{0}', space=smem, size = 0x200, scoped, tag = 'input window, operand 6, single buffered']
    #allocation15 [shape = 's32[1]{0}', space=sflag, size = 0x4, scoped, tag = 'scoped memory for tpu_custom_call.1']
    #allocation16 [shape = 'u8[65536]{0}', space=vmem, size = 0x10000, scoped, tag = 'output window, operand 0']
    %12 = vsyncpa [#allocation4], 0
    %s13 = scalar_lea.sflag [#allocation4], 1
    %14 = vsyncpa %s13, 0
    %15 = vsyncpa [#allocation8], 0
    %16 = vsyncpa [#allocation6], 0
    %17 = vsyncpa [#allocation12], 0
    %18 = vsyncpa [#allocation15], 0
    %19 = vsyncpa [#allocation5], 0
    %s20 = scalar_lea.sflag [#allocation5], 1
    %21 = vsyncpa %s20, 0
    loop: start=0, step=1, limit=4
    $region2: #{tpu_custom_call.1} parent=1 // loop_pre_header
      _
    $region3: #{tpu_custom_call.1} parent=1 // loop_header
      %s23 = sphi 0, %s27
      %p24 = scmp.ge.s32.totalorder %s23, 4
      %s33 = sphi 0, %s35
      %s36 = sphi 0, %s33
      %s37 = sphi 0, %s36
      %s53 = sphi 0, %s37
      %s57 = sphi 0, %s57
      %s59 = sphi 0, %s57
      %s60 = sphi 0, %s59
      %s74 = sphi 0, %s60
      %s78 = sphi 0, %s78
      %s80 = sphi 0, %s78
      %s81 = sphi 0, %s80
      %s95 = sphi 0, %s81
      %s99 = sphi 0, %s99
      %s101 = sphi 0, %s99
      %s102 = sphi 0, %s101
      %s116 = sphi 0, %s102
      %s120 = sphi 0, %s120
      %s122 = sphi 0, %s120
      %s123 = sphi 0, %s122
      %s137 = sphi 0, %s123
      %s141 = sphi 0, %s141
      %s143 = sphi 0, %s141
      %s144 = sphi 0, %s143
      %s158 = sphi 0, %s144
      %s162 = sphi 0, %s162
      %s164 = sphi 0, %s162
      %s165 = sphi 0, %s164
      %s179 = sphi 0, %s165
      %s185 = sphi 0, %s187
      %s188 = sphi 0, %s185
      %s189 = sphi 0, %s188
      %s205 = sphi 0, %s189
    $region4: #{tpu_custom_call.1} parent=1 // loop_header_branch
      %26 = sbr.rel (%p24) target = $region8
    $region5: #{tpu_custom_call.1} parent=1 // loop_body
      %s28 = ssub.s32 %s23, 1
      %s29 = ssub.s32 %s23, 2
      %s30 = sadd.s32 %s23, 1
      %s31 = ssub.s32 %s23, %s30
      %p32 = scmp.eq.s32.totalorder %s31, 0
      %s34 = sadd.s32 %s33, 1
      %s35 = scalar_select %p32, %s33, %s34
      %p38 = pneg %p32
      %p39 = scmp.eq.s32.totalorder %s23, 1
      %p40 = por %p38, %p39
      %p41 = scmp.ne.s32.totalorder %s33, %s36
      %p42 = scmp.eq.s32.totalorder %s23, 0
      %p43 = por %p41, %p42
      %p44 = scmp.ne.s32.totalorder %s33, %s36
      %p45 = scmp.eq.s32.totalorder %s28, 1
      %p46 = por %p44, %p45
      %p47 = scmp.ne.s32.totalorder %s36, %s37
      %p48 = scmp.eq.s32.totalorder %s28, 0
      %p49 = por %p47, %p48
      %p50 = scmp.ne.s32.totalorder %s36, %s37
      %p51 = scmp.eq.s32.totalorder %s29, 1
      %p52 = por %p50, %p51
      %p54 = scmp.ne.s32.totalorder %s37, %s53
      %p55 = scmp.eq.s32.totalorder %s29, 0
      %p56 = por %p54, %p55
      %s58 = sadd.s32 %s57, 1
      %p61 = scmp.eq.s32.totalorder %s23, 1
      %p62 = scmp.ne.s32.totalorder %s57, %s59
      %p63 = scmp.eq.s32.totalorder %s23, 0
      %p64 = por %p62, %p63
      %p65 = scmp.ne.s32.totalorder %s57, %s59
      %p66 = scmp.eq.s32.totalorder %s28, 1
      %p67 = por %p65, %p66
      %p68 = scmp.ne.s32.totalorder %s59, %s60
      %p69 = scmp.eq.s32.totalorder %s28, 0
      %p70 = por %p68, %p69
      %p71 = scmp.ne.s32.totalorder %s59, %s60
      %p72 = scmp.eq.s32.totalorder %s29, 1
      %p73 = por %p71, %p72
      %p75 = scmp.ne.s32.totalorder %s60, %s74
      %p76 = scmp.eq.s32.totalorder %s29, 0
      %p77 = por %p75, %p76
      %s79 = sadd.s32 %s78, 1
      %p82 = scmp.eq.s32.totalorder %s23, 1
      %p83 = scmp.ne.s32.totalorder %s78, %s80
      %p84 = scmp.eq.s32.totalorder %s23, 0
      %p85 = por %p83, %p84
      %p86 = scmp.ne.s32.totalorder %s78, %s80
      %p87 = scmp.eq.s32.totalorder %s28, 1
      %p88 = por %p86, %p87
      %p89 = scmp.ne.s32.totalorder %s80, %s81
      %p90 = scmp.eq.s32.totalorder %s28, 0
      %p91 = por %p89, %p90
      %p92 = scmp.ne.s32.totalorder %s80, %s81
      %p93 = scmp.eq.s32.totalorder %s29, 1
      %p94 = por %p92, %p93
      %p96 = scmp.ne.s32.totalorder %s81, %s95
      %p97 = scmp.eq.s32.totalorder %s29, 0
      %p98 = por %p96, %p97
      %s100 = sadd.s32 %s99, 1
      %p103 = scmp.eq.s32.totalorder %s23, 1
      %p104 = scmp.ne.s32.totalorder %s99, %s101
      %p105 = scmp.eq.s32.totalorder %s23, 0
      %p106 = por %p104, %p105
      %p107 = scmp.ne.s32.totalorder %s99, %s101
      %p108 = scmp.eq.s32.totalorder %s28, 1
      %p109 = por %p107, %p108
      %p110 = scmp.ne.s32.totalorder %s101, %s102
      %p111 = scmp.eq.s32.totalorder %s28, 0
      %p112 = por %p110, %p111
      %p113 = scmp.ne.s32.totalorder %s101, %s102
      %p114 = scmp.eq.s32.totalorder %s29, 1
      %p115 = por %p113, %p114
      %p117 = scmp.ne.s32.totalorder %s102, %s116
      %p118 = scmp.eq.s32.totalorder %s29, 0
      %p119 = por %p117, %p118
      %s121 = sadd.s32 %s120, 1
      %p124 = scmp.eq.s32.totalorder %s23, 1
      %p125 = scmp.ne.s32.totalorder %s120, %s122
      %p126 = scmp.eq.s32.totalorder %s23, 0
      %p127 = por %p125, %p126
      %p128 = scmp.ne.s32.totalorder %s120, %s122
      %p129 = scmp.eq.s32.totalorder %s28, 1
      %p130 = por %p128, %p129
      %p131 = scmp.ne.s32.totalorder %s122, %s123
      %p132 = scmp.eq.s32.totalorder %s28, 0
      %p133 = por %p131, %p132
      %p134 = scmp.ne.s32.totalorder %s122, %s123
      %p135 = scmp.eq.s32.totalorder %s29, 1
      %p136 = por %p134, %p135
      %p138 = scmp.ne.s32.totalorder %s123, %s137
      %p139 = scmp.eq.s32.totalorder %s29, 0
      %p140 = por %p138, %p139
      %s142 = sadd.s32 %s141, 1
      %p145 = scmp.eq.s32.totalorder %s23, 1
      %p146 = scmp.ne.s32.totalorder %s141, %s143
      %p147 = scmp.eq.s32.totalorder %s23, 0
      %p148 = por %p146, %p147
      %p149 = scmp.ne.s32.totalorder %s141, %s143
      %p150 = scmp.eq.s32.totalorder %s28, 1
      %p151 = por %p149, %p150
      %p152 = scmp.ne.s32.totalorder %s143, %s144
      %p153 = scmp.eq.s32.totalorder %s28, 0
      %p154 = por %p152, %p153
      %p155 = scmp.ne.s32.totalorder %s143, %s144
      %p156 = scmp.eq.s32.totalorder %s29, 1
      %p157 = por %p155, %p156
      %p159 = scmp.ne.s32.totalorder %s144, %s158
      %p160 = scmp.eq.s32.totalorder %s29, 0
      %p161 = por %p159, %p160
      %s163 = sadd.s32 %s162, 1
      %p166 = scmp.eq.s32.totalorder %s23, 1
      %p167 = scmp.ne.s32.totalorder %s162, %s164
      %p168 = scmp.eq.s32.totalorder %s23, 0
      %p169 = por %p167, %p168
      %p170 = scmp.ne.s32.totalorder %s162, %s164
      %p171 = scmp.eq.s32.totalorder %s28, 1
      %p172 = por %p170, %p171
      %p173 = scmp.ne.s32.totalorder %s164, %s165
      %p174 = scmp.eq.s32.totalorder %s28, 0
      %p175 = por %p173, %p174
      %p176 = scmp.ne.s32.totalorder %s164, %s165
      %p177 = scmp.eq.s32.totalorder %s29, 1
      %p178 = por %p176, %p177
      %p180 = scmp.ne.s32.totalorder %s165, %s179
      %p181 = scmp.eq.s32.totalorder %s29, 0
      %p182 = por %p180, %p181
      %s183 = ssub.s32 %s23, %s30
      %p184 = scmp.eq.s32.totalorder %s183, 0
      %s186 = sadd.s32 %s185, 1
      %s187 = scalar_select %p184, %s185, %s186
      %p190 = pneg %p184
      %p191 = scmp.eq.s32.totalorder %s23, 1
      %p192 = por %p190, %p191
      %p193 = scmp.ne.s32.totalorder %s185, %s188
      %p194 = scmp.eq.s32.totalorder %s23, 0
      %p195 = por %p193, %p194
      %p196 = scmp.ne.s32.totalorder %s185, %s188
      %p197 = scmp.eq.s32.totalorder %s28, 1
      %p198 = por %p196, %p197
      %p199 = scmp.ne.s32.totalorder %s188, %s189
      %p200 = scmp.eq.s32.totalorder %s28, 0
      %p201 = por %p199, %p200
      %p202 = scmp.ne.s32.totalorder %s188, %s189
      %p203 = scmp.eq.s32.totalorder %s29, 1
      %p204 = por %p202, %p203
      %p206 = scmp.ne.s32.totalorder %s189, %s205
      %p207 = scmp.eq.s32.totalorder %s29, 0
      %p208 = por %p206, %p207
      %p209 = scmp.le.s32.totalorder 1, %s23
      %p210 = scmp.lt.s32.totalorder %s23, 3
      %p211 = pnand %p209, %p210
      %p212 = pneg %p211
      // Predicated region
      $region9: #{tpu_custom_call.1} parent=5 // pred_check
        _
      $region10: #{tpu_custom_call.1} parent=5 // pred_check_branch
        %214 = sbr.rel (%p211) target = $region12
      $region11: #{tpu_custom_call.1} parent=5 // pred_region
        %s215 = ssub.s32 %s23, 1
        // Predicated region
        $region13: #{tpu_custom_call.1} parent=11 // pred_check
          %p216 = pneg %p70
        $region14: #{tpu_custom_call.1} parent=11 // pred_check_branch
          %218 = sbr.rel (%p216) target = $region16
        $region15: #{tpu_custom_call.1} parent=11 // pred_region
          %s220 = ssub.s32 1024, 1024
          %221 = vsyncadd [#allocation8], %s220
          %s222 = sshll.u32 [#allocation7], 4
          %s223 = int_to_ptr.vmem [resolvable:$true] %s222
          %228 = dma.hbm_to_vmem [thread:$0]  %s1, 1024, %s223, [#allocation8], 128, 128, 8
        $region16: #{tpu_custom_call.1} parent=11 // pred_fallthru
          _
        // Predicated region
        $region17: #{tpu_custom_call.1} parent=11 // pred_check
          %p229 = pneg %p91
        $region18: #{tpu_custom_call.1} parent=11 // pred_check_branch
          %231 = sbr.rel (%p229) target = $region20
        $region19: #{tpu_custom_call.1} parent=11 // pred_region
          %s233 = ssub.s32 1024, 1024
          %234 = vsyncadd [#allocation8], %s233
          %s235 = sshll.u32 [#allocation9], 4
          %s236 = int_to_ptr.vmem [resolvable:$true] %s235
          %241 = dma.hbm_to_vmem [thread:$0]  %s2, 1024, %s236, [#allocation8], 128, 128, 8
        $region20: #{tpu_custom_call.1} parent=11 // pred_fallthru
          _
        // Predicated region
        $region21: #{tpu_custom_call.1} parent=11 // pred_check
          %p242 = pneg %p112
        $region22: #{tpu_custom_call.1} parent=11 // pred_check_branch
          %244 = sbr.rel (%p242) target = $region24
        $region23: #{tpu_custom_call.1} parent=11 // pred_region
          %s246 = ssub.s32 32, 32
          %247 = vsyncadd [#allocation6], %s246
          %s249 = sshll.u32 %s3, 4
          %s250 = int_to_ptr.vmem [resolvable:$true] %s249
          %252 = dma.vmem_to_smem %s250, 32, [#allocation10], [#allocation6]
        $region24: #{tpu_custom_call.1} parent=11 // pred_fallthru
          _
        // Predicated region
        $region25: #{tpu_custom_call.1} parent=11 // pred_check
          %p253 = pneg %p133
        $region26: #{tpu_custom_call.1} parent=11 // pred_check_branch
          %255 = sbr.rel (%p253) target = $region28
        $region27: #{tpu_custom_call.1} parent=11 // pred_region
          %s257 = ssub.s32 16, 16
          %258 = vsyncadd [#allocation12], %s257
          %s260 = sshll.u32 %s4, 4
          %s261 = int_to_ptr.vmem [resolvable:$true] %s260
          %263 = dma.vmem_to_smem %s261, 16, [#allocation11], [#allocation12]
        $region28: #{tpu_custom_call.1} parent=11 // pred_fallthru
          _
        // Predicated region
        $region29: #{tpu_custom_call.1} parent=11 // pred_check
          %p264 = pneg %p154
        $region30: #{tpu_custom_call.1} parent=11 // pred_check_branch
          %266 = sbr.rel (%p264) target = $region32
        $region31: #{tpu_custom_call.1} parent=11 // pred_region
          %s268 = ssub.s32 32, 32
          %269 = vsyncadd [#allocation12], %s268
          %s271 = sshll.u32 %s5, 4
          %s272 = int_to_ptr.vmem [resolvable:$true] %s271
          %274 = dma.vmem_to_smem %s272, 32, [#allocation13], [#allocation12]
        $region32: #{tpu_custom_call.1} parent=11 // pred_fallthru
          _
        // Predicated region
        $region33: #{tpu_custom_call.1} parent=11 // pred_check
          %p275 = pneg %p175
        $region34: #{tpu_custom_call.1} parent=11 // pred_check_branch
          %277 = sbr.rel (%p275) target = $region36
        $region35: #{tpu_custom_call.1} parent=11 // pred_region
          %s279 = ssub.s32 16, 16
          %280 = vsyncadd [#allocation15], %s279
          %s282 = sshll.u32 %s6, 4
          %s283 = int_to_ptr.vmem [resolvable:$true] %s282
          %285 = dma.vmem_to_smem %s283, 16, [#allocation14], [#allocation15]
        $region36: #{tpu_custom_call.1} parent=11 // pred_fallthru
          _
      $region12: #{tpu_custom_call.1} parent=5 // pred_fallthru
        _
      %p286 = scmp.lt.s32.totalorder %s23, 2
      // Predicated region
      $region37: #{tpu_custom_call.1} parent=5 // pred_check
        %p287 = pneg %p286
      $region38: #{tpu_custom_call.1} parent=5 // pred_check_branch
        %289 = sbr.rel (%p287) target = $region40
      $region39: #{tpu_custom_call.1} parent=5 // pred_region
        // Predicated region
        $region41: #{tpu_custom_call.1} parent=39 // pred_check
          %p290 = pneg %p43
        $region42: #{tpu_custom_call.1} parent=39 // pred_check_branch
          %292 = sbr.rel (%p290) target = $region44
        $region43: #{tpu_custom_call.1} parent=39 // pred_region
          %s293 = sand.u32 %s33, 1
          %s294 = scalar_lea.sflag [#allocation4], %s293
          %s295 = sand.u32 %s33, 1
          %s296 = smul.addr %s295, 64
          %s297 = scalar_lea.vmem [#allocation3], %s296
          %s299 = ssub.s32 1024, 1024
          %300 = vsyncadd %s294, %s299
          %s301 = smul.addr %s23, 8
          %s302 = smul.addr %s301, 128
          %s303 = scalar_lea.hbm %s0, %s302
          %s304 = sshll.u32 %s297, 4
          %s305 = int_to_ptr.vmem [resolvable:$true] %s304
          %310 = dma.hbm_to_vmem [thread:$0]  %s303, 1024, %s305, %s294, 128, 128, 8
        $region44: #{tpu_custom_call.1} parent=39 // pred_fallthru
          _
      $region40: #{tpu_custom_call.1} parent=5 // pred_fallthru
        _
      %p311 = scmp.le.s32.totalorder 1, %s23
      %p312 = scmp.lt.s32.totalorder %s23, 3
      %p313 = pnand %p311, %p312
      %p314 = pneg %p313
      // Predicated region
      $region45: #{tpu_custom_call.1} parent=5 // pred_check
        _
      $region46: #{tpu_custom_call.1} parent=5 // pred_check_branch
        %316 = sbr.rel (%p313) target = $region48
      $region47: #{tpu_custom_call.1} parent=5 // pred_region
        %s317 = ssub.s32 %s23, 1
        %s318 = sand.u32 %s36, 1
        %s319 = scalar_lea.sflag [#allocation4], %s318
        %s320 = sand.u32 %s36, 1
        %s321 = smul.addr %s320, 64
        %s322 = scalar_lea.vmem [#allocation3], %s321
        // Predicated region
        $region49: #{tpu_custom_call.1} parent=47 // pred_check
          %p323 = pneg %p49
        $region50: #{tpu_custom_call.1} parent=47 // pred_check_branch
          %325 = sbr.rel (%p323) target = $region52
        $region51: #{tpu_custom_call.1} parent=47 // pred_region
          %326 = dma.done %s319, 1024
        $region52: #{tpu_custom_call.1} parent=47 // pred_fallthru
          _
        // Predicated region
        $region53: #{tpu_custom_call.1} parent=47 // pred_check
          %p327 = pneg %p70
        $region54: #{tpu_custom_call.1} parent=47 // pred_check_branch
          %329 = sbr.rel (%p327) target = $region56
        $region55: #{tpu_custom_call.1} parent=47 // pred_region
          %330 = dma.done [#allocation8], 1024
        $region56: #{tpu_custom_call.1} parent=47 // pred_fallthru
          _
        // Predicated region
        $region57: #{tpu_custom_call.1} parent=47 // pred_check
          %p331 = pneg %p91
        $region58: #{tpu_custom_call.1} parent=47 // pred_check_branch
          %333 = sbr.rel (%p331) target = $region60
        $region59: #{tpu_custom_call.1} parent=47 // pred_region
          %334 = dma.done [#allocation8], 1024
        $region60: #{tpu_custom_call.1} parent=47 // pred_fallthru
          _
        // Predicated region
        $region61: #{tpu_custom_call.1} parent=47 // pred_check
          %p335 = pneg %p112
        $region62: #{tpu_custom_call.1} parent=47 // pred_check_branch
          %337 = sbr.rel (%p335) target = $region64
        $region63: #{tpu_custom_call.1} parent=47 // pred_region
          %338 = dma.done [#allocation6], 32
        $region64: #{tpu_custom_call.1} parent=47 // pred_fallthru
          _
        // Predicated region
        $region65: #{tpu_custom_call.1} parent=47 // pred_check
          %p339 = pneg %p133
        $region66: #{tpu_custom_call.1} parent=47 // pred_check_branch
          %341 = sbr.rel (%p339) target = $region68
        $region67: #{tpu_custom_call.1} parent=47 // pred_region
          %342 = dma.done [#allocation12], 16
        $region68: #{tpu_custom_call.1} parent=47 // pred_fallthru
          _
        // Predicated region
        $region69: #{tpu_custom_call.1} parent=47 // pred_check
          %p343 = pneg %p154
        $region70: #{tpu_custom_call.1} parent=47 // pred_check_branch
          %345 = sbr.rel (%p343) target = $region72
        $region71: #{tpu_custom_call.1} parent=47 // pred_region
          %346 = dma.done [#allocation12], 32
        $region72: #{tpu_custom_call.1} parent=47 // pred_fallthru
          _
        // Predicated region
        $region73: #{tpu_custom_call.1} parent=47 // pred_check
          %p347 = pneg %p175
        $region74: #{tpu_custom_call.1} parent=47 // pred_check_branch
          %349 = sbr.rel (%p347) target = $region76
        $region75: #{tpu_custom_call.1} parent=47 // pred_region
          %350 = dma.done [#allocation15], 16
        $region76: #{tpu_custom_call.1} parent=47 // pred_fallthru
          _
        %351 = sfence
        %s352 = sand.u32 %s36, 1
        %s353 = scalar_lea.sflag [#allocation4], %s352
        %s354 = sand.u32 %s36, 1
        %s355 = smul.addr %s354, 64
        %s356 = scalar_lea.vmem [#allocation3], %s355
        %p357 = pneg %p49
        %p358 = pneg %p46
        %p359 = pneg %p70
        %p360 = pneg %p67
        %p361 = pneg %p91
        %p362 = pneg %p88
        %p363 = pneg %p112
        %p364 = pneg %p109
        %p365 = pneg %p133
        %p366 = pneg %p130
        %p367 = pneg %p154
        %p368 = pneg %p151
        %p369 = pneg %p175
        %p370 = pneg %p172
        %p371 = pneg %p201
        %p372 = pneg %p198
        %s373 = sand.u32 %s188, 1
        %s374 = scalar_lea.sflag [#allocation5], %s373
        %s375 = sand.u32 %s188, 1
        %s376 = smul.addr %s375, 64
        %s377 = scalar_lea.vmem [#allocation16], %s376
        %v378 = vld [vmem:[%s322] sm:$0xff]
        %v379 = vld [vmem:[%s322 + $0x8] sm:$0xff]
        %v380 = vld [vmem:[%s322 + $0x10] sm:$0xff]
        %v381 = vld [vmem:[%s322 + $0x18] sm:$0xff]
        %v382 = vld [vmem:[%s322 + $0x20] sm:$0xff]
        %v383 = vld [vmem:[%s322 + $0x28] sm:$0xff]
        %v384 = vld [vmem:[%s322 + $0x30] sm:$0xff]
        %v385 = vld [vmem:[%s322 + $0x38] sm:$0xff]
        %vm386 = vcmask 130048
        %v387 = vsel %vm386, %v378, 0.0
        %v388 = vsel %vm386, %v380, 0.0
        %v389 = vadd.f32 %v387, %v388
        %v390 = vsel %vm386, %v382, 0.0
        %v391 = vadd.f32 %v389, %v390
        %v392 = vsel %vm386, %v384, 0.0
        %v393 = vadd.f32 %v391, %v392
        %v394 = vsel %vm386, %v379, 0.0
        %v395 = vsel %vm386, %v381, 0.0
        %v396 = vadd.f32 %v394, %v395
        %v397 = vsel %vm386, %v383, 0.0
        %v398 = vadd.f32 %v396, %v397
        %v399 = vsel %vm386, %v385, 0.0
        %v400 = vadd.f32 %v398, %v399
        %v401 = vsel %vm386, %v393, 0.0
        %v402 = vsel %vm386, %v400, 0.0
        %v403 = vadd.f32 %v401, %v402
        %v404 = vrot.slane %v403, 4
        %v405 = vadd.f32 %v403, %v404
        %v406 = vrot.slane %v405, 2
        %v407 = vadd.f32 %v405, %v406
        %v408 = vrot.slane %v407, 1
        %v409 = vadd.f32 %v407, %v408
        %v410 = vsel %vm386, %v409, 0.0
        %411 = vadd.xlane.f32.xlu0 %v410
        %v412 = vpop.xlane.xlu0 %411
        %v413 = vmul.f32 %v412, 0.0009765625
        %v414 = vsub.f32 %v378, %v413
        %v415 = vsub.f32 %v379, %v413
        %v416 = vsub.f32 %v380, %v413
        %v417 = vsub.f32 %v381, %v413
        %v418 = vsub.f32 %v382, %v413
        %v419 = vsub.f32 %v383, %v413
        %v420 = vsub.f32 %v384, %v413
        %v421 = vsub.f32 %v385, %v413
        %v422 = vmul.f32 %v414, %v414
        %v423 = vmul.f32 %v415, %v415
        %v424 = vmul.f32 %v416, %v416
        %v425 = vmul.f32 %v417, %v417
        %v426 = vmul.f32 %v418, %v418
        %v427 = vmul.f32 %v419, %v419
        %v428 = vmul.f32 %v420, %v420
        %v429 = vmul.f32 %v421, %v421
        %v430 = vsel %vm386, %v422, 0.0
        %v431 = vsel %vm386, %v424, 0.0
        %v432 = vadd.f32 %v430, %v431
        %v433 = vsel %vm386, %v426, 0.0
        %v434 = vadd.f32 %v432, %v433
        %v435 = vsel %vm386, %v428, 0.0
        %v436 = vadd.f32 %v434, %v435
        %v437 = vsel %vm386, %v423, 0.0
        %v438 = vsel %vm386, %v425, 0.0
        %v439 = vadd.f32 %v437, %v438
        %v440 = vsel %vm386, %v427, 0.0
        %v441 = vadd.f32 %v439, %v440
        %v442 = vsel %vm386, %v429, 0.0
        %v443 = vadd.f32 %v441, %v442
        %v444 = vsel %vm386, %v436, 0.0
        %v445 = vsel %vm386, %v443, 0.0
        %v446 = vadd.f32 %v444, %v445
        %v447 = vrot.slane %v446, 4
        %v448 = vadd.f32 %v446, %v447
        %v449 = vrot.slane %v448, 2
        %v450 = vadd.f32 %v448, %v449
        %v451 = vrot.slane %v450, 1
        %v452 = vadd.f32 %v450, %v451
        %v453 = vsel %vm386, %v452, 0.0
        %454 = vadd.xlane.f32.xlu0 %v453
        %v455 = vpop.xlane.xlu0 %454
        %v456 = vmul.f32 %v455, 0.0009765625
        %v457 = vadd.f32 %v456, 1e-05
        %v458 = vrsqrt.pop %v457
        %v459 = vmul.f32 %v414, %v458
        %v460 = vmul.f32 %v415, %v458
        %v461 = vmul.f32 %v416, %v458
        %v462 = vmul.f32 %v417, %v458
        %v463 = vmul.f32 %v418, %v458
        %v464 = vmul.f32 %v419, %v458
        %v465 = vmul.f32 %v420, %v458
        %v466 = vmul.f32 %v421, %v458
        %v467 = vld [vmem:[#allocation7] sm:$0xff]
        %v468 = vld [vmem:[#allocation7 + $0x8] sm:$0xff]
        %v469 = vld [vmem:[#allocation7 + $0x10] sm:$0xff]
        %v470 = vld [vmem:[#allocation7 + $0x18] sm:$0xff]
        %v471 = vld [vmem:[#allocation7 + $0x20] sm:$0xff]
        %v472 = vld [vmem:[#allocation7 + $0x28] sm:$0xff]
        %v473 = vld [vmem:[#allocation7 + $0x30] sm:$0xff]
        %v474 = vld [vmem:[#allocation7 + $0x38] sm:$0xff]
        %v475 = vmul.f32 %v459, %v467
        %v476 = vmul.f32 %v460, %v468
        %v477 = vmul.f32 %v461, %v469
        %v478 = vmul.f32 %v462, %v470
        %v479 = vmul.f32 %v463, %v471
        %v480 = vmul.f32 %v464, %v472
        %v481 = vmul.f32 %v465, %v473
        %v482 = vmul.f32 %v466, %v474
        %v483 = vld [vmem:[#allocation9] sm:$0xff]
        %v484 = vld [vmem:[#allocation9 + $0x8] sm:$0xff]
        %v485 = vld [vmem:[#allocation9 + $0x10] sm:$0xff]
        %v486 = vld [vmem:[#allocation9 + $0x18] sm:$0xff]
        %v487 = vld [vmem:[#allocation9 + $0x20] sm:$0xff]
        %v488 = vld [vmem:[#allocation9 + $0x28] sm:$0xff]
        %v489 = vld [vmem:[#allocation9 + $0x30] sm:$0xff]
        %v490 = vld [vmem:[#allocation9 + $0x38] sm:$0xff]
        %v491 = vadd.f32 %v475, %v483
        %v492 = vadd.f32 %v476, %v484
        %v493 = vadd.f32 %v477, %v485
        %v494 = vadd.f32 %v478, %v486
        %v495 = vadd.f32 %v479, %v487
        %v496 = vadd.f32 %v480, %v488
        %v497 = vadd.f32 %v481, %v489
        %v498 = vadd.f32 %v482, %v490
        %vm499 = vcmask 146432
        %500 = vst.msk [vmem:[#allocation2] sm:$0xff] %vm499, 0.0
        %501 = vst.msk [vmem:[#allocation2 + $0x8] sm:$0xff] %vm499, 0.0
        %vm502 = vcmask 140288
        %503 = vst.msk [vmem:[#allocation2 + $0x10] sm:$0x3] %vm502, 0.0
        %504 = vst.msk [vmem:[#allocation2 + $0x18] sm:$0xff] %vm499, 0.0
        %505 = vst.msk [vmem:[#allocation2 + $0x20] sm:$0xff] %vm499, 0.0
        %506 = vst.msk [vmem:[#allocation2 + $0x28] sm:$0x3] %vm502, 0.0
        %507 = vst.msk [vmem:[#allocation2 + $0x30] sm:$0xff] %vm499, 0.0
        %508 = vst.msk [vmem:[#allocation2 + $0x38] sm:$0xff] %vm499, 0.0
        %509 = vst.msk [vmem:[#allocation2 + $0x40] sm:$0x3] %vm502, 0.0
        %510 = vst.msk [vmem:[#allocation2 + $0x48] sm:$0xff] %vm499, 0.0
        %511 = vst.msk [vmem:[#allocation2 + $0x50] sm:$0xff] %vm499, 0.0
        %512 = vst.msk [vmem:[#allocation2 + $0x58] sm:$0x3] %vm502, 0.0
        %515 = vrot.lane.b32.xlu0 %v491, 1
        %v516 = vpop.permute.xlu0 %515
        %517 = vrot.lane.b32.xlu0 %v492, 1
        %v518 = vpop.permute.xlu0 %517
        %vm521 = vcmask 138248
        %522 = vst.msk [vmem:[#allocation2 + $0x1] sm:$0xff] %vm521, %v516
        %523 = vst.msk [vmem:[#allocation2 + $0x9] sm:$0xff] %vm521, %v518
        %526 = vrot.lane.b32.xlu0 %v493, 1
        %v527 = vpop.permute.xlu0 %526
        %528 = vrot.lane.b32.xlu0 %v494, 1
        %v529 = vpop.permute.xlu0 %528
        %s532 = scalar_lea.vmem [#allocation2], 24
        %533 = vst.msk [vmem:[%s532 + $0x1] sm:$0xff] %vm521, %v527
        %534 = vst.msk [vmem:[%s532 + $0x9] sm:$0xff] %vm521, %v529
        %537 = vrot.lane.b32.xlu0 %v495, 1
        %v538 = vpop.permute.xlu0 %537
        %539 = vrot.lane.b32.xlu0 %v496, 1
        %v540 = vpop.permute.xlu0 %539
        %s543 = scalar_lea.vmem [#allocation2], 48
        %544 = vst.msk [vmem:[%s543 + $0x1] sm:$0xff] %vm521, %v538
        %545 = vst.msk [vmem:[%s543 + $0x9] sm:$0xff] %vm521, %v540
        %548 = vrot.lane.b32.xlu0 %v497, 1
        %v549 = vpop.permute.xlu0 %548
        %550 = vrot.lane.b32.xlu0 %v498, 1
        %v551 = vpop.permute.xlu0 %550
        %s554 = scalar_lea.vmem [#allocation2], 72
        %555 = vst.msk [vmem:[%s554 + $0x1] sm:$0xff] %vm521, %v549
        %556 = vst.msk [vmem:[%s554 + $0x9] sm:$0xff] %vm521, %v551
        %s557 = sld [smem:[#allocation11]]
        %v558 = vstv %s557
        %s559 = sld [smem:[#allocation11 + $0x1]]
        %v560 = vstv %s559
        %s561 = sld [smem:[#allocation11 + $0x2]]
        %v562 = vstv %s561
        %s563 = sld [smem:[#allocation11 + $0x3]]
        %v564 = vstv %s563
        %v565 = vld [vmem:[#allocation2] sm:$0xff]
        %v566 = vld [vmem:[#allocation2 + $0x8] sm:$0xff]
        %s567 = sld [smem:[#allocation10]]
        %v568 = vstv %s567
        %v569 = vmul.f32 %v568, %v565
        %v570 = vmul.f32 %v568, %v566
        %v571 = vadd.f32 %v558, %v569
        %v572 = vadd.f32 %v558, %v570
        %s573 = sld [smem:[#allocation10 + $0x24]]
        %v574 = vstv %s573
        %v575 = vmul.f32 %v574, %v565
        %v576 = vmul.f32 %v574, %v566
        %v577 = vadd.f32 %v560, %v575
        %v578 = vadd.f32 %v560, %v576
        %s579 = sld [smem:[#allocation10 + $0x48]]
        %v580 = vstv %s579
        %v581 = vmul.f32 %v580, %v565
        %v582 = vmul.f32 %v580, %v566
        %v583 = vadd.f32 %v562, %v581
        %v584 = vadd.f32 %v562, %v582
        %s585 = sld [smem:[#allocation10 + $0x6c]]
        %v586 = vstv %s585
        %v587 = vmul.f32 %v586, %v565
        %v588 = vmul.f32 %v586, %v566
        %v589 = vadd.f32 %v564, %v587
        %v590 = vadd.f32 %v564, %v588
        %v591 = vld [vmem:[%s532] sm:$0xff]
        %v592 = vld [vmem:[%s532 + $0x8] sm:$0xff]
        %s593 = sld [smem:[#allocation10 + $0x9]]
        %v594 = vstv %s593
        %v595 = vmul.f32 %v594, %v591
        %v596 = vmul.f32 %v594, %v592
        %v597 = vadd.f32 %v571, %v595
        %v598 = vadd.f32 %v572, %v596
        %s599 = sld [smem:[#allocation10 + $0x2d]]
        %v600 = vstv %s599
        %v601 = vmul.f32 %v600, %v591
        %v602 = vmul.f32 %v600, %v592
        %v603 = vadd.f32 %v577, %v601
        %v604 = vadd.f32 %v578, %v602
        %s605 = sld [smem:[#allocation10 + $0x51]]
        %v606 = vstv %s605
        %v607 = vmul.f32 %v606, %v591
        %v608 = vmul.f32 %v606, %v592
        %v609 = vadd.f32 %v583, %v607
        %v610 = vadd.f32 %v584, %v608
        %s611 = sld [smem:[#allocation10 + $0x75]]
        %v612 = vstv %s611
        %v613 = vmul.f32 %v612, %v591
        %v614 = vmul.f32 %v612, %v592
        %v615 = vadd.f32 %v589, %v613
        %v616 = vadd.f32 %v590, %v614
        %v617 = vld [vmem:[%s543] sm:$0xff]
        %v618 = vld [vmem:[%s543 + $0x8] sm:$0xff]
        %s619 = sld [smem:[#allocation10 + $0x12]]
        %v620 = vstv %s619
        %v621 = vmul.f32 %v620, %v617
        %v622 = vmul.f32 %v620, %v618
        %v623 = vadd.f32 %v597, %v621
        %v624 = vadd.f32 %v598, %v622
        %s625 = sld [smem:[#allocation10 + $0x36]]
        %v626 = vstv %s625
        %v627 = vmul.f32 %v626, %v617
        %v628 = vmul.f32 %v626, %v618
        %v629 = vadd.f32 %v603, %v627
        %v630 = vadd.f32 %v604, %v628
        %s631 = sld [smem:[#allocation10 + $0x5a]]
        %v632 = vstv %s631
        %v633 = vmul.f32 %v632, %v617
        %v634 = vmul.f32 %v632, %v618
        %v635 = vadd.f32 %v609, %v633
        %v636 = vadd.f32 %v610, %v634
        %s637 = sld [smem:[#allocation10 + $0x7e]]
        %v638 = vstv %s637
        %v639 = vmul.f32 %v638, %v617
        %v640 = vmul.f32 %v638, %v618
        %v641 = vadd.f32 %v615, %v639
        %v642 = vadd.f32 %v616, %v640
        %v643 = vld [vmem:[%s554] sm:$0xff]
        %v644 = vld [vmem:[%s554 + $0x8] sm:$0xff]
        %s645 = sld [smem:[#allocation10 + $0x1b]]
        %v646 = vstv %s645
        %v647 = vmul.f32 %v646, %v643
        %v648 = vmul.f32 %v646, %v644
        %v649 = vadd.f32 %v623, %v647
        %v650 = vadd.f32 %v624, %v648
        %s651 = sld [smem:[#allocation10 + $0x3f]]
        %v652 = vstv %s651
        %v653 = vmul.f32 %v652, %v643
        %v654 = vmul.f32 %v652, %v644
        %v655 = vadd.f32 %v629, %v653
        %v656 = vadd.f32 %v630, %v654
        %s657 = sld [smem:[#allocation10 + $0x63]]
        %v658 = vstv %s657
        %v659 = vmul.f32 %v658, %v643
        %v660 = vmul.f32 %v658, %v644
        %v661 = vadd.f32 %v635, %v659
        %v662 = vadd.f32 %v636, %v660
        %s663 = sld [smem:[#allocation10 + $0x87]]
        %v664 = vstv %s663
        %v665 = vmul.f32 %v664, %v643
        %v666 = vmul.f32 %v664, %v644
        %v667 = vadd.f32 %v641, %v665
        %v668 = vadd.f32 %v642, %v666
        %s669 = sld [smem:[#allocation10 + $0x1]]
        %v670 = vstv %s669
        %v671 = vmul.f32 %v670, %v565
        %v672 = vmul.f32 %v670, %v566
        %675 = vrot.lane.b32.xlu0 %v671, 127
        %v676 = vpop.permute.xlu0 %675
        %677 = vrot.lane.b32.xlu0 %v672, 127
        %v678 = vpop.permute.xlu0 %677
        %v681 = vadd.f32 %v649, %v676
        %v682 = vadd.f32 %v650, %v678
        %s683 = sld [smem:[#allocation10 + $0x25]]
        %v684 = vstv %s683
        %v685 = vmul.f32 %v684, %v565
        %v686 = vmul.f32 %v684, %v566
        %689 = vrot.lane.b32.xlu0 %v685, 127
        %v690 = vpop.permute.xlu0 %689
        %691 = vrot.lane.b32.xlu0 %v686, 127
        %v692 = vpop.permute.xlu0 %691
        %v695 = vadd.f32 %v655, %v690
        %v696 = vadd.f32 %v656, %v692
        %s697 = sld [smem:[#allocation10 + $0x49]]
        %v698 = vstv %s697
        %v699 = vmul.f32 %v698, %v565
        %v700 = vmul.f32 %v698, %v566
        %703 = vrot.lane.b32.xlu0 %v699, 127
        %v704 = vpop.permute.xlu0 %703
        %705 = vrot.lane.b32.xlu0 %v700, 127
        %v706 = vpop.permute.xlu0 %705
        %v709 = vadd.f32 %v661, %v704
        %v710 = vadd.f32 %v662, %v706
        %s711 = sld [smem:[#allocation10 + $0x6d]]
        %v712 = vstv %s711
        %v713 = vmul.f32 %v712, %v565
        %v714 = vmul.f32 %v712, %v566
        %717 = vrot.lane.b32.xlu0 %v713, 127
        %v718 = vpop.permute.xlu0 %717
        %719 = vrot.lane.b32.xlu0 %v714, 127
        %v720 = vpop.permute.xlu0 %719
        %v723 = vadd.f32 %v667, %v718
        %v724 = vadd.f32 %v668, %v720
        %s725 = sld [smem:[#allocation10 + $0xa]]
        %v726 = vstv %s725
        %v727 = vmul.f32 %v726, %v591
        %v728 = vmul.f32 %v726, %v592
        %731 = vrot.lane.b32.xlu0 %v727, 127
        %v732 = vpop.permute.xlu0 %731
        %733 = vrot.lane.b32.xlu0 %v728, 127
        %v734 = vpop.permute.xlu0 %733
        %v737 = vadd.f32 %v681, %v732
        %v738 = vadd.f32 %v682, %v734
        %s739 = sld [smem:[#allocation10 + $0x2e]]
        %v740 = vstv %s739
        %v741 = vmul.f32 %v740, %v591
        %v742 = vmul.f32 %v740, %v592
        %745 = vrot.lane.b32.xlu0 %v741, 127
        %v746 = vpop.permute.xlu0 %745
        %747 = vrot.lane.b32.xlu0 %v742, 127
        %v748 = vpop.permute.xlu0 %747
        %v751 = vadd.f32 %v695, %v746
        %v752 = vadd.f32 %v696, %v748
        %s753 = sld [smem:[#allocation10 + $0x52]]
        %v754 = vstv %s753
        %v755 = vmul.f32 %v754, %v591
        %v756 = vmul.f32 %v754, %v592
        %759 = vrot.lane.b32.xlu0 %v755, 127
        %v760 = vpop.permute.xlu0 %759
        %761 = vrot.lane.b32.xlu0 %v756, 127
        %v762 = vpop.permute.xlu0 %761
        %v765 = vadd.f32 %v709, %v760
        %v766 = vadd.f32 %v710, %v762
        %s767 = sld [smem:[#allocation10 + $0x76]]
        %v768 = vstv %s767
        %v769 = vmul.f32 %v768, %v591
        %v770 = vmul.f32 %v768, %v592
        %773 = vrot.lane.b32.xlu0 %v769, 127
        %v774 = vpop.permute.xlu0 %773
        %775 = vrot.lane.b32.xlu0 %v770, 127
        %v776 = vpop.permute.xlu0 %775
        %v779 = vadd.f32 %v723, %v774
        %v780 = vadd.f32 %v724, %v776
        %s781 = sld [smem:[#allocation10 + $0x13]]
        %v782 = vstv %s781
        %v783 = vmul.f32 %v782, %v617
        %v784 = vmul.f32 %v782, %v618
        %787 = vrot.lane.b32.xlu0 %v783, 127
        %v788 = vpop.permute.xlu0 %787
        %789 = vrot.lane.b32.xlu0 %v784, 127
        %v790 = vpop.permute.xlu0 %789
        %v793 = vadd.f32 %v737, %v788
        %v794 = vadd.f32 %v738, %v790
        %s795 = sld [smem:[#allocation10 + $0x37]]
        %v796 = vstv %s795
        %v797 = vmul.f32 %v796, %v617
        %v798 = vmul.f32 %v796, %v618
        %801 = vrot.lane.b32.xlu0 %v797, 127
        %v802 = vpop.permute.xlu0 %801
        %803 = vrot.lane.b32.xlu0 %v798, 127
        %v804 = vpop.permute.xlu0 %803
        %v807 = vadd.f32 %v751, %v802
        %v808 = vadd.f32 %v752, %v804
        %s809 = sld [smem:[#allocation10 + $0x5b]]
        %v810 = vstv %s809
        %v811 = vmul.f32 %v810, %v617
        %v812 = vmul.f32 %v810, %v618
        %815 = vrot.lane.b32.xlu0 %v811, 127
        %v816 = vpop.permute.xlu0 %815
        %817 = vrot.lane.b32.xlu0 %v812, 127
        %v818 = vpop.permute.xlu0 %817
        %v821 = vadd.f32 %v765, %v816
        %v822 = vadd.f32 %v766, %v818
        %s823 = sld [smem:[#allocation10 + $0x7f]]
        %v824 = vstv %s823
        %v825 = vmul.f32 %v824, %v617
        %v826 = vmul.f32 %v824, %v618
        %829 = vrot.lane.b32.xlu0 %v825, 127
        %v830 = vpop.permute.xlu0 %829
        %831 = vrot.lane.b32.xlu0 %v826, 127
        %v832 = vpop.permute.xlu0 %831
        %v835 = vadd.f32 %v779, %v830
        %v836 = vadd.f32 %v780, %v832
        %s837 = sld [smem:[#allocation10 + $0x1c]]
        %v838 = vstv %s837
        %v839 = vmul.f32 %v838, %v643
        %v840 = vmul.f32 %v838, %v644
        %843 = vrot.lane.b32.xlu0 %v839, 127
        %v844 = vpop.permute.xlu0 %843
        %845 = vrot.lane.b32.xlu0 %v840, 127
        %v846 = vpop.permute.xlu0 %845
        %v849 = vadd.f32 %v793, %v844
        %v850 = vadd.f32 %v794, %v846
        %s851 = sld [smem:[#allocation10 + $0x40]]
        %v852 = vstv %s851
        %v853 = vmul.f32 %v852, %v643
        %v854 = vmul.f32 %v852, %v644
        %857 = vrot.lane.b32.xlu0 %v853, 127
        %v858 = vpop.permute.xlu0 %857
        %859 = vrot.lane.b32.xlu0 %v854, 127
        %v860 = vpop.permute.xlu0 %859
        %v863 = vadd.f32 %v807, %v858
        %v864 = vadd.f32 %v808, %v860
        %s865 = sld [smem:[#allocation10 + $0x64]]
        %v866 = vstv %s865
        %v867 = vmul.f32 %v866, %v643
        %v868 = vmul.f32 %v866, %v644
        %871 = vrot.lane.b32.xlu0 %v867, 127
        %v872 = vpop.permute.xlu0 %871
        %873 = vrot.lane.b32.xlu0 %v868, 127
        %v874 = vpop.permute.xlu0 %873
        %v877 = vadd.f32 %v821, %v872
        %v878 = vadd.f32 %v822, %v874
        %s879 = sld [smem:[#allocation10 + $0x88]]
        %v880 = vstv %s879
        %v881 = vmul.f32 %v880, %v643
        %v882 = vmul.f32 %v880, %v644
        %885 = vrot.lane.b32.xlu0 %v881, 127
        %v886 = vpop.permute.xlu0 %885
        %887 = vrot.lane.b32.xlu0 %v882, 127
        %v888 = vpop.permute.xlu0 %887
        %v891 = vadd.f32 %v835, %v886
        %v892 = vadd.f32 %v836, %v888
        %s893 = sld [smem:[#allocation10 + $0x2]]
        %v894 = vstv %s893
        %v895 = vmul.f32 %v894, %v565
        %v896 = vmul.f32 %v894, %v566
        %899 = vrot.lane.b32.xlu0 %v895, 126
        %v900 = vpop.permute.xlu0 %899
        %901 = vrot.lane.b32.xlu0 %v896, 126
        %v902 = vpop.permute.xlu0 %901
        %v905 = vadd.f32 %v849, %v900
        %v906 = vadd.f32 %v850, %v902
        %s907 = sld [smem:[#allocation10 + $0x26]]
        %v908 = vstv %s907
        %v909 = vmul.f32 %v908, %v565
        %v910 = vmul.f32 %v908, %v566
        %913 = vrot.lane.b32.xlu0 %v909, 126
        %v914 = vpop.permute.xlu0 %913
        %915 = vrot.lane.b32.xlu0 %v910, 126
        %v916 = vpop.permute.xlu0 %915
        %v919 = vadd.f32 %v863, %v914
        %v920 = vadd.f32 %v864, %v916
        %s921 = sld [smem:[#allocation10 + $0x4a]]
        %v922 = vstv %s921
        %v923 = vmul.f32 %v922, %v565
        %v924 = vmul.f32 %v922, %v566
        %927 = vrot.lane.b32.xlu0 %v923, 126
        %v928 = vpop.permute.xlu0 %927
        %929 = vrot.lane.b32.xlu0 %v924, 126
        %v930 = vpop.permute.xlu0 %929
        %v933 = vadd.f32 %v877, %v928
        %v934 = vadd.f32 %v878, %v930
        %s935 = sld [smem:[#allocation10 + $0x6e]]
        %v936 = vstv %s935
        %v937 = vmul.f32 %v936, %v565
        %v938 = vmul.f32 %v936, %v566
        %941 = vrot.lane.b32.xlu0 %v937, 126
        %v942 = vpop.permute.xlu0 %941
        %943 = vrot.lane.b32.xlu0 %v938, 126
        %v944 = vpop.permute.xlu0 %943
        %v947 = vadd.f32 %v891, %v942
        %v948 = vadd.f32 %v892, %v944
        %s949 = sld [smem:[#allocation10 + $0xb]]
        %v950 = vstv %s949
        %v951 = vmul.f32 %v950, %v591
        %v952 = vmul.f32 %v950, %v592
        %955 = vrot.lane.b32.xlu0 %v951, 126
        %v956 = vpop.permute.xlu0 %955
        %957 = vrot.lane.b32.xlu0 %v952, 126
        %v958 = vpop.permute.xlu0 %957
        %v961 = vadd.f32 %v905, %v956
        %v962 = vadd.f32 %v906, %v958
        %s963 = sld [smem:[#allocation10 + $0x2f]]
        %v964 = vstv %s963
        %v965 = vmul.f32 %v964, %v591
        %v966 = vmul.f32 %v964, %v592
        %969 = vrot.lane.b32.xlu0 %v965, 126
        %v970 = vpop.permute.xlu0 %969
        %971 = vrot.lane.b32.xlu0 %v966, 126
        %v972 = vpop.permute.xlu0 %971
        %v975 = vadd.f32 %v919, %v970
        %v976 = vadd.f32 %v920, %v972
        %s977 = sld [smem:[#allocation10 + $0x53]]
        %v978 = vstv %s977
        %v979 = vmul.f32 %v978, %v591
        %v980 = vmul.f32 %v978, %v592
        %983 = vrot.lane.b32.xlu0 %v979, 126
        %v984 = vpop.permute.xlu0 %983
        %985 = vrot.lane.b32.xlu0 %v980, 126
        %v986 = vpop.permute.xlu0 %985
        %v989 = vadd.f32 %v933, %v984
        %v990 = vadd.f32 %v934, %v986
        %s991 = sld [smem:[#allocation10 + $0x77]]
        %v992 = vstv %s991
        %v993 = vmul.f32 %v992, %v591
        %v994 = vmul.f32 %v992, %v592
        %997 = vrot.lane.b32.xlu0 %v993, 126
        %v998 = vpop.permute.xlu0 %997
        %999 = vrot.lane.b32.xlu0 %v994, 126
        %v1000 = vpop.permute.xlu0 %999
        %v1003 = vadd.f32 %v947, %v998
        %v1004 = vadd.f32 %v948, %v1000
        %s1005 = sld [smem:[#allocation10 + $0x14]]
        %v1006 = vstv %s1005
        %v1007 = vmul.f32 %v1006, %v617
        %v1008 = vmul.f32 %v1006, %v618
        %1011 = vrot.lane.b32.xlu0 %v1007, 126
        %v1012 = vpop.permute.xlu0 %1011
        %1013 = vrot.lane.b32.xlu0 %v1008, 126
        %v1014 = vpop.permute.xlu0 %1013
        %v1017 = vadd.f32 %v961, %v1012
        %v1018 = vadd.f32 %v962, %v1014
        %s1019 = sld [smem:[#allocation10 + $0x38]]
        %v1020 = vstv %s1019
        %v1021 = vmul.f32 %v1020, %v617
        %v1022 = vmul.f32 %v1020, %v618
        %1025 = vrot.lane.b32.xlu0 %v1021, 126
        %v1026 = vpop.permute.xlu0 %1025
        %1027 = vrot.lane.b32.xlu0 %v1022, 126
        %v1028 = vpop.permute.xlu0 %1027
        %v1031 = vadd.f32 %v975, %v1026
        %v1032 = vadd.f32 %v976, %v1028
        %s1033 = sld [smem:[#allocation10 + $0x5c]]
        %v1034 = vstv %s1033
        %v1035 = vmul.f32 %v1034, %v617
        %v1036 = vmul.f32 %v1034, %v618
        %1039 = vrot.lane.b32.xlu0 %v1035, 126
        %v1040 = vpop.permute.xlu0 %1039
        %1041 = vrot.lane.b32.xlu0 %v1036, 126
        %v1042 = vpop.permute.xlu0 %1041
        %v1045 = vadd.f32 %v989, %v1040
        %v1046 = vadd.f32 %v990, %v1042
        %s1047 = sld [smem:[#allocation10 + $0x80]]
        %v1048 = vstv %s1047
        %v1049 = vmul.f32 %v1048, %v617
        %v1050 = vmul.f32 %v1048, %v618
        %1053 = vrot.lane.b32.xlu0 %v1049, 126
        %v1054 = vpop.permute.xlu0 %1053
        %1055 = vrot.lane.b32.xlu0 %v1050, 126
        %v1056 = vpop.permute.xlu0 %1055
        %v1059 = vadd.f32 %v1003, %v1054
        %v1060 = vadd.f32 %v1004, %v1056
        %s1061 = sld [smem:[#allocation10 + $0x1d]]
        %v1062 = vstv %s1061
        %v1063 = vmul.f32 %v1062, %v643
        %v1064 = vmul.f32 %v1062, %v644
        %1067 = vrot.lane.b32.xlu0 %v1063, 126
        %v1068 = vpop.permute.xlu0 %1067
        %1069 = vrot.lane.b32.xlu0 %v1064, 126
        %v1070 = vpop.permute.xlu0 %1069
        %v1073 = vadd.f32 %v1017, %v1068
        %v1074 = vadd.f32 %v1018, %v1070
        %s1075 = sld [smem:[#allocation10 + $0x41]]
        %v1076 = vstv %s1075
        %v1077 = vmul.f32 %v1076, %v643
        %v1078 = vmul.f32 %v1076, %v644
        %1081 = vrot.lane.b32.xlu0 %v1077, 126
        %v1082 = vpop.permute.xlu0 %1081
        %1083 = vrot.lane.b32.xlu0 %v1078, 126
        %v1084 = vpop.permute.xlu0 %1083
        %v1087 = vadd.f32 %v1031, %v1082
        %v1088 = vadd.f32 %v1032, %v1084
        %s1089 = sld [smem:[#allocation10 + $0x65]]
        %v1090 = vstv %s1089
        %v1091 = vmul.f32 %v1090, %v643
        %v1092 = vmul.f32 %v1090, %v644
        %1095 = vrot.lane.b32.xlu0 %v1091, 126
        %v1096 = vpop.permute.xlu0 %1095
        %1097 = vrot.lane.b32.xlu0 %v1092, 126
        %v1098 = vpop.permute.xlu0 %1097
        %v1101 = vadd.f32 %v1045, %v1096
        %v1102 = vadd.f32 %v1046, %v1098
        %s1103 = sld [smem:[#allocation10 + $0x89]]
        %v1104 = vstv %s1103
        %v1105 = vmul.f32 %v1104, %v643
        %v1106 = vmul.f32 %v1104, %v644
        %1109 = vrot.lane.b32.xlu0 %v1105, 126
        %v1110 = vpop.permute.xlu0 %1109
        %1111 = vrot.lane.b32.xlu0 %v1106, 126
        %v1112 = vpop.permute.xlu0 %1111
        %v1115 = vadd.f32 %v1059, %v1110
        %v1116 = vadd.f32 %v1060, %v1112
        %v1117 = vld [vmem:[#allocation2 + $0x1] sm:$0xff]
        %v1118 = vld [vmem:[#allocation2 + $0x9] sm:$0xff]
        %s1119 = sld [smem:[#allocation10 + $0x3]]
        %v1120 = vstv %s1119
        %v1121 = vmul.f32 %v1120, %v1117
        %v1122 = vmul.f32 %v1120, %v1118
        %v1123 = vadd.f32 %v1073, %v1121
        %v1124 = vadd.f32 %v1074, %v1122
        %s1125 = sld [smem:[#allocation10 + $0x27]]
        %v1126 = vstv %s1125
        %v1127 = vmul.f32 %v1126, %v1117
        %v1128 = vmul.f32 %v1126, %v1118
        %v1129 = vadd.f32 %v1087, %v1127
        %v1130 = vadd.f32 %v1088, %v1128
        %s1131 = sld [smem:[#allocation10 + $0x4b]]
        %v1132 = vstv %s1131
        %v1133 = vmul.f32 %v1132, %v1117
        %v1134 = vmul.f32 %v1132, %v1118
        %v1135 = vadd.f32 %v1101, %v1133
        %v1136 = vadd.f32 %v1102, %v1134
        %s1137 = sld [smem:[#allocation10 + $0x6f]]
        %v1138 = vstv %s1137
        %v1139 = vmul.f32 %v1138, %v1117
        %v1140 = vmul.f32 %v1138, %v1118
        %v1141 = vadd.f32 %v1115, %v1139
        %v1142 = vadd.f32 %v1116, %v1140
        %v1143 = vld [vmem:[%s532 + $0x1] sm:$0xff]
        %v1144 = vld [vmem:[%s532 + $0x9] sm:$0xff]
        %s1145 = sld [smem:[#allocation10 + $0xc]]
        %v1146 = vstv %s1145
        %v1147 = vmul.f32 %v1146, %v1143
        %v1148 = vmul.f32 %v1146, %v1144
        %v1149 = vadd.f32 %v1123, %v1147
        %v1150 = vadd.f32 %v1124, %v1148
        %s1151 = sld [smem:[#allocation10 + $0x30]]
        %v1152 = vstv %s1151
        %v1153 = vmul.f32 %v1152, %v1143
        %v1154 = vmul.f32 %v1152, %v1144
        %v1155 = vadd.f32 %v1129, %v1153
        %v1156 = vadd.f32 %v1130, %v1154
        %s1157 = sld [smem:[#allocation10 + $0x54]]
        %v1158 = vstv %s1157
        %v1159 = vmul.f32 %v1158, %v1143
        %v1160 = vmul.f32 %v1158, %v1144
        %v1161 = vadd.f32 %v1135, %v1159
        %v1162 = vadd.f32 %v1136, %v1160
        %s1163 = sld [smem:[#allocation10 + $0x78]]
        %v1164 = vstv %s1163
        %v1165 = vmul.f32 %v1164, %v1143
        %v1166 = vmul.f32 %v1164, %v1144
        %v1167 = vadd.f32 %v1141, %v1165
        %v1168 = vadd.f32 %v1142, %v1166
        %v1169 = vld [vmem:[%s543 + $0x1] sm:$0xff]
        %v1170 = vld [vmem:[%s543 + $0x9] sm:$0xff]
        %s1171 = sld [smem:[#allocation10 + $0x15]]
        %v1172 = vstv %s1171
        %v1173 = vmul.f32 %v1172, %v1169
        %v1174 = vmul.f32 %v1172, %v1170
        %v1175 = vadd.f32 %v1149, %v1173
        %v1176 = vadd.f32 %v1150, %v1174
        %s1177 = sld [smem:[#allocation10 + $0x39]]
        %v1178 = vstv %s1177
        %v1179 = vmul.f32 %v1178, %v1169
        %v1180 = vmul.f32 %v1178, %v1170
        %v1181 = vadd.f32 %v1155, %v1179
        %v1182 = vadd.f32 %v1156, %v1180
        %s1183 = sld [smem:[#allocation10 + $0x5d]]
        %v1184 = vstv %s1183
        %v1185 = vmul.f32 %v1184, %v1169
        %v1186 = vmul.f32 %v1184, %v1170
        %v1187 = vadd.f32 %v1161, %v1185
        %v1188 = vadd.f32 %v1162, %v1186
        %s1189 = sld [smem:[#allocation10 + $0x81]]
        %v1190 = vstv %s1189
        %v1191 = vmul.f32 %v1190, %v1169
        %v1192 = vmul.f32 %v1190, %v1170
        %v1193 = vadd.f32 %v1167, %v1191
        %v1194 = vadd.f32 %v1168, %v1192
        %v1195 = vld [vmem:[%s554 + $0x1] sm:$0xff]
        %v1196 = vld [vmem:[%s554 + $0x9] sm:$0xff]
        %s1197 = sld [smem:[#allocation10 + $0x1e]]
        %v1198 = vstv %s1197
        %v1199 = vmul.f32 %v1198, %v1195
        %v1200 = vmul.f32 %v1198, %v1196
        %v1201 = vadd.f32 %v1175, %v1199
        %v1202 = vadd.f32 %v1176, %v1200
        %s1203 = sld [smem:[#allocation10 + $0x42]]
        %v1204 = vstv %s1203
        %v1205 = vmul.f32 %v1204, %v1195
        %v1206 = vmul.f32 %v1204, %v1196
        %v1207 = vadd.f32 %v1181, %v1205
        %v1208 = vadd.f32 %v1182, %v1206
        %s1209 = sld [smem:[#allocation10 + $0x66]]
        %v1210 = vstv %s1209
        %v1211 = vmul.f32 %v1210, %v1195
        %v1212 = vmul.f32 %v1210, %v1196
        %v1213 = vadd.f32 %v1187, %v1211
        %v1214 = vadd.f32 %v1188, %v1212
        %s1215 = sld [smem:[#allocation10 + $0x8a]]
        %v1216 = vstv %s1215
        %v1217 = vmul.f32 %v1216, %v1195
        %v1218 = vmul.f32 %v1216, %v1196
        %v1219 = vadd.f32 %v1193, %v1217
        %v1220 = vadd.f32 %v1194, %v1218
        %s1221 = sld [smem:[#allocation10 + $0x4]]
        %v1222 = vstv %s1221
        %v1223 = vmul.f32 %v1222, %v1117
        %v1224 = vmul.f32 %v1222, %v1118
        %1227 = vrot.lane.b32.xlu0 %v1223, 127
        %v1228 = vpop.permute.xlu0 %1227
        %1229 = vrot.lane.b32.xlu0 %v1224, 127
        %v1230 = vpop.permute.xlu0 %1229
        %v1233 = vadd.f32 %v1201, %v1228
        %v1234 = vadd.f32 %v1202, %v1230
        %s1235 = sld [smem:[#allocation10 + $0x28]]
        %v1236 = vstv %s1235
        %v1237 = vmul.f32 %v1236, %v1117
        %v1238 = vmul.f32 %v1236, %v1118
        %1241 = vrot.lane.b32.xlu0 %v1237, 127
        %v1242 = vpop.permute.xlu0 %1241
        %1243 = vrot.lane.b32.xlu0 %v1238, 127
        %v1244 = vpop.permute.xlu0 %1243
        %v1247 = vadd.f32 %v1207, %v1242
        %v1248 = vadd.f32 %v1208, %v1244
        %s1249 = sld [smem:[#allocation10 + $0x4c]]
        %v1250 = vstv %s1249
        %v1251 = vmul.f32 %v1250, %v1117
        %v1252 = vmul.f32 %v1250, %v1118
        %1255 = vrot.lane.b32.xlu0 %v1251, 127
        %v1256 = vpop.permute.xlu0 %1255
        %1257 = vrot.lane.b32.xlu0 %v1252, 127
        %v1258 = vpop.permute.xlu0 %1257
        %v1261 = vadd.f32 %v1213, %v1256
        %v1262 = vadd.f32 %v1214, %v1258
        %s1263 = sld [smem:[#allocation10 + $0x70]]
        %v1264 = vstv %s1263
        %v1265 = vmul.f32 %v1264, %v1117
        %v1266 = vmul.f32 %v1264, %v1118
        %1269 = vrot.lane.b32.xlu0 %v1265, 127
        %v1270 = vpop.permute.xlu0 %1269
        %1271 = vrot.lane.b32.xlu0 %v1266, 127
        %v1272 = vpop.permute.xlu0 %1271
        %v1275 = vadd.f32 %v1219, %v1270
        %v1276 = vadd.f32 %v1220, %v1272
        %s1277 = sld [smem:[#allocation10 + $0xd]]
        %v1278 = vstv %s1277
        %v1279 = vmul.f32 %v1278, %v1143
        %v1280 = vmul.f32 %v1278, %v1144
        %1283 = vrot.lane.b32.xlu0 %v1279, 127
        %v1284 = vpop.permute.xlu0 %1283
        %1285 = vrot.lane.b32.xlu0 %v1280, 127
        %v1286 = vpop.permute.xlu0 %1285
        %v1289 = vadd.f32 %v1233, %v1284
        %v1290 = vadd.f32 %v1234, %v1286
        %s1291 = sld [smem:[#allocation10 + $0x31]]
        %v1292 = vstv %s1291
        %v1293 = vmul.f32 %v1292, %v1143
        %v1294 = vmul.f32 %v1292, %v1144
        %1297 = vrot.lane.b32.xlu0 %v1293, 127
        %v1298 = vpop.permute.xlu0 %1297
        %1299 = vrot.lane.b32.xlu0 %v1294, 127
        %v1300 = vpop.permute.xlu0 %1299
        %v1303 = vadd.f32 %v1247, %v1298
        %v1304 = vadd.f32 %v1248, %v1300
        %s1305 = sld [smem:[#allocation10 + $0x55]]
        %v1306 = vstv %s1305
        %v1307 = vmul.f32 %v1306, %v1143
        %v1308 = vmul.f32 %v1306, %v1144
        %1311 = vrot.lane.b32.xlu0 %v1307, 127
        %v1312 = vpop.permute.xlu0 %1311
        %1313 = vrot.lane.b32.xlu0 %v1308, 127
        %v1314 = vpop.permute.xlu0 %1313
        %v1317 = vadd.f32 %v1261, %v1312
        %v1318 = vadd.f32 %v1262, %v1314
        %s1319 = sld [smem:[#allocation10 + $0x79]]
        %v1320 = vstv %s1319
        %v1321 = vmul.f32 %v1320, %v1143
        %v1322 = vmul.f32 %v1320, %v1144
        %1325 = vrot.lane.b32.xlu0 %v1321, 127
        %v1326 = vpop.permute.xlu0 %1325
        %1327 = vrot.lane.b32.xlu0 %v1322, 127
        %v1328 = vpop.permute.xlu0 %1327
        %v1331 = vadd.f32 %v1275, %v1326
        %v1332 = vadd.f32 %v1276, %v1328
        %s1333 = sld [smem:[#allocation10 + $0x16]]
        %v1334 = vstv %s1333
        %v1335 = vmul.f32 %v1334, %v1169
        %v1336 = vmul.f32 %v1334, %v1170
        %1339 = vrot.lane.b32.xlu0 %v1335, 127
        %v1340 = vpop.permute.xlu0 %1339
        %1341 = vrot.lane.b32.xlu0 %v1336, 127
        %v1342 = vpop.permute.xlu0 %1341
        %v1345 = vadd.f32 %v1289, %v1340
        %v1346 = vadd.f32 %v1290, %v1342
        %s1347 = sld [smem:[#allocation10 + $0x3a]]
        %v1348 = vstv %s1347
        %v1349 = vmul.f32 %v1348, %v1169
        %v1350 = vmul.f32 %v1348, %v1170
        %1353 = vrot.lane.b32.xlu0 %v1349, 127
        %v1354 = vpop.permute.xlu0 %1353
        %1355 = vrot.lane.b32.xlu0 %v1350, 127
        %v1356 = vpop.permute.xlu0 %1355
        %v1359 = vadd.f32 %v1303, %v1354
        %v1360 = vadd.f32 %v1304, %v1356
        %s1361 = sld [smem:[#allocation10 + $0x5e]]
        %v1362 = vstv %s1361
        %v1363 = vmul.f32 %v1362, %v1169
        %v1364 = vmul.f32 %v1362, %v1170
        %1367 = vrot.lane.b32.xlu0 %v1363, 127
        %v1368 = vpop.permute.xlu0 %1367
        %1369 = vrot.lane.b32.xlu0 %v1364, 127
        %v1370 = vpop.permute.xlu0 %1369
        %v1373 = vadd.f32 %v1317, %v1368
        %v1374 = vadd.f32 %v1318, %v1370
        %s1375 = sld [smem:[#allocation10 + $0x82]]
        %v1376 = vstv %s1375
        %v1377 = vmul.f32 %v1376, %v1169
        %v1378 = vmul.f32 %v1376, %v1170
        %1381 = vrot.lane.b32.xlu0 %v1377, 127
        %v1382 = vpop.permute.xlu0 %1381
        %1383 = vrot.lane.b32.xlu0 %v1378, 127
        %v1384 = vpop.permute.xlu0 %1383
        %v1387 = vadd.f32 %v1331, %v1382
        %v1388 = vadd.f32 %v1332, %v1384
        %s1389 = sld [smem:[#allocation10 + $0x1f]]
        %v1390 = vstv %s1389
        %v1391 = vmul.f32 %v1390, %v1195
        %v1392 = vmul.f32 %v1390, %v1196
        %1395 = vrot.lane.b32.xlu0 %v1391, 127
        %v1396 = vpop.permute.xlu0 %1395
        %1397 = vrot.lane.b32.xlu0 %v1392, 127
        %v1398 = vpop.permute.xlu0 %1397
        %v1401 = vadd.f32 %v1345, %v1396
        %v1402 = vadd.f32 %v1346, %v1398
        %s1403 = sld [smem:[#allocation10 + $0x43]]
        %v1404 = vstv %s1403
        %v1405 = vmul.f32 %v1404, %v1195
        %v1406 = vmul.f32 %v1404, %v1196
        %1409 = vrot.lane.b32.xlu0 %v1405, 127
        %v1410 = vpop.permute.xlu0 %1409
        %1411 = vrot.lane.b32.xlu0 %v1406, 127
        %v1412 = vpop.permute.xlu0 %1411
        %v1415 = vadd.f32 %v1359, %v1410
        %v1416 = vadd.f32 %v1360, %v1412
        %s1417 = sld [smem:[#allocation10 + $0x67]]
        %v1418 = vstv %s1417
        %v1419 = vmul.f32 %v1418, %v1195
        %v1420 = vmul.f32 %v1418, %v1196
        %1423 = vrot.lane.b32.xlu0 %v1419, 127
        %v1424 = vpop.permute.xlu0 %1423
        %1425 = vrot.lane.b32.xlu0 %v1420, 127
        %v1426 = vpop.permute.xlu0 %1425
        %v1429 = vadd.f32 %v1373, %v1424
        %v1430 = vadd.f32 %v1374, %v1426
        %s1431 = sld [smem:[#allocation10 + $0x8b]]
        %v1432 = vstv %s1431
        %v1433 = vmul.f32 %v1432, %v1195
        %v1434 = vmul.f32 %v1432, %v1196
        %1437 = vrot.lane.b32.xlu0 %v1433, 127
        %v1438 = vpop.permute.xlu0 %1437
        %1439 = vrot.lane.b32.xlu0 %v1434, 127
        %v1440 = vpop.permute.xlu0 %1439
        %v1443 = vadd.f32 %v1387, %v1438
        %v1444 = vadd.f32 %v1388, %v1440
        %s1445 = sld [smem:[#allocation10 + $0x5]]
        %v1446 = vstv %s1445
        %v1447 = vmul.f32 %v1446, %v1117
        %v1448 = vmul.f32 %v1446, %v1118
        %1451 = vrot.lane.b32.xlu0 %v1447, 126
        %v1452 = vpop.permute.xlu0 %1451
        %1453 = vrot.lane.b32.xlu0 %v1448, 126
        %v1454 = vpop.permute.xlu0 %1453
        %v1457 = vadd.f32 %v1401, %v1452
        %v1458 = vadd.f32 %v1402, %v1454
        %s1459 = sld [smem:[#allocation10 + $0x29]]
        %v1460 = vstv %s1459
        %v1461 = vmul.f32 %v1460, %v1117
        %v1462 = vmul.f32 %v1460, %v1118
        %1465 = vrot.lane.b32.xlu0 %v1461, 126
        %v1466 = vpop.permute.xlu0 %1465
        %1467 = vrot.lane.b32.xlu0 %v1462, 126
        %v1468 = vpop.permute.xlu0 %1467
        %v1471 = vadd.f32 %v1415, %v1466
        %v1472 = vadd.f32 %v1416, %v1468
        %s1473 = sld [smem:[#allocation10 + $0x4d]]
        %v1474 = vstv %s1473
        %v1475 = vmul.f32 %v1474, %v1117
        %v1476 = vmul.f32 %v1474, %v1118
        %1479 = vrot.lane.b32.xlu0 %v1475, 126
        %v1480 = vpop.permute.xlu0 %1479
        %1481 = vrot.lane.b32.xlu0 %v1476, 126
        %v1482 = vpop.permute.xlu0 %1481
        %v1485 = vadd.f32 %v1429, %v1480
        %v1486 = vadd.f32 %v1430, %v1482
        %s1487 = sld [smem:[#allocation10 + $0x71]]
        %v1488 = vstv %s1487
        %v1489 = vmul.f32 %v1488, %v1117
        %v1490 = vmul.f32 %v1488, %v1118
        %1493 = vrot.lane.b32.xlu0 %v1489, 126
        %v1494 = vpop.permute.xlu0 %1493
        %1495 = vrot.lane.b32.xlu0 %v1490, 126
        %v1496 = vpop.permute.xlu0 %1495
        %v1499 = vadd.f32 %v1443, %v1494
        %v1500 = vadd.f32 %v1444, %v1496
        %s1501 = sld [smem:[#allocation10 + $0xe]]
        %v1502 = vstv %s1501
        %v1503 = vmul.f32 %v1502, %v1143
        %v1504 = vmul.f32 %v1502, %v1144
        %1507 = vrot.lane.b32.xlu0 %v1503, 126
        %v1508 = vpop.permute.xlu0 %1507
        %1509 = vrot.lane.b32.xlu0 %v1504, 126
        %v1510 = vpop.permute.xlu0 %1509
        %v1513 = vadd.f32 %v1457, %v1508
        %v1514 = vadd.f32 %v1458, %v1510
        %s1515 = sld [smem:[#allocation10 + $0x32]]
        %v1516 = vstv %s1515
        %v1517 = vmul.f32 %v1516, %v1143
        %v1518 = vmul.f32 %v1516, %v1144
        %1521 = vrot.lane.b32.xlu0 %v1517, 126
        %v1522 = vpop.permute.xlu0 %1521
        %1523 = vrot.lane.b32.xlu0 %v1518, 126
        %v1524 = vpop.permute.xlu0 %1523
        %v1527 = vadd.f32 %v1471, %v1522
        %v1528 = vadd.f32 %v1472, %v1524
        %s1529 = sld [smem:[#allocation10 + $0x56]]
        %v1530 = vstv %s1529
        %v1531 = vmul.f32 %v1530, %v1143
        %v1532 = vmul.f32 %v1530, %v1144
        %1535 = vrot.lane.b32.xlu0 %v1531, 126
        %v1536 = vpop.permute.xlu0 %1535
        %1537 = vrot.lane.b32.xlu0 %v1532, 126
        %v1538 = vpop.permute.xlu0 %1537
        %v1541 = vadd.f32 %v1485, %v1536
        %v1542 = vadd.f32 %v1486, %v1538
        %s1543 = sld [smem:[#allocation10 + $0x7a]]
        %v1544 = vstv %s1543
        %v1545 = vmul.f32 %v1544, %v1143
        %v1546 = vmul.f32 %v1544, %v1144
        %1549 = vrot.lane.b32.xlu0 %v1545, 126
        %v1550 = vpop.permute.xlu0 %1549
        %1551 = vrot.lane.b32.xlu0 %v1546, 126
        %v1552 = vpop.permute.xlu0 %1551
        %v1555 = vadd.f32 %v1499, %v1550
        %v1556 = vadd.f32 %v1500, %v1552
        %s1557 = sld [smem:[#allocation10 + $0x17]]
        %v1558 = vstv %s1557
        %v1559 = vmul.f32 %v1558, %v1169
        %v1560 = vmul.f32 %v1558, %v1170
        %1563 = vrot.lane.b32.xlu0 %v1559, 126
        %v1564 = vpop.permute.xlu0 %1563
        %1565 = vrot.lane.b32.xlu0 %v1560, 126
        %v1566 = vpop.permute.xlu0 %1565
        %v1569 = vadd.f32 %v1513, %v1564
        %v1570 = vadd.f32 %v1514, %v1566
        %s1571 = sld [smem:[#allocation10 + $0x3b]]
        %v1572 = vstv %s1571
        %v1573 = vmul.f32 %v1572, %v1169
        %v1574 = vmul.f32 %v1572, %v1170
        %1577 = vrot.lane.b32.xlu0 %v1573, 126
        %v1578 = vpop.permute.xlu0 %1577
        %1579 = vrot.lane.b32.xlu0 %v1574, 126
        %v1580 = vpop.permute.xlu0 %1579
        %v1583 = vadd.f32 %v1527, %v1578
        %v1584 = vadd.f32 %v1528, %v1580
        %s1585 = sld [smem:[#allocation10 + $0x5f]]
        %v1586 = vstv %s1585
        %v1587 = vmul.f32 %v1586, %v1169
        %v1588 = vmul.f32 %v1586, %v1170
        %1591 = vrot.lane.b32.xlu0 %v1587, 126
        %v1592 = vpop.permute.xlu0 %1591
        %1593 = vrot.lane.b32.xlu0 %v1588, 126
        %v1594 = vpop.permute.xlu0 %1593
        %v1597 = vadd.f32 %v1541, %v1592
        %v1598 = vadd.f32 %v1542, %v1594
        %s1599 = sld [smem:[#allocation10 + $0x83]]
        %v1600 = vstv %s1599
        %v1601 = vmul.f32 %v1600, %v1169
        %v1602 = vmul.f32 %v1600, %v1170
        %1605 = vrot.lane.b32.xlu0 %v1601, 126
        %v1606 = vpop.permute.xlu0 %1605
        %1607 = vrot.lane.b32.xlu0 %v1602, 126
        %v1608 = vpop.permute.xlu0 %1607
        %v1611 = vadd.f32 %v1555, %v1606
        %v1612 = vadd.f32 %v1556, %v1608
        %s1613 = sld [smem:[#allocation10 + $0x20]]
        %v1614 = vstv %s1613
        %v1615 = vmul.f32 %v1614, %v1195
        %v1616 = vmul.f32 %v1614, %v1196
        %1619 = vrot.lane.b32.xlu0 %v1615, 126
        %v1620 = vpop.permute.xlu0 %1619
        %1621 = vrot.lane.b32.xlu0 %v1616, 126
        %v1622 = vpop.permute.xlu0 %1621
        %v1625 = vadd.f32 %v1569, %v1620
        %v1626 = vadd.f32 %v1570, %v1622
        %s1627 = sld [smem:[#allocation10 + $0x44]]
        %v1628 = vstv %s1627
        %v1629 = vmul.f32 %v1628, %v1195
        %v1630 = vmul.f32 %v1628, %v1196
        %1633 = vrot.lane.b32.xlu0 %v1629, 126
        %v1634 = vpop.permute.xlu0 %1633
        %1635 = vrot.lane.b32.xlu0 %v1630, 126
        %v1636 = vpop.permute.xlu0 %1635
        %v1639 = vadd.f32 %v1583, %v1634
        %v1640 = vadd.f32 %v1584, %v1636
        %s1641 = sld [smem:[#allocation10 + $0x68]]
        %v1642 = vstv %s1641
        %v1643 = vmul.f32 %v1642, %v1195
        %v1644 = vmul.f32 %v1642, %v1196
        %1647 = vrot.lane.b32.xlu0 %v1643, 126
        %v1648 = vpop.permute.xlu0 %1647
        %1649 = vrot.lane.b32.xlu0 %v1644, 126
        %v1650 = vpop.permute.xlu0 %1649
        %v1653 = vadd.f32 %v1597, %v1648
        %v1654 = vadd.f32 %v1598, %v1650
        %s1655 = sld [smem:[#allocation10 + $0x8c]]
        %v1656 = vstv %s1655
        %v1657 = vmul.f32 %v1656, %v1195
        %v1658 = vmul.f32 %v1656, %v1196
        %1661 = vrot.lane.b32.xlu0 %v1657, 126
        %v1662 = vpop.permute.xlu0 %1661
        %1663 = vrot.lane.b32.xlu0 %v1658, 126
        %v1664 = vpop.permute.xlu0 %1663
        %v1667 = vadd.f32 %v1611, %v1662
        %v1668 = vadd.f32 %v1612, %v1664
        %v1669 = vld [vmem:[#allocation2 + $0x2] sm:$0xff]
        %v1670 = vld [vmem:[#allocation2 + $0xa] sm:$0xff]
        %s1671 = sld [smem:[#allocation10 + $0x6]]
        %v1672 = vstv %s1671
        %v1673 = vmul.f32 %v1672, %v1669
        %v1674 = vmul.f32 %v1672, %v1670
        %v1675 = vadd.f32 %v1625, %v1673
        %v1676 = vadd.f32 %v1626, %v1674
        %s1677 = sld [smem:[#allocation10 + $0x2a]]
        %v1678 = vstv %s1677
        %v1679 = vmul.f32 %v1678, %v1669
        %v1680 = vmul.f32 %v1678, %v1670
        %v1681 = vadd.f32 %v1639, %v1679
        %v1682 = vadd.f32 %v1640, %v1680
        %s1683 = sld [smem:[#allocation10 + $0x4e]]
        %v1684 = vstv %s1683
        %v1685 = vmul.f32 %v1684, %v1669
        %v1686 = vmul.f32 %v1684, %v1670
        %v1687 = vadd.f32 %v1653, %v1685
        %v1688 = vadd.f32 %v1654, %v1686
        %s1689 = sld [smem:[#allocation10 + $0x72]]
        %v1690 = vstv %s1689
        %v1691 = vmul.f32 %v1690, %v1669
        %v1692 = vmul.f32 %v1690, %v1670
        %v1693 = vadd.f32 %v1667, %v1691
        %v1694 = vadd.f32 %v1668, %v1692
        %v1695 = vld [vmem:[%s532 + $0x2] sm:$0xff]
        %v1696 = vld [vmem:[%s532 + $0xa] sm:$0xff]
        %s1697 = sld [smem:[#allocation10 + $0xf]]
        %v1698 = vstv %s1697
        %v1699 = vmul.f32 %v1698, %v1695
        %v1700 = vmul.f32 %v1698, %v1696
        %v1701 = vadd.f32 %v1675, %v1699
        %v1702 = vadd.f32 %v1676, %v1700
        %s1703 = sld [smem:[#allocation10 + $0x33]]
        %v1704 = vstv %s1703
        %v1705 = vmul.f32 %v1704, %v1695
        %v1706 = vmul.f32 %v1704, %v1696
        %v1707 = vadd.f32 %v1681, %v1705
        %v1708 = vadd.f32 %v1682, %v1706
        %s1709 = sld [smem:[#allocation10 + $0x57]]
        %v1710 = vstv %s1709
        %v1711 = vmul.f32 %v1710, %v1695
        %v1712 = vmul.f32 %v1710, %v1696
        %v1713 = vadd.f32 %v1687, %v1711
        %v1714 = vadd.f32 %v1688, %v1712
        %s1715 = sld [smem:[#allocation10 + $0x7b]]
        %v1716 = vstv %s1715
        %v1717 = vmul.f32 %v1716, %v1695
        %v1718 = vmul.f32 %v1716, %v1696
        %v1719 = vadd.f32 %v1693, %v1717
        %v1720 = vadd.f32 %v1694, %v1718
        %v1721 = vld [vmem:[%s543 + $0x2] sm:$0xff]
        %v1722 = vld [vmem:[%s543 + $0xa] sm:$0xff]
        %s1723 = sld [smem:[#allocation10 + $0x18]]
        %v1724 = vstv %s1723
        %v1725 = vmul.f32 %v1724, %v1721
        %v1726 = vmul.f32 %v1724, %v1722
        %v1727 = vadd.f32 %v1701, %v1725
        %v1728 = vadd.f32 %v1702, %v1726
        %s1729 = sld [smem:[#allocation10 + $0x3c]]
        %v1730 = vstv %s1729
        %v1731 = vmul.f32 %v1730, %v1721
        %v1732 = vmul.f32 %v1730, %v1722
        %v1733 = vadd.f32 %v1707, %v1731
        %v1734 = vadd.f32 %v1708, %v1732
        %s1735 = sld [smem:[#allocation10 + $0x60]]
        %v1736 = vstv %s1735
        %v1737 = vmul.f32 %v1736, %v1721
        %v1738 = vmul.f32 %v1736, %v1722
        %v1739 = vadd.f32 %v1713, %v1737
        %v1740 = vadd.f32 %v1714, %v1738
        %s1741 = sld [smem:[#allocation10 + $0x84]]
        %v1742 = vstv %s1741
        %v1743 = vmul.f32 %v1742, %v1721
        %v1744 = vmul.f32 %v1742, %v1722
        %v1745 = vadd.f32 %v1719, %v1743
        %v1746 = vadd.f32 %v1720, %v1744
        %v1747 = vld [vmem:[%s554 + $0x2] sm:$0xff]
        %v1748 = vld [vmem:[%s554 + $0xa] sm:$0xff]
        %s1749 = sld [smem:[#allocation10 + $0x21]]
        %v1750 = vstv %s1749
        %v1751 = vmul.f32 %v1750, %v1747
        %v1752 = vmul.f32 %v1750, %v1748
        %v1753 = vadd.f32 %v1727, %v1751
        %v1754 = vadd.f32 %v1728, %v1752
        %s1755 = sld [smem:[#allocation10 + $0x45]]
        %v1756 = vstv %s1755
        %v1757 = vmul.f32 %v1756, %v1747
        %v1758 = vmul.f32 %v1756, %v1748
        %v1759 = vadd.f32 %v1733, %v1757
        %v1760 = vadd.f32 %v1734, %v1758
        %s1761 = sld [smem:[#allocation10 + $0x69]]
        %v1762 = vstv %s1761
        %v1763 = vmul.f32 %v1762, %v1747
        %v1764 = vmul.f32 %v1762, %v1748
        %v1765 = vadd.f32 %v1739, %v1763
        %v1766 = vadd.f32 %v1740, %v1764
        %s1767 = sld [smem:[#allocation10 + $0x8d]]
        %v1768 = vstv %s1767
        %v1769 = vmul.f32 %v1768, %v1747
        %v1770 = vmul.f32 %v1768, %v1748
        %v1771 = vadd.f32 %v1745, %v1769
        %v1772 = vadd.f32 %v1746, %v1770
        %s1773 = sld [smem:[#allocation10 + $0x7]]
        %v1774 = vstv %s1773
        %v1775 = vmul.f32 %v1774, %v1669
        %v1776 = vmul.f32 %v1774, %v1670
        %1779 = vrot.lane.b32.xlu0 %v1775, 127
        %v1780 = vpop.permute.xlu0 %1779
        %1781 = vrot.lane.b32.xlu0 %v1776, 127
        %v1782 = vpop.permute.xlu0 %1781
        %v1785 = vadd.f32 %v1753, %v1780
        %v1786 = vadd.f32 %v1754, %v1782
        %s1787 = sld [smem:[#allocation10 + $0x2b]]
        %v1788 = vstv %s1787
        %v1789 = vmul.f32 %v1788, %v1669
        %v1790 = vmul.f32 %v1788, %v1670
        %1793 = vrot.lane.b32.xlu0 %v1789, 127
        %v1794 = vpop.permute.xlu0 %1793
        %1795 = vrot.lane.b32.xlu0 %v1790, 127
        %v1796 = vpop.permute.xlu0 %1795
        %v1799 = vadd.f32 %v1759, %v1794
        %v1800 = vadd.f32 %v1760, %v1796
        %s1801 = sld [smem:[#allocation10 + $0x4f]]
        %v1802 = vstv %s1801
        %v1803 = vmul.f32 %v1802, %v1669
        %v1804 = vmul.f32 %v1802, %v1670
        %1807 = vrot.lane.b32.xlu0 %v1803, 127
        %v1808 = vpop.permute.xlu0 %1807
        %1809 = vrot.lane.b32.xlu0 %v1804, 127
        %v1810 = vpop.permute.xlu0 %1809
        %v1813 = vadd.f32 %v1765, %v1808
        %v1814 = vadd.f32 %v1766, %v1810
        %s1815 = sld [smem:[#allocation10 + $0x73]]
        %v1816 = vstv %s1815
        %v1817 = vmul.f32 %v1816, %v1669
        %v1818 = vmul.f32 %v1816, %v1670
        %1821 = vrot.lane.b32.xlu0 %v1817, 127
        %v1822 = vpop.permute.xlu0 %1821
        %1823 = vrot.lane.b32.xlu0 %v1818, 127
        %v1824 = vpop.permute.xlu0 %1823
        %v1827 = vadd.f32 %v1771, %v1822
        %v1828 = vadd.f32 %v1772, %v1824
        %s1829 = sld [smem:[#allocation10 + $0x10]]
        %v1830 = vstv %s1829
        %v1831 = vmul.f32 %v1830, %v1695
        %v1832 = vmul.f32 %v1830, %v1696
        %1835 = vrot.lane.b32.xlu0 %v1831, 127
        %v1836 = vpop.permute.xlu0 %1835
        %1837 = vrot.lane.b32.xlu0 %v1832, 127
        %v1838 = vpop.permute.xlu0 %1837
        %v1841 = vadd.f32 %v1785, %v1836
        %v1842 = vadd.f32 %v1786, %v1838
        %s1843 = sld [smem:[#allocation10 + $0x34]]
        %v1844 = vstv %s1843
        %v1845 = vmul.f32 %v1844, %v1695
        %v1846 = vmul.f32 %v1844, %v1696
        %1849 = vrot.lane.b32.xlu0 %v1845, 127
        %v1850 = vpop.permute.xlu0 %1849
        %1851 = vrot.lane.b32.xlu0 %v1846, 127
        %v1852 = vpop.permute.xlu0 %1851
        %v1855 = vadd.f32 %v1799, %v1850
        %v1856 = vadd.f32 %v1800, %v1852
        %s1857 = sld [smem:[#allocation10 + $0x58]]
        %v1858 = vstv %s1857
        %v1859 = vmul.f32 %v1858, %v1695
        %v1860 = vmul.f32 %v1858, %v1696
        %1863 = vrot.lane.b32.xlu0 %v1859, 127
        %v1864 = vpop.permute.xlu0 %1863
        %1865 = vrot.lane.b32.xlu0 %v1860, 127
        %v1866 = vpop.permute.xlu0 %1865
        %v1869 = vadd.f32 %v1813, %v1864
        %v1870 = vadd.f32 %v1814, %v1866
        %s1871 = sld [smem:[#allocation10 + $0x7c]]
        %v1872 = vstv %s1871
        %v1873 = vmul.f32 %v1872, %v1695
        %v1874 = vmul.f32 %v1872, %v1696
        %1877 = vrot.lane.b32.xlu0 %v1873, 127
        %v1878 = vpop.permute.xlu0 %1877
        %1879 = vrot.lane.b32.xlu0 %v1874, 127
        %v1880 = vpop.permute.xlu0 %1879
        %v1883 = vadd.f32 %v1827, %v1878
        %v1884 = vadd.f32 %v1828, %v1880
        %s1885 = sld [smem:[#allocation10 + $0x19]]
        %v1886 = vstv %s1885
        %v1887 = vmul.f32 %v1886, %v1721
        %v1888 = vmul.f32 %v1886, %v1722
        %1891 = vrot.lane.b32.xlu0 %v1887, 127
        %v1892 = vpop.permute.xlu0 %1891
        %1893 = vrot.lane.b32.xlu0 %v1888, 127
        %v1894 = vpop.permute.xlu0 %1893
        %v1897 = vadd.f32 %v1841, %v1892
        %v1898 = vadd.f32 %v1842, %v1894
        %s1899 = sld [smem:[#allocation10 + $0x3d]]
        %v1900 = vstv %s1899
        %v1901 = vmul.f32 %v1900, %v1721
        %v1902 = vmul.f32 %v1900, %v1722
        %1905 = vrot.lane.b32.xlu0 %v1901, 127
        %v1906 = vpop.permute.xlu0 %1905
        %1907 = vrot.lane.b32.xlu0 %v1902, 127
        %v1908 = vpop.permute.xlu0 %1907
        %v1911 = vadd.f32 %v1855, %v1906
        %v1912 = vadd.f32 %v1856, %v1908
        %s1913 = sld [smem:[#allocation10 + $0x61]]
        %v1914 = vstv %s1913
        %v1915 = vmul.f32 %v1914, %v1721
        %v1916 = vmul.f32 %v1914, %v1722
        %1919 = vrot.lane.b32.xlu0 %v1915, 127
        %v1920 = vpop.permute.xlu0 %1919
        %1921 = vrot.lane.b32.xlu0 %v1916, 127
        %v1922 = vpop.permute.xlu0 %1921
        %v1925 = vadd.f32 %v1869, %v1920
        %v1926 = vadd.f32 %v1870, %v1922
        %s1927 = sld [smem:[#allocation10 + $0x85]]
        %v1928 = vstv %s1927
        %v1929 = vmul.f32 %v1928, %v1721
        %v1930 = vmul.f32 %v1928, %v1722
        %1933 = vrot.lane.b32.xlu0 %v1929, 127
        %v1934 = vpop.permute.xlu0 %1933
        %1935 = vrot.lane.b32.xlu0 %v1930, 127
        %v1936 = vpop.permute.xlu0 %1935
        %v1939 = vadd.f32 %v1883, %v1934
        %v1940 = vadd.f32 %v1884, %v1936
        %s1941 = sld [smem:[#allocation10 + $0x22]]
        %v1942 = vstv %s1941
        %v1943 = vmul.f32 %v1942, %v1747
        %v1944 = vmul.f32 %v1942, %v1748
        %1947 = vrot.lane.b32.xlu0 %v1943, 127
        %v1948 = vpop.permute.xlu0 %1947
        %1949 = vrot.lane.b32.xlu0 %v1944, 127
        %v1950 = vpop.permute.xlu0 %1949
        %v1953 = vadd.f32 %v1897, %v1948
        %v1954 = vadd.f32 %v1898, %v1950
        %s1955 = sld [smem:[#allocation10 + $0x46]]
        %v1956 = vstv %s1955
        %v1957 = vmul.f32 %v1956, %v1747
        %v1958 = vmul.f32 %v1956, %v1748
        %1961 = vrot.lane.b32.xlu0 %v1957, 127
        %v1962 = vpop.permute.xlu0 %1961
        %1963 = vrot.lane.b32.xlu0 %v1958, 127
        %v1964 = vpop.permute.xlu0 %1963
        %v1967 = vadd.f32 %v1911, %v1962
        %v1968 = vadd.f32 %v1912, %v1964
        %s1969 = sld [smem:[#allocation10 + $0x6a]]
        %v1970 = vstv %s1969
        %v1971 = vmul.f32 %v1970, %v1747
        %v1972 = vmul.f32 %v1970, %v1748
        %1975 = vrot.lane.b32.xlu0 %v1971, 127
        %v1976 = vpop.permute.xlu0 %1975
        %1977 = vrot.lane.b32.xlu0 %v1972, 127
        %v1978 = vpop.permute.xlu0 %1977
        %v1981 = vadd.f32 %v1925, %v1976
        %v1982 = vadd.f32 %v1926, %v1978
        %s1983 = sld [smem:[#allocation10 + $0x8e]]
        %v1984 = vstv %s1983
        %v1985 = vmul.f32 %v1984, %v1747
        %v1986 = vmul.f32 %v1984, %v1748
        %1989 = vrot.lane.b32.xlu0 %v1985, 127
        %v1990 = vpop.permute.xlu0 %1989
        %1991 = vrot.lane.b32.xlu0 %v1986, 127
        %v1992 = vpop.permute.xlu0 %1991
        %v1995 = vadd.f32 %v1939, %v1990
        %v1996 = vadd.f32 %v1940, %v1992
        %s1997 = sld [smem:[#allocation10 + $0x8]]
        %v1998 = vstv %s1997
        %v1999 = vmul.f32 %v1998, %v1669
        %v2000 = vmul.f32 %v1998, %v1670
        %2003 = vrot.lane.b32.xlu0 %v1999, 126
        %v2004 = vpop.permute.xlu0 %2003
        %2005 = vrot.lane.b32.xlu0 %v2000, 126
        %v2006 = vpop.permute.xlu0 %2005
        %v2009 = vadd.f32 %v1953, %v2004
        %v2010 = vadd.f32 %v1954, %v2006
        %s2011 = sld [smem:[#allocation10 + $0x2c]]
        %v2012 = vstv %s2011
        %v2013 = vmul.f32 %v2012, %v1669
        %v2014 = vmul.f32 %v2012, %v1670
        %2017 = vrot.lane.b32.xlu0 %v2013, 126
        %v2018 = vpop.permute.xlu0 %2017
        %2019 = vrot.lane.b32.xlu0 %v2014, 126
        %v2020 = vpop.permute.xlu0 %2019
        %v2023 = vadd.f32 %v1967, %v2018
        %v2024 = vadd.f32 %v1968, %v2020
        %s2025 = sld [smem:[#allocation10 + $0x50]]
        %v2026 = vstv %s2025
        %v2027 = vmul.f32 %v2026, %v1669
        %v2028 = vmul.f32 %v2026, %v1670
        %2031 = vrot.lane.b32.xlu0 %v2027, 126
        %v2032 = vpop.permute.xlu0 %2031
        %2033 = vrot.lane.b32.xlu0 %v2028, 126
        %v2034 = vpop.permute.xlu0 %2033
        %v2037 = vadd.f32 %v1981, %v2032
        %v2038 = vadd.f32 %v1982, %v2034
        %s2039 = sld [smem:[#allocation10 + $0x74]]
        %v2040 = vstv %s2039
        %v2041 = vmul.f32 %v2040, %v1669
        %v2042 = vmul.f32 %v2040, %v1670
        %2045 = vrot.lane.b32.xlu0 %v2041, 126
        %v2046 = vpop.permute.xlu0 %2045
        %2047 = vrot.lane.b32.xlu0 %v2042, 126
        %v2048 = vpop.permute.xlu0 %2047
        %v2051 = vadd.f32 %v1995, %v2046
        %v2052 = vadd.f32 %v1996, %v2048
        %s2053 = sld [smem:[#allocation10 + $0x11]]
        %v2054 = vstv %s2053
        %v2055 = vmul.f32 %v2054, %v1695
        %v2056 = vmul.f32 %v2054, %v1696
        %2059 = vrot.lane.b32.xlu0 %v2055, 126
        %v2060 = vpop.permute.xlu0 %2059
        %2061 = vrot.lane.b32.xlu0 %v2056, 126
        %v2062 = vpop.permute.xlu0 %2061
        %v2065 = vadd.f32 %v2009, %v2060
        %v2066 = vadd.f32 %v2010, %v2062
        %s2067 = sld [smem:[#allocation10 + $0x35]]
        %v2068 = vstv %s2067
        %v2069 = vmul.f32 %v2068, %v1695
        %v2070 = vmul.f32 %v2068, %v1696
        %2073 = vrot.lane.b32.xlu0 %v2069, 126
        %v2074 = vpop.permute.xlu0 %2073
        %2075 = vrot.lane.b32.xlu0 %v2070, 126
        %v2076 = vpop.permute.xlu0 %2075
        %v2079 = vadd.f32 %v2023, %v2074
        %v2080 = vadd.f32 %v2024, %v2076
        %s2081 = sld [smem:[#allocation10 + $0x59]]
        %v2082 = vstv %s2081
        %v2083 = vmul.f32 %v2082, %v1695
        %v2084 = vmul.f32 %v2082, %v1696
        %2087 = vrot.lane.b32.xlu0 %v2083, 126
        %v2088 = vpop.permute.xlu0 %2087
        %2089 = vrot.lane.b32.xlu0 %v2084, 126
        %v2090 = vpop.permute.xlu0 %2089
        %v2093 = vadd.f32 %v2037, %v2088
        %v2094 = vadd.f32 %v2038, %v2090
        %s2095 = sld [smem:[#allocation10 + $0x7d]]
        %v2096 = vstv %s2095
        %v2097 = vmul.f32 %v2096, %v1695
        %v2098 = vmul.f32 %v2096, %v1696
        %2101 = vrot.lane.b32.xlu0 %v2097, 126
        %v2102 = vpop.permute.xlu0 %2101
        %2103 = vrot.lane.b32.xlu0 %v2098, 126
        %v2104 = vpop.permute.xlu0 %2103
        %v2107 = vadd.f32 %v2051, %v2102
        %v2108 = vadd.f32 %v2052, %v2104
        %s2109 = sld [smem:[#allocation10 + $0x1a]]
        %v2110 = vstv %s2109
        %v2111 = vmul.f32 %v2110, %v1721
        %v2112 = vmul.f32 %v2110, %v1722
        %2115 = vrot.lane.b32.xlu0 %v2111, 126
        %v2116 = vpop.permute.xlu0 %2115
        %2117 = vrot.lane.b32.xlu0 %v2112, 126
        %v2118 = vpop.permute.xlu0 %2117
        %v2121 = vadd.f32 %v2065, %v2116
        %v2122 = vadd.f32 %v2066, %v2118
        %s2123 = sld [smem:[#allocation10 + $0x3e]]
        %v2124 = vstv %s2123
        %v2125 = vmul.f32 %v2124, %v1721
        %v2126 = vmul.f32 %v2124, %v1722
        %2129 = vrot.lane.b32.xlu0 %v2125, 126
        %v2130 = vpop.permute.xlu0 %2129
        %2131 = vrot.lane.b32.xlu0 %v2126, 126
        %v2132 = vpop.permute.xlu0 %2131
        %v2135 = vadd.f32 %v2079, %v2130
        %v2136 = vadd.f32 %v2080, %v2132
        %s2137 = sld [smem:[#allocation10 + $0x62]]
        %v2138 = vstv %s2137
        %v2139 = vmul.f32 %v2138, %v1721
        %v2140 = vmul.f32 %v2138, %v1722
        %2143 = vrot.lane.b32.xlu0 %v2139, 126
        %v2144 = vpop.permute.xlu0 %2143
        %2145 = vrot.lane.b32.xlu0 %v2140, 126
        %v2146 = vpop.permute.xlu0 %2145
        %v2149 = vadd.f32 %v2093, %v2144
        %v2150 = vadd.f32 %v2094, %v2146
        %s2151 = sld [smem:[#allocation10 + $0x86]]
        %v2152 = vstv %s2151
        %v2153 = vmul.f32 %v2152, %v1721
        %v2154 = vmul.f32 %v2152, %v1722
        %2157 = vrot.lane.b32.xlu0 %v2153, 126
        %v2158 = vpop.permute.xlu0 %2157
        %2159 = vrot.lane.b32.xlu0 %v2154, 126
        %v2160 = vpop.permute.xlu0 %2159
        %v2163 = vadd.f32 %v2107, %v2158
        %v2164 = vadd.f32 %v2108, %v2160
        %s2165 = sld [smem:[#allocation10 + $0x23]]
        %v2166 = vstv %s2165
        %v2167 = vmul.f32 %v2166, %v1747
        %v2168 = vmul.f32 %v2166, %v1748
        %2171 = vrot.lane.b32.xlu0 %v2167, 126
        %v2172 = vpop.permute.xlu0 %2171
        %2173 = vrot.lane.b32.xlu0 %v2168, 126
        %v2174 = vpop.permute.xlu0 %2173
        %v2177 = vadd.f32 %v2121, %v2172
        %v2178 = vadd.f32 %v2122, %v2174
        %s2179 = sld [smem:[#allocation10 + $0x47]]
        %v2180 = vstv %s2179
        %v2181 = vmul.f32 %v2180, %v1747
        %v2182 = vmul.f32 %v2180, %v1748
        %2185 = vrot.lane.b32.xlu0 %v2181, 126
        %v2186 = vpop.permute.xlu0 %2185
        %2187 = vrot.lane.b32.xlu0 %v2182, 126
        %v2188 = vpop.permute.xlu0 %2187
        %v2191 = vadd.f32 %v2135, %v2186
        %v2192 = vadd.f32 %v2136, %v2188
        %s2193 = sld [smem:[#allocation10 + $0x6b]]
        %v2194 = vstv %s2193
        %v2195 = vmul.f32 %v2194, %v1747
        %v2196 = vmul.f32 %v2194, %v1748
        %2199 = vrot.lane.b32.xlu0 %v2195, 126
        %v2200 = vpop.permute.xlu0 %2199
        %2201 = vrot.lane.b32.xlu0 %v2196, 126
        %v2202 = vpop.permute.xlu0 %2201
        %v2205 = vadd.f32 %v2149, %v2200
        %v2206 = vadd.f32 %v2150, %v2202
        %s2207 = sld [smem:[#allocation10 + $0x8f]]
        %v2208 = vstv %s2207
        %v2209 = vmul.f32 %v2208, %v1747
        %v2210 = vmul.f32 %v2208, %v1748
        %2213 = vrot.lane.b32.xlu0 %v2209, 126
        %v2214 = vpop.permute.xlu0 %2213
        %2215 = vrot.lane.b32.xlu0 %v2210, 126
        %v2216 = vpop.permute.xlu0 %2215
        %v2219 = vadd.f32 %v2163, %v2214
        %v2220 = vadd.f32 %v2164, %v2216
        %v2221 = vmax.f32 %v2177, 0.0
        %v2222 = vmax.f32 %v2178, 0.0
        %v2223 = vmax.f32 %v2191, 0.0
        %v2224 = vmax.f32 %v2192, 0.0
        %v2225 = vmax.f32 %v2205, 0.0
        %v2226 = vmax.f32 %v2206, 0.0
        %v2227 = vmax.f32 %v2219, 0.0
        %v2228 = vmax.f32 %v2220, 0.0
        %2231 = vrot.lane.b32.xlu0 %v2221, 1
        %v2232 = vpop.permute.xlu0 %2231
        %2233 = vrot.lane.b32.xlu0 %v2222, 1
        %v2234 = vpop.permute.xlu0 %2233
        %2237 = vst.msk [vmem:[#allocation2 + $0x1] sm:$0xff] %vm521, %v2232
        %2238 = vst.msk [vmem:[#allocation2 + $0x9] sm:$0xff] %vm521, %v2234
        %2241 = vrot.lane.b32.xlu0 %v2223, 1
        %v2242 = vpop.permute.xlu0 %2241
        %2243 = vrot.lane.b32.xlu0 %v2224, 1
        %v2244 = vpop.permute.xlu0 %2243
        %2247 = vst.msk [vmem:[%s532 + $0x1] sm:$0xff] %vm521, %v2242
        %2248 = vst.msk [vmem:[%s532 + $0x9] sm:$0xff] %vm521, %v2244
        %2251 = vrot.lane.b32.xlu0 %v2225, 1
        %v2252 = vpop.permute.xlu0 %2251
        %2253 = vrot.lane.b32.xlu0 %v2226, 1
        %v2254 = vpop.permute.xlu0 %2253
        %2257 = vst.msk [vmem:[%s543 + $0x1] sm:$0xff] %vm521, %v2252
        %2258 = vst.msk [vmem:[%s543 + $0x9] sm:$0xff] %vm521, %v2254
        %2261 = vrot.lane.b32.xlu0 %v2227, 1
        %v2262 = vpop.permute.xlu0 %2261
        %2263 = vrot.lane.b32.xlu0 %v2228, 1
        %v2264 = vpop.permute.xlu0 %2263
        %2267 = vst.msk [vmem:[%s554 + $0x1] sm:$0xff] %vm521, %v2262
        %2268 = vst.msk [vmem:[%s554 + $0x9] sm:$0xff] %vm521, %v2264
        %s2269 = sld [smem:[#allocation14]]
        %v2270 = vstv %s2269
        %s2271 = sld [smem:[#allocation14 + $0x1]]
        %v2272 = vstv %s2271
        %s2273 = sld [smem:[#allocation14 + $0x2]]
        %v2274 = vstv %s2273
        %s2275 = sld [smem:[#allocation14 + $0x3]]
        %v2276 = vstv %s2275
        %v2277 = vld [vmem:[#allocation2] sm:$0xff]
        %v2278 = vld [vmem:[#allocation2 + $0x8] sm:$0xff]
        %s2279 = sld [smem:[#allocation13]]
        %v2280 = vstv %s2279
        %v2281 = vmul.f32 %v2280, %v2277
        %v2282 = vmul.f32 %v2280, %v2278
        %v2283 = vadd.f32 %v2270, %v2281
        %v2284 = vadd.f32 %v2270, %v2282
        %s2285 = sld [smem:[#allocation13 + $0x24]]
        %v2286 = vstv %s2285
        %v2287 = vmul.f32 %v2286, %v2277
        %v2288 = vmul.f32 %v2286, %v2278
        %v2289 = vadd.f32 %v2272, %v2287
        %v2290 = vadd.f32 %v2272, %v2288
        %s2291 = sld [smem:[#allocation13 + $0x48]]
        %v2292 = vstv %s2291
        %v2293 = vmul.f32 %v2292, %v2277
        %v2294 = vmul.f32 %v2292, %v2278
        %v2295 = vadd.f32 %v2274, %v2293
        %v2296 = vadd.f32 %v2274, %v2294
        %s2297 = sld [smem:[#allocation13 + $0x6c]]
        %v2298 = vstv %s2297
        %v2299 = vmul.f32 %v2298, %v2277
        %v2300 = vmul.f32 %v2298, %v2278
        %v2301 = vadd.f32 %v2276, %v2299
        %v2302 = vadd.f32 %v2276, %v2300
        %v2303 = vld [vmem:[%s532] sm:$0xff]
        %v2304 = vld [vmem:[%s532 + $0x8] sm:$0xff]
        %s2305 = sld [smem:[#allocation13 + $0x9]]
        %v2306 = vstv %s2305
        %v2307 = vmul.f32 %v2306, %v2303
        %v2308 = vmul.f32 %v2306, %v2304
        %v2309 = vadd.f32 %v2283, %v2307
        %v2310 = vadd.f32 %v2284, %v2308
        %s2311 = sld [smem:[#allocation13 + $0x2d]]
        %v2312 = vstv %s2311
        %v2313 = vmul.f32 %v2312, %v2303
        %v2314 = vmul.f32 %v2312, %v2304
        %v2315 = vadd.f32 %v2289, %v2313
        %v2316 = vadd.f32 %v2290, %v2314
        %s2317 = sld [smem:[#allocation13 + $0x51]]
        %v2318 = vstv %s2317
        %v2319 = vmul.f32 %v2318, %v2303
        %v2320 = vmul.f32 %v2318, %v2304
        %v2321 = vadd.f32 %v2295, %v2319
        %v2322 = vadd.f32 %v2296, %v2320
        %s2323 = sld [smem:[#allocation13 + $0x75]]
        %v2324 = vstv %s2323
        %v2325 = vmul.f32 %v2324, %v2303
        %v2326 = vmul.f32 %v2324, %v2304
        %v2327 = vadd.f32 %v2301, %v2325
        %v2328 = vadd.f32 %v2302, %v2326
        %v2329 = vld [vmem:[%s543] sm:$0xff]
        %v2330 = vld [vmem:[%s543 + $0x8] sm:$0xff]
        %s2331 = sld [smem:[#allocation13 + $0x12]]
        %v2332 = vstv %s2331
        %v2333 = vmul.f32 %v2332, %v2329
        %v2334 = vmul.f32 %v2332, %v2330
        %v2335 = vadd.f32 %v2309, %v2333
        %v2336 = vadd.f32 %v2310, %v2334
        %s2337 = sld [smem:[#allocation13 + $0x36]]
        %v2338 = vstv %s2337
        %v2339 = vmul.f32 %v2338, %v2329
        %v2340 = vmul.f32 %v2338, %v2330
        %v2341 = vadd.f32 %v2315, %v2339
        %v2342 = vadd.f32 %v2316, %v2340
        %s2343 = sld [smem:[#allocation13 + $0x5a]]
        %v2344 = vstv %s2343
        %v2345 = vmul.f32 %v2344, %v2329
        %v2346 = vmul.f32 %v2344, %v2330
        %v2347 = vadd.f32 %v2321, %v2345
        %v2348 = vadd.f32 %v2322, %v2346
        %s2349 = sld [smem:[#allocation13 + $0x7e]]
        %v2350 = vstv %s2349
        %v2351 = vmul.f32 %v2350, %v2329
        %v2352 = vmul.f32 %v2350, %v2330
        %v2353 = vadd.f32 %v2327, %v2351
        %v2354 = vadd.f32 %v2328, %v2352
        %v2355 = vld [vmem:[%s554] sm:$0xff]
        %v2356 = vld [vmem:[%s554 + $0x8] sm:$0xff]
        %s2357 = sld [smem:[#allocation13 + $0x1b]]
        %v2358 = vstv %s2357
        %v2359 = vmul.f32 %v2358, %v2355
        %v2360 = vmul.f32 %v2358, %v2356
        %v2361 = vadd.f32 %v2335, %v2359
        %v2362 = vadd.f32 %v2336, %v2360
        %s2363 = sld [smem:[#allocation13 + $0x3f]]
        %v2364 = vstv %s2363
        %v2365 = vmul.f32 %v2364, %v2355
        %v2366 = vmul.f32 %v2364, %v2356
        %v2367 = vadd.f32 %v2341, %v2365
        %v2368 = vadd.f32 %v2342, %v2366
        %s2369 = sld [smem:[#allocation13 + $0x63]]
        %v2370 = vstv %s2369
        %v2371 = vmul.f32 %v2370, %v2355
        %v2372 = vmul.f32 %v2370, %v2356
        %v2373 = vadd.f32 %v2347, %v2371
        %v2374 = vadd.f32 %v2348, %v2372
        %s2375 = sld [smem:[#allocation13 + $0x87]]
        %v2376 = vstv %s2375
        %v2377 = vmul.f32 %v2376, %v2355
        %v2378 = vmul.f32 %v2376, %v2356
        %v2379 = vadd.f32 %v2353, %v2377
        %v2380 = vadd.f32 %v2354, %v2378
        %s2381 = sld [smem:[#allocation13 + $0x1]]
        %v2382 = vstv %s2381
        %v2383 = vmul.f32 %v2382, %v2277
        %v2384 = vmul.f32 %v2382, %v2278
        %2387 = vrot.lane.b32.xlu0 %v2383, 127
        %v2388 = vpop.permute.xlu0 %2387
        %2389 = vrot.lane.b32.xlu0 %v2384, 127
        %v2390 = vpop.permute.xlu0 %2389
        %v2393 = vadd.f32 %v2361, %v2388
        %v2394 = vadd.f32 %v2362, %v2390
        %s2395 = sld [smem:[#allocation13 + $0x25]]
        %v2396 = vstv %s2395
        %v2397 = vmul.f32 %v2396, %v2277
        %v2398 = vmul.f32 %v2396, %v2278
        %2401 = vrot.lane.b32.xlu0 %v2397, 127
        %v2402 = vpop.permute.xlu0 %2401
        %2403 = vrot.lane.b32.xlu0 %v2398, 127
        %v2404 = vpop.permute.xlu0 %2403
        %v2407 = vadd.f32 %v2367, %v2402
        %v2408 = vadd.f32 %v2368, %v2404
        %s2409 = sld [smem:[#allocation13 + $0x49]]
        %v2410 = vstv %s2409
        %v2411 = vmul.f32 %v2410, %v2277
        %v2412 = vmul.f32 %v2410, %v2278
        %2415 = vrot.lane.b32.xlu0 %v2411, 127
        %v2416 = vpop.permute.xlu0 %2415
        %2417 = vrot.lane.b32.xlu0 %v2412, 127
        %v2418 = vpop.permute.xlu0 %2417
        %v2421 = vadd.f32 %v2373, %v2416
        %v2422 = vadd.f32 %v2374, %v2418
        %s2423 = sld [smem:[#allocation13 + $0x6d]]
        %v2424 = vstv %s2423
        %v2425 = vmul.f32 %v2424, %v2277
        %v2426 = vmul.f32 %v2424, %v2278
        %2429 = vrot.lane.b32.xlu0 %v2425, 127
        %v2430 = vpop.permute.xlu0 %2429
        %2431 = vrot.lane.b32.xlu0 %v2426, 127
        %v2432 = vpop.permute.xlu0 %2431
        %v2435 = vadd.f32 %v2379, %v2430
        %v2436 = vadd.f32 %v2380, %v2432
        %s2437 = sld [smem:[#allocation13 + $0xa]]
        %v2438 = vstv %s2437
        %v2439 = vmul.f32 %v2438, %v2303
        %v2440 = vmul.f32 %v2438, %v2304
        %2443 = vrot.lane.b32.xlu0 %v2439, 127
        %v2444 = vpop.permute.xlu0 %2443
        %2445 = vrot.lane.b32.xlu0 %v2440, 127
        %v2446 = vpop.permute.xlu0 %2445
        %v2449 = vadd.f32 %v2393, %v2444
        %v2450 = vadd.f32 %v2394, %v2446
        %s2451 = sld [smem:[#allocation13 + $0x2e]]
        %v2452 = vstv %s2451
        %v2453 = vmul.f32 %v2452, %v2303
        %v2454 = vmul.f32 %v2452, %v2304
        %2457 = vrot.lane.b32.xlu0 %v2453, 127
        %v2458 = vpop.permute.xlu0 %2457
        %2459 = vrot.lane.b32.xlu0 %v2454, 127
        %v2460 = vpop.permute.xlu0 %2459
        %v2463 = vadd.f32 %v2407, %v2458
        %v2464 = vadd.f32 %v2408, %v2460
        %s2465 = sld [smem:[#allocation13 + $0x52]]
        %v2466 = vstv %s2465
        %v2467 = vmul.f32 %v2466, %v2303
        %v2468 = vmul.f32 %v2466, %v2304
        %2471 = vrot.lane.b32.xlu0 %v2467, 127
        %v2472 = vpop.permute.xlu0 %2471
        %2473 = vrot.lane.b32.xlu0 %v2468, 127
        %v2474 = vpop.permute.xlu0 %2473
        %v2477 = vadd.f32 %v2421, %v2472
        %v2478 = vadd.f32 %v2422, %v2474
        %s2479 = sld [smem:[#allocation13 + $0x76]]
        %v2480 = vstv %s2479
        %v2481 = vmul.f32 %v2480, %v2303
        %v2482 = vmul.f32 %v2480, %v2304
        %2485 = vrot.lane.b32.xlu0 %v2481, 127
        %v2486 = vpop.permute.xlu0 %2485
        %2487 = vrot.lane.b32.xlu0 %v2482, 127
        %v2488 = vpop.permute.xlu0 %2487
        %v2491 = vadd.f32 %v2435, %v2486
        %v2492 = vadd.f32 %v2436, %v2488
        %s2493 = sld [smem:[#allocation13 + $0x13]]
        %v2494 = vstv %s2493
        %v2495 = vmul.f32 %v2494, %v2329
        %v2496 = vmul.f32 %v2494, %v2330
        %2499 = vrot.lane.b32.xlu0 %v2495, 127
        %v2500 = vpop.permute.xlu0 %2499
        %2501 = vrot.lane.b32.xlu0 %v2496, 127
        %v2502 = vpop.permute.xlu0 %2501
        %v2505 = vadd.f32 %v2449, %v2500
        %v2506 = vadd.f32 %v2450, %v2502
        %s2507 = sld [smem:[#allocation13 + $0x37]]
        %v2508 = vstv %s2507
        %v2509 = vmul.f32 %v2508, %v2329
        %v2510 = vmul.f32 %v2508, %v2330
        %2513 = vrot.lane.b32.xlu0 %v2509, 127
        %v2514 = vpop.permute.xlu0 %2513
        %2515 = vrot.lane.b32.xlu0 %v2510, 127
        %v2516 = vpop.permute.xlu0 %2515
        %v2519 = vadd.f32 %v2463, %v2514
        %v2520 = vadd.f32 %v2464, %v2516
        %s2521 = sld [smem:[#allocation13 + $0x5b]]
        %v2522 = vstv %s2521
        %v2523 = vmul.f32 %v2522, %v2329
        %v2524 = vmul.f32 %v2522, %v2330
        %2527 = vrot.lane.b32.xlu0 %v2523, 127
        %v2528 = vpop.permute.xlu0 %2527
        %2529 = vrot.lane.b32.xlu0 %v2524, 127
        %v2530 = vpop.permute.xlu0 %2529
        %v2533 = vadd.f32 %v2477, %v2528
        %v2534 = vadd.f32 %v2478, %v2530
        %s2535 = sld [smem:[#allocation13 + $0x7f]]
        %v2536 = vstv %s2535
        %v2537 = vmul.f32 %v2536, %v2329
        %v2538 = vmul.f32 %v2536, %v2330
        %2541 = vrot.lane.b32.xlu0 %v2537, 127
        %v2542 = vpop.permute.xlu0 %2541
        %2543 = vrot.lane.b32.xlu0 %v2538, 127
        %v2544 = vpop.permute.xlu0 %2543
        %v2547 = vadd.f32 %v2491, %v2542
        %v2548 = vadd.f32 %v2492, %v2544
        %s2549 = sld [smem:[#allocation13 + $0x1c]]
        %v2550 = vstv %s2549
        %v2551 = vmul.f32 %v2550, %v2355
        %v2552 = vmul.f32 %v2550, %v2356
        %2555 = vrot.lane.b32.xlu0 %v2551, 127
        %v2556 = vpop.permute.xlu0 %2555
        %2557 = vrot.lane.b32.xlu0 %v2552, 127
        %v2558 = vpop.permute.xlu0 %2557
        %v2561 = vadd.f32 %v2505, %v2556
        %v2562 = vadd.f32 %v2506, %v2558
        %s2563 = sld [smem:[#allocation13 + $0x40]]
        %v2564 = vstv %s2563
        %v2565 = vmul.f32 %v2564, %v2355
        %v2566 = vmul.f32 %v2564, %v2356
        %2569 = vrot.lane.b32.xlu0 %v2565, 127
        %v2570 = vpop.permute.xlu0 %2569
        %2571 = vrot.lane.b32.xlu0 %v2566, 127
        %v2572 = vpop.permute.xlu0 %2571
        %v2575 = vadd.f32 %v2519, %v2570
        %v2576 = vadd.f32 %v2520, %v2572
        %s2577 = sld [smem:[#allocation13 + $0x64]]
        %v2578 = vstv %s2577
        %v2579 = vmul.f32 %v2578, %v2355
        %v2580 = vmul.f32 %v2578, %v2356
        %2583 = vrot.lane.b32.xlu0 %v2579, 127
        %v2584 = vpop.permute.xlu0 %2583
        %2585 = vrot.lane.b32.xlu0 %v2580, 127
        %v2586 = vpop.permute.xlu0 %2585
        %v2589 = vadd.f32 %v2533, %v2584
        %v2590 = vadd.f32 %v2534, %v2586
        %s2591 = sld [smem:[#allocation13 + $0x88]]
        %v2592 = vstv %s2591
        %v2593 = vmul.f32 %v2592, %v2355
        %v2594 = vmul.f32 %v2592, %v2356
        %2597 = vrot.lane.b32.xlu0 %v2593, 127
        %v2598 = vpop.permute.xlu0 %2597
        %2599 = vrot.lane.b32.xlu0 %v2594, 127
        %v2600 = vpop.permute.xlu0 %2599
        %v2603 = vadd.f32 %v2547, %v2598
        %v2604 = vadd.f32 %v2548, %v2600
        %s2605 = sld [smem:[#allocation13 + $0x2]]
        %v2606 = vstv %s2605
        %v2607 = vmul.f32 %v2606, %v2277
        %v2608 = vmul.f32 %v2606, %v2278
        %2611 = vrot.lane.b32.xlu0 %v2607, 126
        %v2612 = vpop.permute.xlu0 %2611
        %2613 = vrot.lane.b32.xlu0 %v2608, 126
        %v2614 = vpop.permute.xlu0 %2613
        %v2617 = vadd.f32 %v2561, %v2612
        %v2618 = vadd.f32 %v2562, %v2614
        %s2619 = sld [smem:[#allocation13 + $0x26]]
        %v2620 = vstv %s2619
        %v2621 = vmul.f32 %v2620, %v2277
        %v2622 = vmul.f32 %v2620, %v2278
        %2625 = vrot.lane.b32.xlu0 %v2621, 126
        %v2626 = vpop.permute.xlu0 %2625
        %2627 = vrot.lane.b32.xlu0 %v2622, 126
        %v2628 = vpop.permute.xlu0 %2627
        %v2631 = vadd.f32 %v2575, %v2626
        %v2632 = vadd.f32 %v2576, %v2628
        %s2633 = sld [smem:[#allocation13 + $0x4a]]
        %v2634 = vstv %s2633
        %v2635 = vmul.f32 %v2634, %v2277
        %v2636 = vmul.f32 %v2634, %v2278
        %2639 = vrot.lane.b32.xlu0 %v2635, 126
        %v2640 = vpop.permute.xlu0 %2639
        %2641 = vrot.lane.b32.xlu0 %v2636, 126
        %v2642 = vpop.permute.xlu0 %2641
        %v2645 = vadd.f32 %v2589, %v2640
        %v2646 = vadd.f32 %v2590, %v2642
        %s2647 = sld [smem:[#allocation13 + $0x6e]]
        %v2648 = vstv %s2647
        %v2649 = vmul.f32 %v2648, %v2277
        %v2650 = vmul.f32 %v2648, %v2278
        %2653 = vrot.lane.b32.xlu0 %v2649, 126
        %v2654 = vpop.permute.xlu0 %2653
        %2655 = vrot.lane.b32.xlu0 %v2650, 126
        %v2656 = vpop.permute.xlu0 %2655
        %v2659 = vadd.f32 %v2603, %v2654
        %v2660 = vadd.f32 %v2604, %v2656
        %s2661 = sld [smem:[#allocation13 + $0xb]]
        %v2662 = vstv %s2661
        %v2663 = vmul.f32 %v2662, %v2303
        %v2664 = vmul.f32 %v2662, %v2304
        %2667 = vrot.lane.b32.xlu0 %v2663, 126
        %v2668 = vpop.permute.xlu0 %2667
        %2669 = vrot.lane.b32.xlu0 %v2664, 126
        %v2670 = vpop.permute.xlu0 %2669
        %v2673 = vadd.f32 %v2617, %v2668
        %v2674 = vadd.f32 %v2618, %v2670
        %s2675 = sld [smem:[#allocation13 + $0x2f]]
        %v2676 = vstv %s2675
        %v2677 = vmul.f32 %v2676, %v2303
        %v2678 = vmul.f32 %v2676, %v2304
        %2681 = vrot.lane.b32.xlu0 %v2677, 126
        %v2682 = vpop.permute.xlu0 %2681
        %2683 = vrot.lane.b32.xlu0 %v2678, 126
        %v2684 = vpop.permute.xlu0 %2683
        %v2687 = vadd.f32 %v2631, %v2682
        %v2688 = vadd.f32 %v2632, %v2684
        %s2689 = sld [smem:[#allocation13 + $0x53]]
        %v2690 = vstv %s2689
        %v2691 = vmul.f32 %v2690, %v2303
        %v2692 = vmul.f32 %v2690, %v2304
        %2695 = vrot.lane.b32.xlu0 %v2691, 126
        %v2696 = vpop.permute.xlu0 %2695
        %2697 = vrot.lane.b32.xlu0 %v2692, 126
        %v2698 = vpop.permute.xlu0 %2697
        %v2701 = vadd.f32 %v2645, %v2696
        %v2702 = vadd.f32 %v2646, %v2698
        %s2703 = sld [smem:[#allocation13 + $0x77]]
        %v2704 = vstv %s2703
        %v2705 = vmul.f32 %v2704, %v2303
        %v2706 = vmul.f32 %v2704, %v2304
        %2709 = vrot.lane.b32.xlu0 %v2705, 126
        %v2710 = vpop.permute.xlu0 %2709
        %2711 = vrot.lane.b32.xlu0 %v2706, 126
        %v2712 = vpop.permute.xlu0 %2711
        %v2715 = vadd.f32 %v2659, %v2710
        %v2716 = vadd.f32 %v2660, %v2712
        %s2717 = sld [smem:[#allocation13 + $0x14]]
        %v2718 = vstv %s2717
        %v2719 = vmul.f32 %v2718, %v2329
        %v2720 = vmul.f32 %v2718, %v2330
        %2723 = vrot.lane.b32.xlu0 %v2719, 126
        %v2724 = vpop.permute.xlu0 %2723
        %2725 = vrot.lane.b32.xlu0 %v2720, 126
        %v2726 = vpop.permute.xlu0 %2725
        %v2729 = vadd.f32 %v2673, %v2724
        %v2730 = vadd.f32 %v2674, %v2726
        %s2731 = sld [smem:[#allocation13 + $0x38]]
        %v2732 = vstv %s2731
        %v2733 = vmul.f32 %v2732, %v2329
        %v2734 = vmul.f32 %v2732, %v2330
        %2737 = vrot.lane.b32.xlu0 %v2733, 126
        %v2738 = vpop.permute.xlu0 %2737
        %2739 = vrot.lane.b32.xlu0 %v2734, 126
        %v2740 = vpop.permute.xlu0 %2739
        %v2743 = vadd.f32 %v2687, %v2738
        %v2744 = vadd.f32 %v2688, %v2740
        %s2745 = sld [smem:[#allocation13 + $0x5c]]
        %v2746 = vstv %s2745
        %v2747 = vmul.f32 %v2746, %v2329
        %v2748 = vmul.f32 %v2746, %v2330
        %2751 = vrot.lane.b32.xlu0 %v2747, 126
        %v2752 = vpop.permute.xlu0 %2751
        %2753 = vrot.lane.b32.xlu0 %v2748, 126
        %v2754 = vpop.permute.xlu0 %2753
        %v2757 = vadd.f32 %v2701, %v2752
        %v2758 = vadd.f32 %v2702, %v2754
        %s2759 = sld [smem:[#allocation13 + $0x80]]
        %v2760 = vstv %s2759
        %v2761 = vmul.f32 %v2760, %v2329
        %v2762 = vmul.f32 %v2760, %v2330
        %2765 = vrot.lane.b32.xlu0 %v2761, 126
        %v2766 = vpop.permute.xlu0 %2765
        %2767 = vrot.lane.b32.xlu0 %v2762, 126
        %v2768 = vpop.permute.xlu0 %2767
        %v2771 = vadd.f32 %v2715, %v2766
        %v2772 = vadd.f32 %v2716, %v2768
        %s2773 = sld [smem:[#allocation13 + $0x1d]]
        %v2774 = vstv %s2773
        %v2775 = vmul.f32 %v2774, %v2355
        %v2776 = vmul.f32 %v2774, %v2356
        %2779 = vrot.lane.b32.xlu0 %v2775, 126
        %v2780 = vpop.permute.xlu0 %2779
        %2781 = vrot.lane.b32.xlu0 %v2776, 126
        %v2782 = vpop.permute.xlu0 %2781
        %v2785 = vadd.f32 %v2729, %v2780
        %v2786 = vadd.f32 %v2730, %v2782
        %s2787 = sld [smem:[#allocation13 + $0x41]]
        %v2788 = vstv %s2787
        %v2789 = vmul.f32 %v2788, %v2355
        %v2790 = vmul.f32 %v2788, %v2356
        %2793 = vrot.lane.b32.xlu0 %v2789, 126
        %v2794 = vpop.permute.xlu0 %2793
        %2795 = vrot.lane.b32.xlu0 %v2790, 126
        %v2796 = vpop.permute.xlu0 %2795
        %v2799 = vadd.f32 %v2743, %v2794
        %v2800 = vadd.f32 %v2744, %v2796
        %s2801 = sld [smem:[#allocation13 + $0x65]]
        %v2802 = vstv %s2801
        %v2803 = vmul.f32 %v2802, %v2355
        %v2804 = vmul.f32 %v2802, %v2356
        %2807 = vrot.lane.b32.xlu0 %v2803, 126
        %v2808 = vpop.permute.xlu0 %2807
        %2809 = vrot.lane.b32.xlu0 %v2804, 126
        %v2810 = vpop.permute.xlu0 %2809
        %v2813 = vadd.f32 %v2757, %v2808
        %v2814 = vadd.f32 %v2758, %v2810
        %s2815 = sld [smem:[#allocation13 + $0x89]]
        %v2816 = vstv %s2815
        %v2817 = vmul.f32 %v2816, %v2355
        %v2818 = vmul.f32 %v2816, %v2356
        %2821 = vrot.lane.b32.xlu0 %v2817, 126
        %v2822 = vpop.permute.xlu0 %2821
        %2823 = vrot.lane.b32.xlu0 %v2818, 126
        %v2824 = vpop.permute.xlu0 %2823
        %v2827 = vadd.f32 %v2771, %v2822
        %v2828 = vadd.f32 %v2772, %v2824
        %v2829 = vld [vmem:[#allocation2 + $0x1] sm:$0xff]
        %v2830 = vld [vmem:[#allocation2 + $0x9] sm:$0xff]
        %s2831 = sld [smem:[#allocation13 + $0x3]]
        %v2832 = vstv %s2831
        %v2833 = vmul.f32 %v2832, %v2829
        %v2834 = vmul.f32 %v2832, %v2830
        %v2835 = vadd.f32 %v2785, %v2833
        %v2836 = vadd.f32 %v2786, %v2834
        %s2837 = sld [smem:[#allocation13 + $0x27]]
        %v2838 = vstv %s2837
        %v2839 = vmul.f32 %v2838, %v2829
        %v2840 = vmul.f32 %v2838, %v2830
        %v2841 = vadd.f32 %v2799, %v2839
        %v2842 = vadd.f32 %v2800, %v2840
        %s2843 = sld [smem:[#allocation13 + $0x4b]]
        %v2844 = vstv %s2843
        %v2845 = vmul.f32 %v2844, %v2829
        %v2846 = vmul.f32 %v2844, %v2830
        %v2847 = vadd.f32 %v2813, %v2845
        %v2848 = vadd.f32 %v2814, %v2846
        %s2849 = sld [smem:[#allocation13 + $0x6f]]
        %v2850 = vstv %s2849
        %v2851 = vmul.f32 %v2850, %v2829
        %v2852 = vmul.f32 %v2850, %v2830
        %v2853 = vadd.f32 %v2827, %v2851
        %v2854 = vadd.f32 %v2828, %v2852
        %v2855 = vld [vmem:[%s532 + $0x1] sm:$0xff]
        %v2856 = vld [vmem:[%s532 + $0x9] sm:$0xff]
        %s2857 = sld [smem:[#allocation13 + $0xc]]
        %v2858 = vstv %s2857
        %v2859 = vmul.f32 %v2858, %v2855
        %v2860 = vmul.f32 %v2858, %v2856
        %v2861 = vadd.f32 %v2835, %v2859
        %v2862 = vadd.f32 %v2836, %v2860
        %s2863 = sld [smem:[#allocation13 + $0x30]]
        %v2864 = vstv %s2863
        %v2865 = vmul.f32 %v2864, %v2855
        %v2866 = vmul.f32 %v2864, %v2856
        %v2867 = vadd.f32 %v2841, %v2865
        %v2868 = vadd.f32 %v2842, %v2866
        %s2869 = sld [smem:[#allocation13 + $0x54]]
        %v2870 = vstv %s2869
        %v2871 = vmul.f32 %v2870, %v2855
        %v2872 = vmul.f32 %v2870, %v2856
        %v2873 = vadd.f32 %v2847, %v2871
        %v2874 = vadd.f32 %v2848, %v2872
        %s2875 = sld [smem:[#allocation13 + $0x78]]
        %v2876 = vstv %s2875
        %v2877 = vmul.f32 %v2876, %v2855
        %v2878 = vmul.f32 %v2876, %v2856
        %v2879 = vadd.f32 %v2853, %v2877
        %v2880 = vadd.f32 %v2854, %v2878
        %v2881 = vld [vmem:[%s543 + $0x1] sm:$0xff]
        %v2882 = vld [vmem:[%s543 + $0x9] sm:$0xff]
        %s2883 = sld [smem:[#allocation13 + $0x15]]
        %v2884 = vstv %s2883
        %v2885 = vmul.f32 %v2884, %v2881
        %v2886 = vmul.f32 %v2884, %v2882
        %v2887 = vadd.f32 %v2861, %v2885
        %v2888 = vadd.f32 %v2862, %v2886
        %s2889 = sld [smem:[#allocation13 + $0x39]]
        %v2890 = vstv %s2889
        %v2891 = vmul.f32 %v2890, %v2881
        %v2892 = vmul.f32 %v2890, %v2882
        %v2893 = vadd.f32 %v2867, %v2891
        %v2894 = vadd.f32 %v2868, %v2892
        %s2895 = sld [smem:[#allocation13 + $0x5d]]
        %v2896 = vstv %s2895
        %v2897 = vmul.f32 %v2896, %v2881
        %v2898 = vmul.f32 %v2896, %v2882
        %v2899 = vadd.f32 %v2873, %v2897
        %v2900 = vadd.f32 %v2874, %v2898
        %s2901 = sld [smem:[#allocation13 + $0x81]]
        %v2902 = vstv %s2901
        %v2903 = vmul.f32 %v2902, %v2881
        %v2904 = vmul.f32 %v2902, %v2882
        %v2905 = vadd.f32 %v2879, %v2903
        %v2906 = vadd.f32 %v2880, %v2904
        %v2907 = vld [vmem:[%s554 + $0x1] sm:$0xff]
        %v2908 = vld [vmem:[%s554 + $0x9] sm:$0xff]
        %s2909 = sld [smem:[#allocation13 + $0x1e]]
        %v2910 = vstv %s2909
        %v2911 = vmul.f32 %v2910, %v2907
        %v2912 = vmul.f32 %v2910, %v2908
        %v2913 = vadd.f32 %v2887, %v2911
        %v2914 = vadd.f32 %v2888, %v2912
        %s2915 = sld [smem:[#allocation13 + $0x42]]
        %v2916 = vstv %s2915
        %v2917 = vmul.f32 %v2916, %v2907
        %v2918 = vmul.f32 %v2916, %v2908
        %v2919 = vadd.f32 %v2893, %v2917
        %v2920 = vadd.f32 %v2894, %v2918
        %s2921 = sld [smem:[#allocation13 + $0x66]]
        %v2922 = vstv %s2921
        %v2923 = vmul.f32 %v2922, %v2907
        %v2924 = vmul.f32 %v2922, %v2908
        %v2925 = vadd.f32 %v2899, %v2923
        %v2926 = vadd.f32 %v2900, %v2924
        %s2927 = sld [smem:[#allocation13 + $0x8a]]
        %v2928 = vstv %s2927
        %v2929 = vmul.f32 %v2928, %v2907
        %v2930 = vmul.f32 %v2928, %v2908
        %v2931 = vadd.f32 %v2905, %v2929
        %v2932 = vadd.f32 %v2906, %v2930
        %s2933 = sld [smem:[#allocation13 + $0x4]]
        %v2934 = vstv %s2933
        %v2935 = vmul.f32 %v2934, %v2829
        %v2936 = vmul.f32 %v2934, %v2830
        %2939 = vrot.lane.b32.xlu0 %v2935, 127
        %v2940 = vpop.permute.xlu0 %2939
        %2941 = vrot.lane.b32.xlu0 %v2936, 127
        %v2942 = vpop.permute.xlu0 %2941
        %v2945 = vadd.f32 %v2913, %v2940
        %v2946 = vadd.f32 %v2914, %v2942
        %s2947 = sld [smem:[#allocation13 + $0x28]]
        %v2948 = vstv %s2947
        %v2949 = vmul.f32 %v2948, %v2829
        %v2950 = vmul.f32 %v2948, %v2830
        %2953 = vrot.lane.b32.xlu0 %v2949, 127
        %v2954 = vpop.permute.xlu0 %2953
        %2955 = vrot.lane.b32.xlu0 %v2950, 127
        %v2956 = vpop.permute.xlu0 %2955
        %v2959 = vadd.f32 %v2919, %v2954
        %v2960 = vadd.f32 %v2920, %v2956
        %s2961 = sld [smem:[#allocation13 + $0x4c]]
        %v2962 = vstv %s2961
        %v2963 = vmul.f32 %v2962, %v2829
        %v2964 = vmul.f32 %v2962, %v2830
        %2967 = vrot.lane.b32.xlu0 %v2963, 127
        %v2968 = vpop.permute.xlu0 %2967
        %2969 = vrot.lane.b32.xlu0 %v2964, 127
        %v2970 = vpop.permute.xlu0 %2969
        %v2973 = vadd.f32 %v2925, %v2968
        %v2974 = vadd.f32 %v2926, %v2970
        %s2975 = sld [smem:[#allocation13 + $0x70]]
        %v2976 = vstv %s2975
        %v2977 = vmul.f32 %v2976, %v2829
        %v2978 = vmul.f32 %v2976, %v2830
        %2981 = vrot.lane.b32.xlu0 %v2977, 127
        %v2982 = vpop.permute.xlu0 %2981
        %2983 = vrot.lane.b32.xlu0 %v2978, 127
        %v2984 = vpop.permute.xlu0 %2983
        %v2987 = vadd.f32 %v2931, %v2982
        %v2988 = vadd.f32 %v2932, %v2984
        %s2989 = sld [smem:[#allocation13 + $0xd]]
        %v2990 = vstv %s2989
        %v2991 = vmul.f32 %v2990, %v2855
        %v2992 = vmul.f32 %v2990, %v2856
        %2995 = vrot.lane.b32.xlu0 %v2991, 127
        %v2996 = vpop.permute.xlu0 %2995
        %2997 = vrot.lane.b32.xlu0 %v2992, 127
        %v2998 = vpop.permute.xlu0 %2997
        %v3001 = vadd.f32 %v2945, %v2996
        %v3002 = vadd.f32 %v2946, %v2998
        %s3003 = sld [smem:[#allocation13 + $0x31]]
        %v3004 = vstv %s3003
        %v3005 = vmul.f32 %v3004, %v2855
        %v3006 = vmul.f32 %v3004, %v2856
        %3009 = vrot.lane.b32.xlu0 %v3005, 127
        %v3010 = vpop.permute.xlu0 %3009
        %3011 = vrot.lane.b32.xlu0 %v3006, 127
        %v3012 = vpop.permute.xlu0 %3011
        %v3015 = vadd.f32 %v2959, %v3010
        %v3016 = vadd.f32 %v2960, %v3012
        %s3017 = sld [smem:[#allocation13 + $0x55]]
        %v3018 = vstv %s3017
        %v3019 = vmul.f32 %v3018, %v2855
        %v3020 = vmul.f32 %v3018, %v2856
        %3023 = vrot.lane.b32.xlu0 %v3019, 127
        %v3024 = vpop.permute.xlu0 %3023
        %3025 = vrot.lane.b32.xlu0 %v3020, 127
        %v3026 = vpop.permute.xlu0 %3025
        %v3029 = vadd.f32 %v2973, %v3024
        %v3030 = vadd.f32 %v2974, %v3026
        %s3031 = sld [smem:[#allocation13 + $0x79]]
        %v3032 = vstv %s3031
        %v3033 = vmul.f32 %v3032, %v2855
        %v3034 = vmul.f32 %v3032, %v2856
        %3037 = vrot.lane.b32.xlu0 %v3033, 127
        %v3038 = vpop.permute.xlu0 %3037
        %3039 = vrot.lane.b32.xlu0 %v3034, 127
        %v3040 = vpop.permute.xlu0 %3039
        %v3043 = vadd.f32 %v2987, %v3038
        %v3044 = vadd.f32 %v2988, %v3040
        %s3045 = sld [smem:[#allocation13 + $0x16]]
        %v3046 = vstv %s3045
        %v3047 = vmul.f32 %v3046, %v2881
        %v3048 = vmul.f32 %v3046, %v2882
        %3051 = vrot.lane.b32.xlu0 %v3047, 127
        %v3052 = vpop.permute.xlu0 %3051
        %3053 = vrot.lane.b32.xlu0 %v3048, 127
        %v3054 = vpop.permute.xlu0 %3053
        %v3057 = vadd.f32 %v3001, %v3052
        %v3058 = vadd.f32 %v3002, %v3054
        %s3059 = sld [smem:[#allocation13 + $0x3a]]
        %v3060 = vstv %s3059
        %v3061 = vmul.f32 %v3060, %v2881
        %v3062 = vmul.f32 %v3060, %v2882
        %3065 = vrot.lane.b32.xlu0 %v3061, 127
        %v3066 = vpop.permute.xlu0 %3065
        %3067 = vrot.lane.b32.xlu0 %v3062, 127
        %v3068 = vpop.permute.xlu0 %3067
        %v3071 = vadd.f32 %v3015, %v3066
        %v3072 = vadd.f32 %v3016, %v3068
        %s3073 = sld [smem:[#allocation13 + $0x5e]]
        %v3074 = vstv %s3073
        %v3075 = vmul.f32 %v3074, %v2881
        %v3076 = vmul.f32 %v3074, %v2882
        %3079 = vrot.lane.b32.xlu0 %v3075, 127
        %v3080 = vpop.permute.xlu0 %3079
        %3081 = vrot.lane.b32.xlu0 %v3076, 127
        %v3082 = vpop.permute.xlu0 %3081
        %v3085 = vadd.f32 %v3029, %v3080
        %v3086 = vadd.f32 %v3030, %v3082
        %s3087 = sld [smem:[#allocation13 + $0x82]]
        %v3088 = vstv %s3087
        %v3089 = vmul.f32 %v3088, %v2881
        %v3090 = vmul.f32 %v3088, %v2882
        %3093 = vrot.lane.b32.xlu0 %v3089, 127
        %v3094 = vpop.permute.xlu0 %3093
        %3095 = vrot.lane.b32.xlu0 %v3090, 127
        %v3096 = vpop.permute.xlu0 %3095
        %v3099 = vadd.f32 %v3043, %v3094
        %v3100 = vadd.f32 %v3044, %v3096
        %s3101 = sld [smem:[#allocation13 + $0x1f]]
        %v3102 = vstv %s3101
        %v3103 = vmul.f32 %v3102, %v2907
        %v3104 = vmul.f32 %v3102, %v2908
        %3107 = vrot.lane.b32.xlu0 %v3103, 127
        %v3108 = vpop.permute.xlu0 %3107
        %3109 = vrot.lane.b32.xlu0 %v3104, 127
        %v3110 = vpop.permute.xlu0 %3109
        %v3113 = vadd.f32 %v3057, %v3108
        %v3114 = vadd.f32 %v3058, %v3110
        %s3115 = sld [smem:[#allocation13 + $0x43]]
        %v3116 = vstv %s3115
        %v3117 = vmul.f32 %v3116, %v2907
        %v3118 = vmul.f32 %v3116, %v2908
        %3121 = vrot.lane.b32.xlu0 %v3117, 127
        %v3122 = vpop.permute.xlu0 %3121
        %3123 = vrot.lane.b32.xlu0 %v3118, 127
        %v3124 = vpop.permute.xlu0 %3123
        %v3127 = vadd.f32 %v3071, %v3122
        %v3128 = vadd.f32 %v3072, %v3124
        %s3129 = sld [smem:[#allocation13 + $0x67]]
        %v3130 = vstv %s3129
        %v3131 = vmul.f32 %v3130, %v2907
        %v3132 = vmul.f32 %v3130, %v2908
        %3135 = vrot.lane.b32.xlu0 %v3131, 127
        %v3136 = vpop.permute.xlu0 %3135
        %3137 = vrot.lane.b32.xlu0 %v3132, 127
        %v3138 = vpop.permute.xlu0 %3137
        %v3141 = vadd.f32 %v3085, %v3136
        %v3142 = vadd.f32 %v3086, %v3138
        %s3143 = sld [smem:[#allocation13 + $0x8b]]
        %v3144 = vstv %s3143
        %v3145 = vmul.f32 %v3144, %v2907
        %v3146 = vmul.f32 %v3144, %v2908
        %3149 = vrot.lane.b32.xlu0 %v3145, 127
        %v3150 = vpop.permute.xlu0 %3149
        %3151 = vrot.lane.b32.xlu0 %v3146, 127
        %v3152 = vpop.permute.xlu0 %3151
        %v3155 = vadd.f32 %v3099, %v3150
        %v3156 = vadd.f32 %v3100, %v3152
        %s3157 = sld [smem:[#allocation13 + $0x5]]
        %v3158 = vstv %s3157
        %v3159 = vmul.f32 %v3158, %v2829
        %v3160 = vmul.f32 %v3158, %v2830
        %3163 = vrot.lane.b32.xlu0 %v3159, 126
        %v3164 = vpop.permute.xlu0 %3163
        %3165 = vrot.lane.b32.xlu0 %v3160, 126
        %v3166 = vpop.permute.xlu0 %3165
        %v3169 = vadd.f32 %v3113, %v3164
        %v3170 = vadd.f32 %v3114, %v3166
        %s3171 = sld [smem:[#allocation13 + $0x29]]
        %v3172 = vstv %s3171
        %v3173 = vmul.f32 %v3172, %v2829
        %v3174 = vmul.f32 %v3172, %v2830
        %3177 = vrot.lane.b32.xlu0 %v3173, 126
        %v3178 = vpop.permute.xlu0 %3177
        %3179 = vrot.lane.b32.xlu0 %v3174, 126
        %v3180 = vpop.permute.xlu0 %3179
        %v3183 = vadd.f32 %v3127, %v3178
        %v3184 = vadd.f32 %v3128, %v3180
        %s3185 = sld [smem:[#allocation13 + $0x4d]]
        %v3186 = vstv %s3185
        %v3187 = vmul.f32 %v3186, %v2829
        %v3188 = vmul.f32 %v3186, %v2830
        %3191 = vrot.lane.b32.xlu0 %v3187, 126
        %v3192 = vpop.permute.xlu0 %3191
        %3193 = vrot.lane.b32.xlu0 %v3188, 126
        %v3194 = vpop.permute.xlu0 %3193
        %v3197 = vadd.f32 %v3141, %v3192
        %v3198 = vadd.f32 %v3142, %v3194
        %s3199 = sld [smem:[#allocation13 + $0x71]]
        %v3200 = vstv %s3199
        %v3201 = vmul.f32 %v3200, %v2829
        %v3202 = vmul.f32 %v3200, %v2830
        %3205 = vrot.lane.b32.xlu0 %v3201, 126
        %v3206 = vpop.permute.xlu0 %3205
        %3207 = vrot.lane.b32.xlu0 %v3202, 126
        %v3208 = vpop.permute.xlu0 %3207
        %v3211 = vadd.f32 %v3155, %v3206
        %v3212 = vadd.f32 %v3156, %v3208
        %s3213 = sld [smem:[#allocation13 + $0xe]]
        %v3214 = vstv %s3213
        %v3215 = vmul.f32 %v3214, %v2855
        %v3216 = vmul.f32 %v3214, %v2856
        %3219 = vrot.lane.b32.xlu0 %v3215, 126
        %v3220 = vpop.permute.xlu0 %3219
        %3221 = vrot.lane.b32.xlu0 %v3216, 126
        %v3222 = vpop.permute.xlu0 %3221
        %v3225 = vadd.f32 %v3169, %v3220
        %v3226 = vadd.f32 %v3170, %v3222
        %s3227 = sld [smem:[#allocation13 + $0x32]]
        %v3228 = vstv %s3227
        %v3229 = vmul.f32 %v3228, %v2855
        %v3230 = vmul.f32 %v3228, %v2856
        %3233 = vrot.lane.b32.xlu0 %v3229, 126
        %v3234 = vpop.permute.xlu0 %3233
        %3235 = vrot.lane.b32.xlu0 %v3230, 126
        %v3236 = vpop.permute.xlu0 %3235
        %v3239 = vadd.f32 %v3183, %v3234
        %v3240 = vadd.f32 %v3184, %v3236
        %s3241 = sld [smem:[#allocation13 + $0x56]]
        %v3242 = vstv %s3241
        %v3243 = vmul.f32 %v3242, %v2855
        %v3244 = vmul.f32 %v3242, %v2856
        %3247 = vrot.lane.b32.xlu0 %v3243, 126
        %v3248 = vpop.permute.xlu0 %3247
        %3249 = vrot.lane.b32.xlu0 %v3244, 126
        %v3250 = vpop.permute.xlu0 %3249
        %v3253 = vadd.f32 %v3197, %v3248
        %v3254 = vadd.f32 %v3198, %v3250
        %s3255 = sld [smem:[#allocation13 + $0x7a]]
        %v3256 = vstv %s3255
        %v3257 = vmul.f32 %v3256, %v2855
        %v3258 = vmul.f32 %v3256, %v2856
        %3261 = vrot.lane.b32.xlu0 %v3257, 126
        %v3262 = vpop.permute.xlu0 %3261
        %3263 = vrot.lane.b32.xlu0 %v3258, 126
        %v3264 = vpop.permute.xlu0 %3263
        %v3267 = vadd.f32 %v3211, %v3262
        %v3268 = vadd.f32 %v3212, %v3264
        %s3269 = sld [smem:[#allocation13 + $0x17]]
        %v3270 = vstv %s3269
        %v3271 = vmul.f32 %v3270, %v2881
        %v3272 = vmul.f32 %v3270, %v2882
        %3275 = vrot.lane.b32.xlu0 %v3271, 126
        %v3276 = vpop.permute.xlu0 %3275
        %3277 = vrot.lane.b32.xlu0 %v3272, 126
        %v3278 = vpop.permute.xlu0 %3277
        %v3281 = vadd.f32 %v3225, %v3276
        %v3282 = vadd.f32 %v3226, %v3278
        %s3283 = sld [smem:[#allocation13 + $0x3b]]
        %v3284 = vstv %s3283
        %v3285 = vmul.f32 %v3284, %v2881
        %v3286 = vmul.f32 %v3284, %v2882
        %3289 = vrot.lane.b32.xlu0 %v3285, 126
        %v3290 = vpop.permute.xlu0 %3289
        %3291 = vrot.lane.b32.xlu0 %v3286, 126
        %v3292 = vpop.permute.xlu0 %3291
        %v3295 = vadd.f32 %v3239, %v3290
        %v3296 = vadd.f32 %v3240, %v3292
        %s3297 = sld [smem:[#allocation13 + $0x5f]]
        %v3298 = vstv %s3297
        %v3299 = vmul.f32 %v3298, %v2881
        %v3300 = vmul.f32 %v3298, %v2882
        %3303 = vrot.lane.b32.xlu0 %v3299, 126
        %v3304 = vpop.permute.xlu0 %3303
        %3305 = vrot.lane.b32.xlu0 %v3300, 126
        %v3306 = vpop.permute.xlu0 %3305
        %v3309 = vadd.f32 %v3253, %v3304
        %v3310 = vadd.f32 %v3254, %v3306
        %s3311 = sld [smem:[#allocation13 + $0x83]]
        %v3312 = vstv %s3311
        %v3313 = vmul.f32 %v3312, %v2881
        %v3314 = vmul.f32 %v3312, %v2882
        %3317 = vrot.lane.b32.xlu0 %v3313, 126
        %v3318 = vpop.permute.xlu0 %3317
        %3319 = vrot.lane.b32.xlu0 %v3314, 126
        %v3320 = vpop.permute.xlu0 %3319
        %v3323 = vadd.f32 %v3267, %v3318
        %v3324 = vadd.f32 %v3268, %v3320
        %s3325 = sld [smem:[#allocation13 + $0x20]]
        %v3326 = vstv %s3325
        %v3327 = vmul.f32 %v3326, %v2907
        %v3328 = vmul.f32 %v3326, %v2908
        %3331 = vrot.lane.b32.xlu0 %v3327, 126
        %v3332 = vpop.permute.xlu0 %3331
        %3333 = vrot.lane.b32.xlu0 %v3328, 126
        %v3334 = vpop.permute.xlu0 %3333
        %v3337 = vadd.f32 %v3281, %v3332
        %v3338 = vadd.f32 %v3282, %v3334
        %s3339 = sld [smem:[#allocation13 + $0x44]]
        %v3340 = vstv %s3339
        %v3341 = vmul.f32 %v3340, %v2907
        %v3342 = vmul.f32 %v3340, %v2908
        %3345 = vrot.lane.b32.xlu0 %v3341, 126
        %v3346 = vpop.permute.xlu0 %3345
        %3347 = vrot.lane.b32.xlu0 %v3342, 126
        %v3348 = vpop.permute.xlu0 %3347
        %v3351 = vadd.f32 %v3295, %v3346
        %v3352 = vadd.f32 %v3296, %v3348
        %s3353 = sld [smem:[#allocation13 + $0x68]]
        %v3354 = vstv %s3353
        %v3355 = vmul.f32 %v3354, %v2907
        %v3356 = vmul.f32 %v3354, %v2908
        %3359 = vrot.lane.b32.xlu0 %v3355, 126
        %v3360 = vpop.permute.xlu0 %3359
        %3361 = vrot.lane.b32.xlu0 %v3356, 126
        %v3362 = vpop.permute.xlu0 %3361
        %v3365 = vadd.f32 %v3309, %v3360
        %v3366 = vadd.f32 %v3310, %v3362
        %s3367 = sld [smem:[#allocation13 + $0x8c]]
        %v3368 = vstv %s3367
        %v3369 = vmul.f32 %v3368, %v2907
        %v3370 = vmul.f32 %v3368, %v2908
        %3373 = vrot.lane.b32.xlu0 %v3369, 126
        %v3374 = vpop.permute.xlu0 %3373
        %3375 = vrot.lane.b32.xlu0 %v3370, 126
        %v3376 = vpop.permute.xlu0 %3375
        %v3379 = vadd.f32 %v3323, %v3374
        %v3380 = vadd.f32 %v3324, %v3376
        %v3381 = vld [vmem:[#allocation2 + $0x2] sm:$0xff]
        %v3382 = vld [vmem:[#allocation2 + $0xa] sm:$0xff]
        %s3383 = sld [smem:[#allocation13 + $0x6]]
        %v3384 = vstv %s3383
        %v3385 = vmul.f32 %v3384, %v3381
        %v3386 = vmul.f32 %v3384, %v3382
        %v3387 = vadd.f32 %v3337, %v3385
        %v3388 = vadd.f32 %v3338, %v3386
        %s3389 = sld [smem:[#allocation13 + $0x2a]]
        %v3390 = vstv %s3389
        %v3391 = vmul.f32 %v3390, %v3381
        %v3392 = vmul.f32 %v3390, %v3382
        %v3393 = vadd.f32 %v3351, %v3391
        %v3394 = vadd.f32 %v3352, %v3392
        %s3395 = sld [smem:[#allocation13 + $0x4e]]
        %v3396 = vstv %s3395
        %v3397 = vmul.f32 %v3396, %v3381
        %v3398 = vmul.f32 %v3396, %v3382
        %v3399 = vadd.f32 %v3365, %v3397
        %v3400 = vadd.f32 %v3366, %v3398
        %s3401 = sld [smem:[#allocation13 + $0x72]]
        %v3402 = vstv %s3401
        %v3403 = vmul.f32 %v3402, %v3381
        %v3404 = vmul.f32 %v3402, %v3382
        %v3405 = vadd.f32 %v3379, %v3403
        %v3406 = vadd.f32 %v3380, %v3404
        %v3407 = vld [vmem:[%s532 + $0x2] sm:$0xff]
        %v3408 = vld [vmem:[%s532 + $0xa] sm:$0xff]
        %s3409 = sld [smem:[#allocation13 + $0xf]]
        %v3410 = vstv %s3409
        %v3411 = vmul.f32 %v3410, %v3407
        %v3412 = vmul.f32 %v3410, %v3408
        %v3413 = vadd.f32 %v3387, %v3411
        %v3414 = vadd.f32 %v3388, %v3412
        %s3415 = sld [smem:[#allocation13 + $0x33]]
        %v3416 = vstv %s3415
        %v3417 = vmul.f32 %v3416, %v3407
        %v3418 = vmul.f32 %v3416, %v3408
        %v3419 = vadd.f32 %v3393, %v3417
        %v3420 = vadd.f32 %v3394, %v3418
        %s3421 = sld [smem:[#allocation13 + $0x57]]
        %v3422 = vstv %s3421
        %v3423 = vmul.f32 %v3422, %v3407
        %v3424 = vmul.f32 %v3422, %v3408
        %v3425 = vadd.f32 %v3399, %v3423
        %v3426 = vadd.f32 %v3400, %v3424
        %s3427 = sld [smem:[#allocation13 + $0x7b]]
        %v3428 = vstv %s3427
        %v3429 = vmul.f32 %v3428, %v3407
        %v3430 = vmul.f32 %v3428, %v3408
        %v3431 = vadd.f32 %v3405, %v3429
        %v3432 = vadd.f32 %v3406, %v3430
        %v3433 = vld [vmem:[%s543 + $0x2] sm:$0xff]
        %v3434 = vld [vmem:[%s543 + $0xa] sm:$0xff]
        %s3435 = sld [smem:[#allocation13 + $0x18]]
        %v3436 = vstv %s3435
        %v3437 = vmul.f32 %v3436, %v3433
        %v3438 = vmul.f32 %v3436, %v3434
        %v3439 = vadd.f32 %v3413, %v3437
        %v3440 = vadd.f32 %v3414, %v3438
        %s3441 = sld [smem:[#allocation13 + $0x3c]]
        %v3442 = vstv %s3441
        %v3443 = vmul.f32 %v3442, %v3433
        %v3444 = vmul.f32 %v3442, %v3434
        %v3445 = vadd.f32 %v3419, %v3443
        %v3446 = vadd.f32 %v3420, %v3444
        %s3447 = sld [smem:[#allocation13 + $0x60]]
        %v3448 = vstv %s3447
        %v3449 = vmul.f32 %v3448, %v3433
        %v3450 = vmul.f32 %v3448, %v3434
        %v3451 = vadd.f32 %v3425, %v3449
        %v3452 = vadd.f32 %v3426, %v3450
        %s3453 = sld [smem:[#allocation13 + $0x84]]
        %v3454 = vstv %s3453
        %v3455 = vmul.f32 %v3454, %v3433
        %v3456 = vmul.f32 %v3454, %v3434
        %v3457 = vadd.f32 %v3431, %v3455
        %v3458 = vadd.f32 %v3432, %v3456
        %v3459 = vld [vmem:[%s554 + $0x2] sm:$0xff]
        %v3460 = vld [vmem:[%s554 + $0xa] sm:$0xff]
        %s3461 = sld [smem:[#allocation13 + $0x21]]
        %v3462 = vstv %s3461
        %v3463 = vmul.f32 %v3462, %v3459
        %v3464 = vmul.f32 %v3462, %v3460
        %v3465 = vadd.f32 %v3439, %v3463
        %v3466 = vadd.f32 %v3440, %v3464
        %s3467 = sld [smem:[#allocation13 + $0x45]]
        %v3468 = vstv %s3467
        %v3469 = vmul.f32 %v3468, %v3459
        %v3470 = vmul.f32 %v3468, %v3460
        %v3471 = vadd.f32 %v3445, %v3469
        %v3472 = vadd.f32 %v3446, %v3470
        %s3473 = sld [smem:[#allocation13 + $0x69]]
        %v3474 = vstv %s3473
        %v3475 = vmul.f32 %v3474, %v3459
        %v3476 = vmul.f32 %v3474, %v3460
        %v3477 = vadd.f32 %v3451, %v3475
        %v3478 = vadd.f32 %v3452, %v3476
        %s3479 = sld [smem:[#allocation13 + $0x8d]]
        %v3480 = vstv %s3479
        %v3481 = vmul.f32 %v3480, %v3459
        %v3482 = vmul.f32 %v3480, %v3460
        %v3483 = vadd.f32 %v3457, %v3481
        %v3484 = vadd.f32 %v3458, %v3482
        %s3485 = sld [smem:[#allocation13 + $0x7]]
        %v3486 = vstv %s3485
        %v3487 = vmul.f32 %v3486, %v3381
        %v3488 = vmul.f32 %v3486, %v3382
        %3491 = vrot.lane.b32.xlu0 %v3487, 127
        %v3492 = vpop.permute.xlu0 %3491
        %3493 = vrot.lane.b32.xlu0 %v3488, 127
        %v3494 = vpop.permute.xlu0 %3493
        %v3497 = vadd.f32 %v3465, %v3492
        %v3498 = vadd.f32 %v3466, %v3494
        %s3499 = sld [smem:[#allocation13 + $0x2b]]
        %v3500 = vstv %s3499
        %v3501 = vmul.f32 %v3500, %v3381
        %v3502 = vmul.f32 %v3500, %v3382
        %3505 = vrot.lane.b32.xlu0 %v3501, 127
        %v3506 = vpop.permute.xlu0 %3505
        %3507 = vrot.lane.b32.xlu0 %v3502, 127
        %v3508 = vpop.permute.xlu0 %3507
        %v3511 = vadd.f32 %v3471, %v3506
        %v3512 = vadd.f32 %v3472, %v3508
        %s3513 = sld [smem:[#allocation13 + $0x4f]]
        %v3514 = vstv %s3513
        %v3515 = vmul.f32 %v3514, %v3381
        %v3516 = vmul.f32 %v3514, %v3382
        %3519 = vrot.lane.b32.xlu0 %v3515, 127
        %v3520 = vpop.permute.xlu0 %3519
        %3521 = vrot.lane.b32.xlu0 %v3516, 127
        %v3522 = vpop.permute.xlu0 %3521
        %v3525 = vadd.f32 %v3477, %v3520
        %v3526 = vadd.f32 %v3478, %v3522
        %s3527 = sld [smem:[#allocation13 + $0x73]]
        %v3528 = vstv %s3527
        %v3529 = vmul.f32 %v3528, %v3381
        %v3530 = vmul.f32 %v3528, %v3382
        %3533 = vrot.lane.b32.xlu0 %v3529, 127
        %v3534 = vpop.permute.xlu0 %3533
        %3535 = vrot.lane.b32.xlu0 %v3530, 127
        %v3536 = vpop.permute.xlu0 %3535
        %v3539 = vadd.f32 %v3483, %v3534
        %v3540 = vadd.f32 %v3484, %v3536
        %s3541 = sld [smem:[#allocation13 + $0x10]]
        %v3542 = vstv %s3541
        %v3543 = vmul.f32 %v3542, %v3407
        %v3544 = vmul.f32 %v3542, %v3408
        %3547 = vrot.lane.b32.xlu0 %v3543, 127
        %v3548 = vpop.permute.xlu0 %3547
        %3549 = vrot.lane.b32.xlu0 %v3544, 127
        %v3550 = vpop.permute.xlu0 %3549
        %v3553 = vadd.f32 %v3497, %v3548
        %v3554 = vadd.f32 %v3498, %v3550
        %s3555 = sld [smem:[#allocation13 + $0x34]]
        %v3556 = vstv %s3555
        %v3557 = vmul.f32 %v3556, %v3407
        %v3558 = vmul.f32 %v3556, %v3408
        %3561 = vrot.lane.b32.xlu0 %v3557, 127
        %v3562 = vpop.permute.xlu0 %3561
        %3563 = vrot.lane.b32.xlu0 %v3558, 127
        %v3564 = vpop.permute.xlu0 %3563
        %v3567 = vadd.f32 %v3511, %v3562
        %v3568 = vadd.f32 %v3512, %v3564
        %s3569 = sld [smem:[#allocation13 + $0x58]]
        %v3570 = vstv %s3569
        %v3571 = vmul.f32 %v3570, %v3407
        %v3572 = vmul.f32 %v3570, %v3408
        %3575 = vrot.lane.b32.xlu0 %v3571, 127
        %v3576 = vpop.permute.xlu0 %3575
        %3577 = vrot.lane.b32.xlu0 %v3572, 127
        %v3578 = vpop.permute.xlu0 %3577
        %v3581 = vadd.f32 %v3525, %v3576
        %v3582 = vadd.f32 %v3526, %v3578
        %s3583 = sld [smem:[#allocation13 + $0x7c]]
        %v3584 = vstv %s3583
        %v3585 = vmul.f32 %v3584, %v3407
        %v3586 = vmul.f32 %v3584, %v3408
        %3589 = vrot.lane.b32.xlu0 %v3585, 127
        %v3590 = vpop.permute.xlu0 %3589
        %3591 = vrot.lane.b32.xlu0 %v3586, 127
        %v3592 = vpop.permute.xlu0 %3591
        %v3595 = vadd.f32 %v3539, %v3590
        %v3596 = vadd.f32 %v3540, %v3592
        %s3597 = sld [smem:[#allocation13 + $0x19]]
        %v3598 = vstv %s3597
        %v3599 = vmul.f32 %v3598, %v3433
        %v3600 = vmul.f32 %v3598, %v3434
        %3603 = vrot.lane.b32.xlu0 %v3599, 127
        %v3604 = vpop.permute.xlu0 %3603
        %3605 = vrot.lane.b32.xlu0 %v3600, 127
        %v3606 = vpop.permute.xlu0 %3605
        %v3609 = vadd.f32 %v3553, %v3604
        %v3610 = vadd.f32 %v3554, %v3606
        %s3611 = sld [smem:[#allocation13 + $0x3d]]
        %v3612 = vstv %s3611
        %v3613 = vmul.f32 %v3612, %v3433
        %v3614 = vmul.f32 %v3612, %v3434
        %3617 = vrot.lane.b32.xlu0 %v3613, 127
        %v3618 = vpop.permute.xlu0 %3617
        %3619 = vrot.lane.b32.xlu0 %v3614, 127
        %v3620 = vpop.permute.xlu0 %3619
        %v3623 = vadd.f32 %v3567, %v3618
        %v3624 = vadd.f32 %v3568, %v3620
        %s3625 = sld [smem:[#allocation13 + $0x61]]
        %v3626 = vstv %s3625
        %v3627 = vmul.f32 %v3626, %v3433
        %v3628 = vmul.f32 %v3626, %v3434
        %3631 = vrot.lane.b32.xlu0 %v3627, 127
        %v3632 = vpop.permute.xlu0 %3631
        %3633 = vrot.lane.b32.xlu0 %v3628, 127
        %v3634 = vpop.permute.xlu0 %3633
        %v3637 = vadd.f32 %v3581, %v3632
        %v3638 = vadd.f32 %v3582, %v3634
        %s3639 = sld [smem:[#allocation13 + $0x85]]
        %v3640 = vstv %s3639
        %v3641 = vmul.f32 %v3640, %v3433
        %v3642 = vmul.f32 %v3640, %v3434
        %3645 = vrot.lane.b32.xlu0 %v3641, 127
        %v3646 = vpop.permute.xlu0 %3645
        %3647 = vrot.lane.b32.xlu0 %v3642, 127
        %v3648 = vpop.permute.xlu0 %3647
        %v3651 = vadd.f32 %v3595, %v3646
        %v3652 = vadd.f32 %v3596, %v3648
        %s3653 = sld [smem:[#allocation13 + $0x22]]
        %v3654 = vstv %s3653
        %v3655 = vmul.f32 %v3654, %v3459
        %v3656 = vmul.f32 %v3654, %v3460
        %3659 = vrot.lane.b32.xlu0 %v3655, 127
        %v3660 = vpop.permute.xlu0 %3659
        %3661 = vrot.lane.b32.xlu0 %v3656, 127
        %v3662 = vpop.permute.xlu0 %3661
        %v3665 = vadd.f32 %v3609, %v3660
        %v3666 = vadd.f32 %v3610, %v3662
        %s3667 = sld [smem:[#allocation13 + $0x46]]
        %v3668 = vstv %s3667
        %v3669 = vmul.f32 %v3668, %v3459
        %v3670 = vmul.f32 %v3668, %v3460
        %3673 = vrot.lane.b32.xlu0 %v3669, 127
        %v3674 = vpop.permute.xlu0 %3673
        %3675 = vrot.lane.b32.xlu0 %v3670, 127
        %v3676 = vpop.permute.xlu0 %3675
        %v3679 = vadd.f32 %v3623, %v3674
        %v3680 = vadd.f32 %v3624, %v3676
        %s3681 = sld [smem:[#allocation13 + $0x6a]]
        %v3682 = vstv %s3681
        %v3683 = vmul.f32 %v3682, %v3459
        %v3684 = vmul.f32 %v3682, %v3460
        %3687 = vrot.lane.b32.xlu0 %v3683, 127
        %v3688 = vpop.permute.xlu0 %3687
        %3689 = vrot.lane.b32.xlu0 %v3684, 127
        %v3690 = vpop.permute.xlu0 %3689
        %v3693 = vadd.f32 %v3637, %v3688
        %v3694 = vadd.f32 %v3638, %v3690
        %s3695 = sld [smem:[#allocation13 + $0x8e]]
        %v3696 = vstv %s3695
        %v3697 = vmul.f32 %v3696, %v3459
        %v3698 = vmul.f32 %v3696, %v3460
        %3701 = vrot.lane.b32.xlu0 %v3697, 127
        %v3702 = vpop.permute.xlu0 %3701
        %3703 = vrot.lane.b32.xlu0 %v3698, 127
        %v3704 = vpop.permute.xlu0 %3703
        %v3707 = vadd.f32 %v3651, %v3702
        %v3708 = vadd.f32 %v3652, %v3704
        %s3709 = sld [smem:[#allocation13 + $0x8]]
        %v3710 = vstv %s3709
        %v3711 = vmul.f32 %v3710, %v3381
        %v3712 = vmul.f32 %v3710, %v3382
        %3715 = vrot.lane.b32.xlu0 %v3711, 126
        %v3716 = vpop.permute.xlu0 %3715
        %3717 = vrot.lane.b32.xlu0 %v3712, 126
        %v3718 = vpop.permute.xlu0 %3717
        %v3721 = vadd.f32 %v3665, %v3716
        %v3722 = vadd.f32 %v3666, %v3718
        %s3723 = sld [smem:[#allocation13 + $0x2c]]
        %v3724 = vstv %s3723
        %v3725 = vmul.f32 %v3724, %v3381
        %v3726 = vmul.f32 %v3724, %v3382
        %3729 = vrot.lane.b32.xlu0 %v3725, 126
        %v3730 = vpop.permute.xlu0 %3729
        %3731 = vrot.lane.b32.xlu0 %v3726, 126
        %v3732 = vpop.permute.xlu0 %3731
        %v3735 = vadd.f32 %v3679, %v3730
        %v3736 = vadd.f32 %v3680, %v3732
        %s3737 = sld [smem:[#allocation13 + $0x50]]
        %v3738 = vstv %s3737
        %v3739 = vmul.f32 %v3738, %v3381
        %v3740 = vmul.f32 %v3738, %v3382
        %3743 = vrot.lane.b32.xlu0 %v3739, 126
        %v3744 = vpop.permute.xlu0 %3743
        %3745 = vrot.lane.b32.xlu0 %v3740, 126
        %v3746 = vpop.permute.xlu0 %3745
        %v3749 = vadd.f32 %v3693, %v3744
        %v3750 = vadd.f32 %v3694, %v3746
        %s3751 = sld [smem:[#allocation13 + $0x74]]
        %v3752 = vstv %s3751
        %v3753 = vmul.f32 %v3752, %v3381
        %v3754 = vmul.f32 %v3752, %v3382
        %3757 = vrot.lane.b32.xlu0 %v3753, 126
        %v3758 = vpop.permute.xlu0 %3757
        %3759 = vrot.lane.b32.xlu0 %v3754, 126
        %v3760 = vpop.permute.xlu0 %3759
        %v3763 = vadd.f32 %v3707, %v3758
        %v3764 = vadd.f32 %v3708, %v3760
        %s3765 = sld [smem:[#allocation13 + $0x11]]
        %v3766 = vstv %s3765
        %v3767 = vmul.f32 %v3766, %v3407
        %v3768 = vmul.f32 %v3766, %v3408
        %3771 = vrot.lane.b32.xlu0 %v3767, 126
        %v3772 = vpop.permute.xlu0 %3771
        %3773 = vrot.lane.b32.xlu0 %v3768, 126
        %v3774 = vpop.permute.xlu0 %3773
        %v3777 = vadd.f32 %v3721, %v3772
        %v3778 = vadd.f32 %v3722, %v3774
        %s3779 = sld [smem:[#allocation13 + $0x35]]
        %v3780 = vstv %s3779
        %v3781 = vmul.f32 %v3780, %v3407
        %v3782 = vmul.f32 %v3780, %v3408
        %3785 = vrot.lane.b32.xlu0 %v3781, 126
        %v3786 = vpop.permute.xlu0 %3785
        %3787 = vrot.lane.b32.xlu0 %v3782, 126
        %v3788 = vpop.permute.xlu0 %3787
        %v3791 = vadd.f32 %v3735, %v3786
        %v3792 = vadd.f32 %v3736, %v3788
        %s3793 = sld [smem:[#allocation13 + $0x59]]
        %v3794 = vstv %s3793
        %v3795 = vmul.f32 %v3794, %v3407
        %v3796 = vmul.f32 %v3794, %v3408
        %3799 = vrot.lane.b32.xlu0 %v3795, 126
        %v3800 = vpop.permute.xlu0 %3799
        %3801 = vrot.lane.b32.xlu0 %v3796, 126
        %v3802 = vpop.permute.xlu0 %3801
        %v3805 = vadd.f32 %v3749, %v3800
        %v3806 = vadd.f32 %v3750, %v3802
        %s3807 = sld [smem:[#allocation13 + $0x7d]]
        %v3808 = vstv %s3807
        %v3809 = vmul.f32 %v3808, %v3407
        %v3810 = vmul.f32 %v3808, %v3408
        %3813 = vrot.lane.b32.xlu0 %v3809, 126
        %v3814 = vpop.permute.xlu0 %3813
        %3815 = vrot.lane.b32.xlu0 %v3810, 126
        %v3816 = vpop.permute.xlu0 %3815
        %v3819 = vadd.f32 %v3763, %v3814
        %v3820 = vadd.f32 %v3764, %v3816
        %s3821 = sld [smem:[#allocation13 + $0x1a]]
        %v3822 = vstv %s3821
        %v3823 = vmul.f32 %v3822, %v3433
        %v3824 = vmul.f32 %v3822, %v3434
        %3827 = vrot.lane.b32.xlu0 %v3823, 126
        %v3828 = vpop.permute.xlu0 %3827
        %3829 = vrot.lane.b32.xlu0 %v3824, 126
        %v3830 = vpop.permute.xlu0 %3829
        %v3833 = vadd.f32 %v3777, %v3828
        %v3834 = vadd.f32 %v3778, %v3830
        %s3835 = sld [smem:[#allocation13 + $0x3e]]
        %v3836 = vstv %s3835
        %v3837 = vmul.f32 %v3836, %v3433
        %v3838 = vmul.f32 %v3836, %v3434
        %3841 = vrot.lane.b32.xlu0 %v3837, 126
        %v3842 = vpop.permute.xlu0 %3841
        %3843 = vrot.lane.b32.xlu0 %v3838, 126
        %v3844 = vpop.permute.xlu0 %3843
        %v3847 = vadd.f32 %v3791, %v3842
        %v3848 = vadd.f32 %v3792, %v3844
        %s3849 = sld [smem:[#allocation13 + $0x62]]
        %v3850 = vstv %s3849
        %v3851 = vmul.f32 %v3850, %v3433
        %v3852 = vmul.f32 %v3850, %v3434
        %3855 = vrot.lane.b32.xlu0 %v3851, 126
        %v3856 = vpop.permute.xlu0 %3855
        %3857 = vrot.lane.b32.xlu0 %v3852, 126
        %v3858 = vpop.permute.xlu0 %3857
        %v3861 = vadd.f32 %v3805, %v3856
        %v3862 = vadd.f32 %v3806, %v3858
        %s3863 = sld [smem:[#allocation13 + $0x86]]
        %v3864 = vstv %s3863
        %v3865 = vmul.f32 %v3864, %v3433
        %v3866 = vmul.f32 %v3864, %v3434
        %3869 = vrot.lane.b32.xlu0 %v3865, 126
        %v3870 = vpop.permute.xlu0 %3869
        %3871 = vrot.lane.b32.xlu0 %v3866, 126
        %v3872 = vpop.permute.xlu0 %3871
        %v3875 = vadd.f32 %v3819, %v3870
        %v3876 = vadd.f32 %v3820, %v3872
        %s3877 = sld [smem:[#allocation13 + $0x23]]
        %v3878 = vstv %s3877
        %v3879 = vmul.f32 %v3878, %v3459
        %v3880 = vmul.f32 %v3878, %v3460
        %3883 = vrot.lane.b32.xlu0 %v3879, 126
        %v3884 = vpop.permute.xlu0 %3883
        %3885 = vrot.lane.b32.xlu0 %v3880, 126
        %v3886 = vpop.permute.xlu0 %3885
        %v3889 = vadd.f32 %v3833, %v3884
        %v3890 = vadd.f32 %v3834, %v3886
        %s3891 = sld [smem:[#allocation13 + $0x47]]
        %v3892 = vstv %s3891
        %v3893 = vmul.f32 %v3892, %v3459
        %v3894 = vmul.f32 %v3892, %v3460
        %3897 = vrot.lane.b32.xlu0 %v3893, 126
        %v3898 = vpop.permute.xlu0 %3897
        %3899 = vrot.lane.b32.xlu0 %v3894, 126
        %v3900 = vpop.permute.xlu0 %3899
        %v3903 = vadd.f32 %v3847, %v3898
        %v3904 = vadd.f32 %v3848, %v3900
        %s3905 = sld [smem:[#allocation13 + $0x6b]]
        %v3906 = vstv %s3905
        %v3907 = vmul.f32 %v3906, %v3459
        %v3908 = vmul.f32 %v3906, %v3460
        %3911 = vrot.lane.b32.xlu0 %v3907, 126
        %v3912 = vpop.permute.xlu0 %3911
        %3913 = vrot.lane.b32.xlu0 %v3908, 126
        %v3914 = vpop.permute.xlu0 %3913
        %v3917 = vadd.f32 %v3861, %v3912
        %v3918 = vadd.f32 %v3862, %v3914
        %s3919 = sld [smem:[#allocation13 + $0x8f]]
        %v3920 = vstv %s3919
        %v3921 = vmul.f32 %v3920, %v3459
        %v3922 = vmul.f32 %v3920, %v3460
        %3925 = vrot.lane.b32.xlu0 %v3921, 126
        %v3926 = vpop.permute.xlu0 %3925
        %3927 = vrot.lane.b32.xlu0 %v3922, 126
        %v3928 = vpop.permute.xlu0 %3927
        %v3931 = vadd.f32 %v3875, %v3926
        %v3932 = vadd.f32 %v3876, %v3928
        %v3933 = vadd.f32 %v3889, %v378
        %v3934 = vadd.f32 %v3890, %v379
        %v3935 = vmax.f32 %v3933, 0.0
        %v3936 = vmax.f32 %v3934, 0.0
        %3937 = vst.msk [vmem:[%s377] sm:$0xff] %vm386, %v3935
        %3938 = vst.msk [vmem:[%s377 + $0x8] sm:$0xff] %vm386, %v3936
        %v3939 = vadd.f32 %v3903, %v380
        %v3940 = vadd.f32 %v3904, %v381
        %v3941 = vmax.f32 %v3939, 0.0
        %v3942 = vmax.f32 %v3940, 0.0
        %s3943 = scalar_lea.vmem %s377, 16 [#allocation16]
        %3944 = vst.msk [vmem:[%s3943] sm:$0xff] %vm386, %v3941
        %3945 = vst.msk [vmem:[%s3943 + $0x8] sm:$0xff] %vm386, %v3942
        %v3946 = vadd.f32 %v3917, %v382
        %v3947 = vadd.f32 %v3918, %v383
        %v3948 = vmax.f32 %v3946, 0.0
        %v3949 = vmax.f32 %v3947, 0.0
        %s3950 = scalar_lea.vmem %s377, 32 [#allocation16]
        %3951 = vst.msk [vmem:[%s3950] sm:$0xff] %vm386, %v3948
        %3952 = vst.msk [vmem:[%s3950 + $0x8] sm:$0xff] %vm386, %v3949
        %v3953 = vadd.f32 %v3931, %v384
        %v3954 = vadd.f32 %v3932, %v385
        %v3955 = vmax.f32 %v3953, 0.0
        %v3956 = vmax.f32 %v3954, 0.0
        %s3957 = scalar_lea.vmem %s377, 48 [#allocation16]
        %3958 = vst.msk [vmem:[%s3957] sm:$0xff] %vm386, %v3955
        %3959 = vst.msk [vmem:[%s3957 + $0x8] sm:$0xff] %vm386, %v3956
        %s3960 = sand.u32 %s188, 1
        %s3961 = scalar_lea.sflag [#allocation5], %s3960
        %s3962 = sand.u32 %s188, 1
        %s3963 = smul.addr %s3962, 64
        %s3964 = scalar_lea.vmem [#allocation16], %s3963
        // Predicated region
        $region77: #{tpu_custom_call.1} parent=47 // pred_check
          %p3965 = pneg %p198
        $region78: #{tpu_custom_call.1} parent=47 // pred_check_branch
          %3967 = sbr.rel (%p3965) target = $region80
        $region79: #{tpu_custom_call.1} parent=47 // pred_region
          %s3969 = ssub.s32 1024, 1024
          %3970 = vsyncadd %s3961, %s3969
          %s3971 = smul.addr %s28, 8
          %s3972 = smul.addr %s3971, 128
          %s3973 = scalar_lea.hbm %s7, %s3972
          %s3974 = sshll.u32 %s3964, 4
          %s3975 = int_to_ptr.vmem [resolvable:$true] %s3974
          %3980 = dma.vmem_to_hbm [thread:$0]  %s3975, 1024, %s3973, %s3961, 128, 128, 8
        $region80: #{tpu_custom_call.1} parent=47 // pred_fallthru
          _
      $region48: #{tpu_custom_call.1} parent=5 // pred_fallthru
        _
      %p3981 = scmp.le.s32.totalorder 2, %s23
      // Predicated region
      $region81: #{tpu_custom_call.1} parent=5 // pred_check
        %p3982 = pneg %p3981
      $region82: #{tpu_custom_call.1} parent=5 // pred_check_branch
        %3984 = sbr.rel (%p3982) target = $region84
      $region83: #{tpu_custom_call.1} parent=5 // pred_region
        %s3985 = ssub.s32 %s23, 2
        // Predicated region
        $region85: #{tpu_custom_call.1} parent=83 // pred_check
          %p3986 = pneg %p204
        $region86: #{tpu_custom_call.1} parent=83 // pred_check_branch
          %3988 = sbr.rel (%p3986) target = $region88
        $region87: #{tpu_custom_call.1} parent=83 // pred_region
          %s3989 = sand.u32 %s189, 1
          %s3990 = scalar_lea.sflag [#allocation5], %s3989
          %s3991 = sand.u32 %s189, 1
          %s3992 = smul.addr %s3991, 64
          %s3993 = scalar_lea.vmem [#allocation16], %s3992
          %3994 = dma.done %s3990, 1024
        $region88: #{tpu_custom_call.1} parent=83 // pred_fallthru
          _
      $region84: #{tpu_custom_call.1} parent=5 // pred_fallthru
        _
    $region6: #{tpu_custom_call.1} parent=1 // loop_footer
      %s27 = sadd.s32 1, %s23
    $region7: #{tpu_custom_call.1} parent=1 // loop_footer_branch
      %22 = sbr.rel target = $region3
    $region8: #{tpu_custom_call.1} parent=1 // loop_exit
      _
    %3995 = vsyncpa [#allocation4], 1
    %s3996 = scalar_lea.sflag [#allocation4], 1
    %3997 = vsyncpa %s3996, 1
    %3998 = vsyncpa [#allocation8], 1
    %3999 = vsyncpa [#allocation5], 1
    %s4000 = scalar_lea.sflag [#allocation5], 1
    %4001 = vsyncpa %s4000, 1
    %4002 = vsyncpa [#allocation6], 1
    %s4003 = scalar_lea.sflag [#allocation6], 1
    %4004 = vsyncpa %s4003, 1
    %4005 = vsyncpa [#allocation12], 1
    %4006 = vsyncpa [#allocation15], 1

</llo_original>
